<compile_context>
chip_gen: v7x
topology: tpu7x:2x2x1
jax: 0.10.0
libtpu: 0.0.40
codegen_flags: <defaults>
</compile_context>

<pallas_src>
import functools

import numpy as np

import jax
import jax.numpy as jnp
from jax.experimental import pallas as pl
from jax.experimental.pallas import tpu as pltpu


def _round_up(v, m):
    return (v + m - 1) // m * m


def _dense_block_kernel(x_ref, mask_ref, scale_ref, shift_ref, w_ref, b_ref,
                        out_ref, *, width):
    """Fused DenseBlock forward for one grid step (B_blk images folded on lanes).

    x_ref:     (1, C0p, LANES)        input channels (zero-padded to C0p)
    mask_ref:  (9, 1, LANES)          per-tap validity masks (f32, tiled per image)
    scale_ref: (L, C_total_p, 1)      folded BN scale in padded-slab channel order
    shift_ref: (L, C_total_p, 1)      folded BN shift (zeros on pad rows)
    w_ref:     (L, 9, Gp, C_total_p)  conv weights, bf16, tap-major, zeros on pads
    b_ref:     (L, Gp, 1)             conv bias (f32, zeros on pad rows)
    out_ref:   (1, C_total_p, LANES)  resident activation slab == kernel output
    """
    c0_pad = x_ref.shape[1]
    n_layers, _, g_pad, _ = w_ref.shape
    lanes = out_ref.shape[2]

    # Seed the slab with the (pre-padded) input channels.  Rows past C0p are each
    # written by their producing layer as a full aligned Gp tile before any later
    # layer reads them, so no zero-fill pass is needed.
    out_ref[0, 0:c0_pad, :] = x_ref[0]

    for i in range(n_layers):                      # statically unrolled layer loop
        c_in_p = c0_pad + i * g_pad                # only channels that exist so far

        # BatchNorm2d (inference, folded to scale/shift) + SiLU.  Kept in f32 on the
        # VPU/EUP (v5e has no bf16 elementwise datapath).  Pad rows have zero
        # scale/shift and zero weights, so they contribute exactly zero.
        x = out_ref[0, 0:c_in_p, :].astype(jnp.float32)
        z = x * scale_ref[i, 0:c_in_p, :] + shift_ref[i, 0:c_in_p, :]
        a = z * jax.nn.sigmoid(z)                  # SiLU

        # 3x3 conv (pad=1): 9 lane-rolled, edge-masked taps, each fed to the MXU as
        # a small bf16 matmul and accumulated in f32 -- no 9x patch materialization.
        y = jnp.zeros((g_pad, lanes), jnp.float32)
        for kh in range(3):
            for kw in range(3):
                t = kh * 3 + kw
                off = (kh - 1) * width + (kw - 1)
                if off == 0:
                    tap = a                        # centre tap: mask is all ones
                else:
                    tap = pltpu.roll(a, (-off) % lanes, axis=1) * mask_ref[t]
                w_t = w_ref[i, t, :, 0:c_in_p]     # (Gp, c_in_p) bf16
                y = y + jnp.dot(w_t, tap.astype(jnp.bfloat16),
                                preferred_element_type=jnp.float32)
        y = y + b_ref[i]                           # conv bias (Gp, 1) broadcast

        # TODO(synk): Dropout2d(0.2) is identity in eval mode; training-mode channel
        # dropout and BatchNorm batch-statistic updates are not modeled.
        c0 = c0_pad + i * g_pad
        out_ref[0, c0:c0 + g_pad, :] = y.astype(out_ref.dtype)   # aligned full tile


def _edge_masks(H, W, b_blk):
    """(9, 1, b_blk*H*W) f32 masks: 1.0 where tap (kh, kw) reads inside its image."""
    mask = np.zeros((9, 1, H * W), np.float32)
    for kh in range(3):
        for kw in range(3):
            dh, dw = kh - 1, kw - 1
            m = np.zeros((H, W), np.float32)
            m[max(0, -dh): H - max(0, dh), max(0, -dw): W - max(0, dw)] = 1.0
            mask[kh * 3 + kw, 0] = m.reshape(H * W)
    return jnp.asarray(np.tile(mask, (1, 1, b_blk)))


def _pack_params(params, C0, G, C0p, Gp, C_total_p, eps):
    """Fold BN, scatter per-layer params into the padded slab layout, stack layers."""
    L = len(params)
    scales, shifts, weights, biases = [], [], [], []
    for i, p in enumerate(params):
        c_in = C0 + i * G
        # torch channel index c -> padded-slab row
        rows = np.array(
            [c if c < C0 else C0p + ((c - C0) // G) * Gp + (c - C0) % G
             for c in range(c_in)], dtype=np.int32)
        scale = (p["gamma"] / jnp.sqrt(p["var"] + eps)).astype(jnp.float32)
        shift = (p["beta"] - p["mean"] * scale).astype(jnp.float32)
        scales.append(jnp.zeros((C_total_p,), jnp.float32).at[rows].set(scale))
        shifts.append(jnp.zeros((C_total_p,), jnp.float32).at[rows].set(shift))
        # HWIO (3,3,c_in,G) -> (9, G, c_in) tap-major, scattered to padded rows, bf16.
        w = p["w"].astype(jnp.float32).reshape(9, c_in, G).transpose(0, 2, 1)
        w_full = jnp.zeros((9, Gp, C_total_p), jnp.float32).at[:, :G, rows].set(w)
        weights.append(w_full.astype(jnp.bfloat16))
        biases.append(jnp.zeros((Gp,), jnp.float32).at[:G].set(p["b"].astype(jnp.float32)))
    return (jnp.stack(scales).reshape(L, C_total_p, 1),
            jnp.stack(shifts).reshape(L, C_total_p, 1),
            jnp.stack(weights),
            jnp.stack(biases).reshape(L, Gp, 1))


def _pick_batch_block(n, hw, max_lanes=4096):
    """Largest divisor of n that keeps grid >= 2 (v7x: both TCs busy) and lanes small."""
    best = 1
    for d in range(1, n + 1):
        if n % d == 0 and n // d >= 2 and d * hw <= max_lanes:
            best = d
    return best


def dense_block_forward(x_nchw, params, upsample=False, eps=1e-5, batch_block=None):
    """DenseBlock.forward (eval). Input/output are NCHW, matching the PyTorch module."""
    N, C0, H, W = x_nchw.shape
    L = len(params)
    G = params[0]["w"].shape[-1]
    HW = H * W

    C0p = _round_up(C0, 8)
    Gp = _round_up(G, 8)
    C_total_p = C0p + L * Gp

    if batch_block is None:
        batch_block = _pick_batch_block(N, HW)
    assert N % batch_block == 0
    Nb = N // batch_block
    lanes = batch_block * HW

    scale_all, shift_all, w_all, b_all = _pack_params(params, C0, G, C0p, Gp,
                                                      C_total_p, eps)
    masks = _edge_masks(H, W, batch_block)

    # Pad input channels to a sublane tile and fold `batch_block` images onto lanes.
    x = x_nchw.reshape(N, C0, HW)
    x = jnp.pad(x, ((0, 0), (0, C0p - C0), (0, 0)))
    x = x.reshape(Nb, batch_block, C0p, HW).transpose(0, 2, 1, 3).reshape(Nb, C0p, lanes)

    # TODO(synk): for large images add a row-tiled spatial grid axis (1-row halo) and
    # size blocks for v7x's 32 MiB scoped / 64 MiB physical VMEM; at these sizes the
    # resident slab (C_total_p * lanes * 4 B) trivially fits every generation.
    out = pl.pallas_call(
        functools.partial(_dense_block_kernel, width=W),
        out_shape=jax.ShapeDtypeStruct((Nb, C_total_p, lanes), x_nchw.dtype),
        grid_spec=pltpu.PrefetchScalarGridSpec(
            num_scalar_prefetch=0,
            grid=(Nb,),
            in_specs=[
                pl.BlockSpec((1, C0p, lanes), lambda n: (n, 0, 0)),
                pl.BlockSpec((9, 1, lanes), lambda n: (0, 0, 0)),
                pl.BlockSpec((L, C_total_p, 1), lambda n: (0, 0, 0)),
                pl.BlockSpec((L, C_total_p, 1), lambda n: (0, 0, 0)),
                pl.BlockSpec((L, 9, Gp, C_total_p), lambda n: (0, 0, 0, 0)),
                pl.BlockSpec((L, Gp, 1), lambda n: (0, 0, 0)),
            ],
            out_specs=pl.BlockSpec((1, C_total_p, lanes), lambda n: (n, 0, 0)),
        ),
        compiler_params=pltpu.CompilerParams(dimension_semantics=("parallel",)),
    )(x, masks, scale_all, shift_all, w_all, b_all)

    # Un-fold batch from lanes and gather the real (non-padded) channel rows.
    out = out.reshape(Nb, C_total_p, batch_block, HW).transpose(0, 2, 1, 3)
    out = out.reshape(N, C_total_p, H, W)
    new_rows = [C0p + i * Gp + g for i in range(L) for g in range(G)]
    keep = new_rows if upsample else list(range(C0)) + new_rows
    # TODO(synk): for upsample=True the C0 input rows are still written back to HBM;
    # a separate new-features-only kernel output would save that writeback bandwidth.
    return jnp.take(out, jnp.asarray(np.array(keep, np.int32)), axis=1)


def dense_block_reference(x_nchw, params, upsample=False, eps=1e-5):
    """Pure-JAX/XLA reference of the same forward pass (for correctness checks)."""
    cur = x_nchw
    feats = []
    for p in params:
        scale = p["gamma"] / jnp.sqrt(p["var"] + eps)
        shift = p["beta"] - p["mean"] * scale
        z = cur * scale[None, :, None, None] + shift[None, :, None, None]
        a = z * jax.nn.sigmoid(z)
        y = jax.lax.conv_general_dilated(
            a, p["w"], window_strides=(1, 1), padding=((1, 1), (1, 1)),
            dimension_numbers=("NCHW", "HWIO", "NCHW"))
        y = y + p["b"][None, :, None, None]
        cur = jnp.concatenate([cur, y], axis=1)
        feats.append(y)
    return jnp.concatenate(feats, axis=1) if upsample else cur


def init_dense_block_params(key, in_channels, growth_rate, n_layers):
    """Deterministic synthetic parameters matching DenseBlock.__init__ shapes."""
    params = []
    for i in range(n_layers):
        c = in_channels + i * growth_rate
        key, k1, k2, k3, k4, k5, k6 = jax.random.split(key, 7)
        params.append(dict(
            gamma=jax.random.uniform(k1, (c,), jnp.float32, 0.5, 1.5),
            beta=0.1 * jax.random.normal(k2, (c,), jnp.float32),
            mean=0.1 * jax.random.normal(k3, (c,), jnp.float32),
            var=jax.random.uniform(k4, (c,), jnp.float32, 0.5, 1.5),
            # PyTorch conv weight is (G, C, 3, 3); stored here as HWIO (3, 3, C, G).
            w=jax.random.normal(k5, (3, 3, c, growth_rate), jnp.float32)
              / jnp.sqrt(9.0 * c),
            b=0.01 * jax.random.normal(k6, (growth_rate,), jnp.float32),
        ))
    return params


if __name__ == "__main__":
    key = jax.random.PRNGKey(0)
    k_x, k_x4, k_p = jax.random.split(key, 3)

    N, C0, H, W = 2, 4, 16, 16
    growth_rate, n_layers = 4, 3

    x = jax.random.normal(k_x, (N, C0, H, W), jnp.float32)
    params = init_dense_block_params(k_p, C0, growth_rate, n_layers)

    fwd = jax.jit(dense_block_forward, static_argnames=("upsample", "batch_block"))

    out = jax.block_until_ready(fwd(x, params, upsample=False))
    assert out.shape == (N, C0 + n_layers * growth_rate, H, W), out.shape

    out_up = jax.block_until_ready(fwd(x, params, upsample=True))
    assert out_up.shape == (N, n_layers * growth_rate, H, W), out_up.shape

    # Numerical check against the XLA reference (same BN/SiLU/conv eval semantics).
    ref = dense_block_reference(x, params, upsample=False)
    ref_up = dense_block_reference(x, params, upsample=True)
    np.testing.assert_allclose(np.asarray(out), np.asarray(ref), rtol=5e-2, atol=5e-2)
    np.testing.assert_allclose(np.asarray(out_up), np.asarray(ref_up), rtol=5e-2, atol=5e-2)

    # Batch-folded variant: 2 images per grid step (lanes = 2*H*W), grid still 2.
    x4 = jax.random.normal(k_x4, (4, C0, H, W), jnp.float32)
    out4 = jax.block_until_ready(fwd(x4, params, upsample=False, batch_block=2))
    ref4 = dense_block_reference(x4, params, upsample=False)
    np.testing.assert_allclose(np.asarray(out4), np.asarray(ref4), rtol=5e-2, atol=5e-2)

    print("KERNEL_OK")
</pallas_src>

<mosaic_0001>
module attributes {stable_mosaic.version = 11 : i64} {
  func.func @_dense_block_kernel(%arg0: i32, %arg1: memref<1x8x256xf32, #tpu.memory_space<vmem>>, %arg2: memref<9x1x256xf32, #tpu.memory_space<vmem>>, %arg3: memref<3x32x1xf32, #tpu.memory_space<vmem>>, %arg4: memref<3x32x1xf32, #tpu.memory_space<vmem>>, %arg5: memref<3x9x8x32xbf16, #tpu.memory_space<vmem>>, %arg6: memref<3x8x1xf32, #tpu.memory_space<vmem>>, %arg7: memref<1x32x256xf32, #tpu.memory_space<vmem>>) attributes {dimension_semantics = [#tpu.dimension_semantics<parallel>], iteration_bounds = array<i64: 2>, scalar_prefetch = 0 : i64, scratch_operands = 0 : i64, tpu.core_type = #tpu.core_type<tc>, window_params = [{transform_indices = @transform_0, window_bounds = array<i64: 1, 8, 256>}, {pipeline_mode = #tpu.pipeline_mode<synchronous>, transform_indices = @transform_1, window_bounds = array<i64: 9, 1, 256>}, {pipeline_mode = #tpu.pipeline_mode<synchronous>, transform_indices = @transform_2, window_bounds = array<i64: 3, 32, 1>}, {pipeline_mode = #tpu.pipeline_mode<synchronous>, transform_indices = @transform_3, window_bounds = array<i64: 3, 32, 1>}, {pipeline_mode = #tpu.pipeline_mode<synchronous>, transform_indices = @transform_4, window_bounds = array<i64: 3, 9, 8, 32>}, {pipeline_mode = #tpu.pipeline_mode<synchronous>, transform_indices = @transform_5, window_bounds = array<i64: 3, 8, 1>}, {transform_indices = @transform_6, window_bounds = array<i64: 1, 32, 256>}]} {
    %c0 = arith.constant 0 : index
    %c0_0 = arith.constant 0 : index
    %c0_1 = arith.constant 0 : index
    %0 = vector.load %arg1[%c0, %c0_0, %c0_1] : memref<1x8x256xf32, #tpu.memory_space<vmem>>, vector<1x8x256xf32>
    %1 = vector.shape_cast %0 : vector<1x8x256xf32> to vector<8x256xf32>
    %c0_2 = arith.constant 0 : index
    %c0_3 = arith.constant 0 : index
    %c0_4 = arith.constant 0 : index
    %2 = vector.load %arg7[%c0_2, %c0_3, %c0_4] : memref<1x32x256xf32, #tpu.memory_space<vmem>>, vector<1x8x256xf32>
    %3 = vector.shape_cast %2 : vector<1x8x256xf32> to vector<8x256xf32>
    %4 = vector.shape_cast %1 : vector<8x256xf32> to vector<1x8x256xf32>
    tpu.vector_store %arg7[%c0_2, %c0_3, %c0_4], %4 {strides = array<i32>} : memref<1x32x256xf32, #tpu.memory_space<vmem>>, vector<1x8x256xf32>,
    %c0_5 = arith.constant 0 : index
    %c0_6 = arith.constant 0 : index
    %c0_7 = arith.constant 0 : index
    %5 = vector.load %arg7[%c0_5, %c0_6, %c0_7] : memref<1x32x256xf32, #tpu.memory_space<vmem>>, vector<1x8x256xf32>
    %6 = vector.shape_cast %5 : vector<1x8x256xf32> to vector<8x256xf32>
    %c0_8 = arith.constant 0 : index
    %c0_9 = arith.constant 0 : index
    %c0_10 = arith.constant 0 : index
    %7 = vector.load %arg3[%c0_8, %c0_9, %c0_10] : memref<3x32x1xf32, #tpu.memory_space<vmem>>, vector<1x8x1xf32>
    %8 = vector.shape_cast %7 : vector<1x8x1xf32> to vector<8x1xf32>
    %9 = vector.broadcast %8 : vector<8x1xf32> to vector<8x256xf32>
    %10 = arith.mulf %6, %9 : vector<8x256xf32>
    %c0_11 = arith.constant 0 : index
    %c0_12 = arith.constant 0 : index
    %c0_13 = arith.constant 0 : index
    %11 = vector.load %arg4[%c0_11, %c0_12, %c0_13] : memref<3x32x1xf32, #tpu.memory_space<vmem>>, vector<1x8x1xf32>
    %12 = vector.shape_cast %11 : vector<1x8x1xf32> to vector<8x1xf32>
    %13 = vector.broadcast %12 : vector<8x1xf32> to vector<8x256xf32>
    %14 = arith.addf %10, %13 : vector<8x256xf32>
    %15 = arith.negf %14 : vector<8x256xf32>
    %16 = math.exp %15 : vector<8x256xf32>
    %cst = arith.constant 1.000000e+00 : f32
    %17 = vector.broadcast %cst : f32 to vector<8x256xf32>
    %18 = arith.addf %17, %16 : vector<8x256xf32>
    %19 = arith.divf %17, %18 : vector<8x256xf32>
    %20 = arith.mulf %14, %19 : vector<8x256xf32>
    %cst_14 = arith.constant 0.000000e+00 : f32
    %21 = vector.broadcast %cst_14 : f32 to vector<8x256xf32>
    %c17_i32 = arith.constant 17 : i32
    %22 = tpu.dynamic_rotate %20 by %c17_i32 dim 1 : vector<8x256xf32>, i32 -> vector<8x256xf32>
    %c0_15 = arith.constant 0 : index
    %c0_16 = arith.constant 0 : index
    %c0_17 = arith.constant 0 : index
    %23 = vector.load %arg2[%c0_15, %c0_16, %c0_17] : memref<9x1x256xf32, #tpu.memory_space<vmem>>, vector<1x1x256xf32>
    %24 = vector.shape_cast %23 : vector<1x1x256xf32> to vector<1x256xf32>
    %25 = vector.broadcast %24 : vector<1x256xf32> to vector<8x256xf32>
    %26 = arith.mulf %22, %25 : vector<8x256xf32>
    %c0_18 = arith.constant 0 : index
    %c0_19 = arith.constant 0 : index
    %c0_20 = arith.constant 0 : index
    %c0_21 = arith.constant 0 : index
    %27 = vector.load %arg5[%c0_18, %c0_19, %c0_20, %c0_21] : memref<3x9x8x32xbf16, #tpu.memory_space<vmem>>, vector<1x1x8x8xbf16>
    %28 = vector.shape_cast %27 : vector<1x1x8x8xbf16> to vector<8x8xbf16>
    %29 = arith.truncf %26 : vector<8x256xf32> to vector<8x256xbf16>
    %cst_22 = arith.constant dense<0.000000e+00> : vector<8x256xf32>
    %30 = tpu.matmul %28, %29, %cst_22 {dimension_numbers = #tpu.dot_dimension_numbers<[1], [0], [0], [1], [0, 0, 1, 1], [], []>} : vector<8x8xbf16>, vector<8x256xbf16>, vector<8x256xf32> -> vector<8x256xf32>
    %31 = arith.addf %21, %30 : vector<8x256xf32>
    %c16_i32 = arith.constant 16 : i32
    %32 = tpu.dynamic_rotate %20 by %c16_i32 dim 1 : vector<8x256xf32>, i32 -> vector<8x256xf32>
    %c1 = arith.constant 1 : index
    %c0_23 = arith.constant 0 : index
    %c0_24 = arith.constant 0 : index
    %33 = vector.load %arg2[%c1, %c0_23, %c0_24] : memref<9x1x256xf32, #tpu.memory_space<vmem>>, vector<1x1x256xf32>
    %34 = vector.shape_cast %33 : vector<1x1x256xf32> to vector<1x256xf32>
    %35 = vector.broadcast %34 : vector<1x256xf32> to vector<8x256xf32>
    %36 = arith.mulf %32, %35 : vector<8x256xf32>
    %c0_25 = arith.constant 0 : index
    %c1_26 = arith.constant 1 : index
    %c0_27 = arith.constant 0 : index
    %c0_28 = arith.constant 0 : index
    %37 = vector.load %arg5[%c0_25, %c1_26, %c0_27, %c0_28] : memref<3x9x8x32xbf16, #tpu.memory_space<vmem>>, vector<1x1x8x8xbf16>
    %38 = vector.shape_cast %37 : vector<1x1x8x8xbf16> to vector<8x8xbf16>
    %39 = arith.truncf %36 : vector<8x256xf32> to vector<8x256xbf16>
    %cst_29 = arith.constant dense<0.000000e+00> : vector<8x256xf32>
    %40 = tpu.matmul %38, %39, %cst_29 {dimension_numbers = #tpu.dot_dimension_numbers<[1], [0], [0], [1], [0, 0, 1, 1], [], []>} : vector<8x8xbf16>, vector<8x256xbf16>, vector<8x256xf32> -> vector<8x256xf32>
    %41 = arith.addf %31, %40 : vector<8x256xf32>
    %c15_i32 = arith.constant 15 : i32
    %42 = tpu.dynamic_rotate %20 by %c15_i32 dim 1 : vector<8x256xf32>, i32 -> vector<8x256xf32>
    %c2 = arith.constant 2 : index
    %c0_30 = arith.constant 0 : index
    %c0_31 = arith.constant 0 : index
    %43 = vector.load %arg2[%c2, %c0_30, %c0_31] : memref<9x1x256xf32, #tpu.memory_space<vmem>>, vector<1x1x256xf32>
    %44 = vector.shape_cast %43 : vector<1x1x256xf32> to vector<1x256xf32>
    %45 = vector.broadcast %44 : vector<1x256xf32> to vector<8x256xf32>
    %46 = arith.mulf %42, %45 : vector<8x256xf32>
    %c0_32 = arith.constant 0 : index
    %c2_33 = arith.constant 2 : index
    %c0_34 = arith.constant 0 : index
    %c0_35 = arith.constant 0 : index
    %47 = vector.load %arg5[%c0_32, %c2_33, %c0_34, %c0_35] : memref<3x9x8x32xbf16, #tpu.memory_space<vmem>>, vector<1x1x8x8xbf16>
    %48 = vector.shape_cast %47 : vector<1x1x8x8xbf16> to vector<8x8xbf16>
    %49 = arith.truncf %46 : vector<8x256xf32> to vector<8x256xbf16>
    %cst_36 = arith.constant dense<0.000000e+00> : vector<8x256xf32>
    %50 = tpu.matmul %48, %49, %cst_36 {dimension_numbers = #tpu.dot_dimension_numbers<[1], [0], [0], [1], [0, 0, 1, 1], [], []>} : vector<8x8xbf16>, vector<8x256xbf16>, vector<8x256xf32> -> vector<8x256xf32>
    %51 = arith.addf %41, %50 : vector<8x256xf32>
    %c1_i32 = arith.constant 1 : i32
    %52 = tpu.dynamic_rotate %20 by %c1_i32 dim 1 : vector<8x256xf32>, i32 -> vector<8x256xf32>
    %c3 = arith.constant 3 : index
    %c0_37 = arith.constant 0 : index
    %c0_38 = arith.constant 0 : index
    %53 = vector.load %arg2[%c3, %c0_37, %c0_38] : memref<9x1x256xf32, #tpu.memory_space<vmem>>, vector<1x1x256xf32>
    %54 = vector.shape_cast %53 : vector<1x1x256xf32> to vector<1x256xf32>
    %55 = vector.broadcast %54 : vector<1x256xf32> to vector<8x256xf32>
    %56 = arith.mulf %52, %55 : vector<8x256xf32>
    %c0_39 = arith.constant 0 : index
    %c3_40 = arith.constant 3 : index
    %c0_41 = arith.constant 0 : index
    %c0_42 = arith.constant 0 : index
    %57 = vector.load %arg5[%c0_39, %c3_40, %c0_41, %c0_42] : memref<3x9x8x32xbf16, #tpu.memory_space<vmem>>, vector<1x1x8x8xbf16>
    %58 = vector.shape_cast %57 : vector<1x1x8x8xbf16> to vector<8x8xbf16>
    %59 = arith.truncf %56 : vector<8x256xf32> to vector<8x256xbf16>
    %cst_43 = arith.constant dense<0.000000e+00> : vector<8x256xf32>
    %60 = tpu.matmul %58, %59, %cst_43 {dimension_numbers = #tpu.dot_dimension_numbers<[1], [0], [0], [1], [0, 0, 1, 1], [], []>} : vector<8x8xbf16>, vector<8x256xbf16>, vector<8x256xf32> -> vector<8x256xf32>
    %61 = arith.addf %51, %60 : vector<8x256xf32>
    %c0_44 = arith.constant 0 : index
    %c4 = arith.constant 4 : index
    %c0_45 = arith.constant 0 : index
    %c0_46 = arith.constant 0 : index
    %62 = vector.load %arg5[%c0_44, %c4, %c0_45, %c0_46] : memref<3x9x8x32xbf16, #tpu.memory_space<vmem>>, vector<1x1x8x8xbf16>
    %63 = vector.shape_cast %62 : vector<1x1x8x8xbf16> to vector<8x8xbf16>
    %64 = arith.truncf %20 : vector<8x256xf32> to vector<8x256xbf16>
    %cst_47 = arith.constant dense<0.000000e+00> : vector<8x256xf32>
    %65 = tpu.matmul %63, %64, %cst_47 {dimension_numbers = #tpu.dot_dimension_numbers<[1], [0], [0], [1], [0, 0, 1, 1], [], []>} : vector<8x8xbf16>, vector<8x256xbf16>, vector<8x256xf32> -> vector<8x256xf32>
    %66 = arith.addf %61, %65 : vector<8x256xf32>
    %c255_i32 = arith.constant 255 : i32
    %67 = tpu.dynamic_rotate %20 by %c255_i32 dim 1 : vector<8x256xf32>, i32 -> vector<8x256xf32>
    %c5 = arith.constant 5 : index
    %c0_48 = arith.constant 0 : index
    %c0_49 = arith.constant 0 : index
    %68 = vector.load %arg2[%c5, %c0_48, %c0_49] : memref<9x1x256xf32, #tpu.memory_space<vmem>>, vector<1x1x256xf32>
    %69 = vector.shape_cast %68 : vector<1x1x256xf32> to vector<1x256xf32>
    %70 = vector.broadcast %69 : vector<1x256xf32> to vector<8x256xf32>
    %71 = arith.mulf %67, %70 : vector<8x256xf32>
    %c0_50 = arith.constant 0 : index
    %c5_51 = arith.constant 5 : index
    %c0_52 = arith.constant 0 : index
    %c0_53 = arith.constant 0 : index
    %72 = vector.load %arg5[%c0_50, %c5_51, %c0_52, %c0_53] : memref<3x9x8x32xbf16, #tpu.memory_space<vmem>>, vector<1x1x8x8xbf16>
    %73 = vector.shape_cast %72 : vector<1x1x8x8xbf16> to vector<8x8xbf16>
    %74 = arith.truncf %71 : vector<8x256xf32> to vector<8x256xbf16>
    %cst_54 = arith.constant dense<0.000000e+00> : vector<8x256xf32>
    %75 = tpu.matmul %73, %74, %cst_54 {dimension_numbers = #tpu.dot_dimension_numbers<[1], [0], [0], [1], [0, 0, 1, 1], [], []>} : vector<8x8xbf16>, vector<8x256xbf16>, vector<8x256xf32> -> vector<8x256xf32>
    %76 = arith.addf %66, %75 : vector<8x256xf32>
    %c241_i32 = arith.constant 241 : i32
    %77 = tpu.dynamic_rotate %20 by %c241_i32 dim 1 : vector<8x256xf32>, i32 -> vector<8x256xf32>
    %c6 = arith.constant 6 : index
    %c0_55 = arith.constant 0 : index
    %c0_56 = arith.constant 0 : index
    %78 = vector.load %arg2[%c6, %c0_55, %c0_56] : memref<9x1x256xf32, #tpu.memory_space<vmem>>, vector<1x1x256xf32>
    %79 = vector.shape_cast %78 : vector<1x1x256xf32> to vector<1x256xf32>
    %80 = vector.broadcast %79 : vector<1x256xf32> to vector<8x256xf32>
    %81 = arith.mulf %77, %80 : vector<8x256xf32>
    %c0_57 = arith.constant 0 : index
    %c6_58 = arith.constant 6 : index
    %c0_59 = arith.constant 0 : index
    %c0_60 = arith.constant 0 : index
    %82 = vector.load %arg5[%c0_57, %c6_58, %c0_59, %c0_60] : memref<3x9x8x32xbf16, #tpu.memory_space<vmem>>, vector<1x1x8x8xbf16>
    %83 = vector.shape_cast %82 : vector<1x1x8x8xbf16> to vector<8x8xbf16>
    %84 = arith.truncf %81 : vector<8x256xf32> to vector<8x256xbf16>
    %cst_61 = arith.constant dense<0.000000e+00> : vector<8x256xf32>
    %85 = tpu.matmul %83, %84, %cst_61 {dimension_numbers = #tpu.dot_dimension_numbers<[1], [0], [0], [1], [0, 0, 1, 1], [], []>} : vector<8x8xbf16>, vector<8x256xbf16>, vector<8x256xf32> -> vector<8x256xf32>
    %86 = arith.addf %76, %85 : vector<8x256xf32>
    %c240_i32 = arith.constant 240 : i32
    %87 = tpu.dynamic_rotate %20 by %c240_i32 dim 1 : vector<8x256xf32>, i32 -> vector<8x256xf32>
    %c7 = arith.constant 7 : index
    %c0_62 = arith.constant 0 : index
    %c0_63 = arith.constant 0 : index
    %88 = vector.load %arg2[%c7, %c0_62, %c0_63] : memref<9x1x256xf32, #tpu.memory_space<vmem>>, vector<1x1x256xf32>
    %89 = vector.shape_cast %88 : vector<1x1x256xf32> to vector<1x256xf32>
    %90 = vector.broadcast %89 : vector<1x256xf32> to vector<8x256xf32>
    %91 = arith.mulf %87, %90 : vector<8x256xf32>
    %c0_64 = arith.constant 0 : index
    %c7_65 = arith.constant 7 : index
    %c0_66 = arith.constant 0 : index
    %c0_67 = arith.constant 0 : index
    %92 = vector.load %arg5[%c0_64, %c7_65, %c0_66, %c0_67] : memref<3x9x8x32xbf16, #tpu.memory_space<vmem>>, vector<1x1x8x8xbf16>
    %93 = vector.shape_cast %92 : vector<1x1x8x8xbf16> to vector<8x8xbf16>
    %94 = arith.truncf %91 : vector<8x256xf32> to vector<8x256xbf16>
    %cst_68 = arith.constant dense<0.000000e+00> : vector<8x256xf32>
    %95 = tpu.matmul %93, %94, %cst_68 {dimension_numbers = #tpu.dot_dimension_numbers<[1], [0], [0], [1], [0, 0, 1, 1], [], []>} : vector<8x8xbf16>, vector<8x256xbf16>, vector<8x256xf32> -> vector<8x256xf32>
    %96 = arith.addf %86, %95 : vector<8x256xf32>
    %c239_i32 = arith.constant 239 : i32
    %97 = tpu.dynamic_rotate %20 by %c239_i32 dim 1 : vector<8x256xf32>, i32 -> vector<8x256xf32>
    %c8 = arith.constant 8 : index
    %c0_69 = arith.constant 0 : index
    %c0_70 = arith.constant 0 : index
    %98 = vector.load %arg2[%c8, %c0_69, %c0_70] : memref<9x1x256xf32, #tpu.memory_space<vmem>>, vector<1x1x256xf32>
    %99 = vector.shape_cast %98 : vector<1x1x256xf32> to vector<1x256xf32>
    %100 = vector.broadcast %99 : vector<1x256xf32> to vector<8x256xf32>
    %101 = arith.mulf %97, %100 : vector<8x256xf32>
    %c0_71 = arith.constant 0 : index
    %c8_72 = arith.constant 8 : index
    %c0_73 = arith.constant 0 : index
    %c0_74 = arith.constant 0 : index
    %102 = vector.load %arg5[%c0_71, %c8_72, %c0_73, %c0_74] : memref<3x9x8x32xbf16, #tpu.memory_space<vmem>>, vector<1x1x8x8xbf16>
    %103 = vector.shape_cast %102 : vector<1x1x8x8xbf16> to vector<8x8xbf16>
    %104 = arith.truncf %101 : vector<8x256xf32> to vector<8x256xbf16>
    %cst_75 = arith.constant dense<0.000000e+00> : vector<8x256xf32>
    %105 = tpu.matmul %103, %104, %cst_75 {dimension_numbers = #tpu.dot_dimension_numbers<[1], [0], [0], [1], [0, 0, 1, 1], [], []>} : vector<8x8xbf16>, vector<8x256xbf16>, vector<8x256xf32> -> vector<8x256xf32>
    %106 = arith.addf %96, %105 : vector<8x256xf32>
    %c0_76 = arith.constant 0 : index
    %c0_77 = arith.constant 0 : index
    %c0_78 = arith.constant 0 : index
    %107 = vector.load %arg6[%c0_76, %c0_77, %c0_78] : memref<3x8x1xf32, #tpu.memory_space<vmem>>, vector<1x8x1xf32>
    %108 = vector.shape_cast %107 : vector<1x8x1xf32> to vector<8x1xf32>
    %109 = vector.broadcast %108 : vector<8x1xf32> to vector<8x256xf32>
    %110 = arith.addf %106, %109 : vector<8x256xf32>
    %c0_79 = arith.constant 0 : index
    %c8_80 = arith.constant 8 : index
    %c0_81 = arith.constant 0 : index
    %111 = vector.load %arg7[%c0_79, %c8_80, %c0_81] : memref<1x32x256xf32, #tpu.memory_space<vmem>>, vector<1x8x256xf32>
    %112 = vector.shape_cast %111 : vector<1x8x256xf32> to vector<8x256xf32>
    %113 = vector.shape_cast %110 : vector<8x256xf32> to vector<1x8x256xf32>
    tpu.vector_store %arg7[%c0_79, %c8_80, %c0_81], %113 {strides = array<i32>} : memref<1x32x256xf32, #tpu.memory_space<vmem>>, vector<1x8x256xf32>,
    %c0_82 = arith.constant 0 : index
    %c0_83 = arith.constant 0 : index
    %c0_84 = arith.constant 0 : index
    %114 = vector.load %arg7[%c0_82, %c0_83, %c0_84] : memref<1x32x256xf32, #tpu.memory_space<vmem>>, vector<1x16x256xf32>
    %115 = vector.shape_cast %114 : vector<1x16x256xf32> to vector<16x256xf32>
    %c1_85 = arith.constant 1 : index
    %c0_86 = arith.constant 0 : index
    %c0_87 = arith.constant 0 : index
    %116 = vector.load %arg3[%c1_85, %c0_86, %c0_87] : memref<3x32x1xf32, #tpu.memory_space<vmem>>, vector<1x16x1xf32>
    %117 = vector.shape_cast %116 : vector<1x16x1xf32> to vector<16x1xf32>
    %118 = vector.broadcast %117 : vector<16x1xf32> to vector<16x256xf32>
    %119 = arith.mulf %115, %118 : vector<16x256xf32>
    %c1_88 = arith.constant 1 : index
    %c0_89 = arith.constant 0 : index
    %c0_90 = arith.constant 0 : index
    %120 = vector.load %arg4[%c1_88, %c0_89, %c0_90] : memref<3x32x1xf32, #tpu.memory_space<vmem>>, vector<1x16x1xf32>
    %121 = vector.shape_cast %120 : vector<1x16x1xf32> to vector<16x1xf32>
    %122 = vector.broadcast %121 : vector<16x1xf32> to vector<16x256xf32>
    %123 = arith.addf %119, %122 : vector<16x256xf32>
    %124 = arith.negf %123 : vector<16x256xf32>
    %125 = math.exp %124 : vector<16x256xf32>
    %cst_91 = arith.constant 1.000000e+00 : f32
    %126 = vector.broadcast %cst_91 : f32 to vector<16x256xf32>
    %127 = arith.addf %126, %125 : vector<16x256xf32>
    %128 = arith.divf %126, %127 : vector<16x256xf32>
    %129 = arith.mulf %123, %128 : vector<16x256xf32>
    %cst_92 = arith.constant 0.000000e+00 : f32
    %130 = vector.broadcast %cst_92 : f32 to vector<8x256xf32>
    %c17_i32_93 = arith.constant 17 : i32
    %131 = tpu.dynamic_rotate %129 by %c17_i32_93 dim 1 : vector<16x256xf32>, i32 -> vector<16x256xf32>
    %c0_94 = arith.constant 0 : index
    %c0_95 = arith.constant 0 : index
    %c0_96 = arith.constant 0 : index
    %132 = vector.load %arg2[%c0_94, %c0_95, %c0_96] : memref<9x1x256xf32, #tpu.memory_space<vmem>>, vector<1x1x256xf32>
    %133 = vector.shape_cast %132 : vector<1x1x256xf32> to vector<1x256xf32>
    %134 = vector.broadcast %133 : vector<1x256xf32> to vector<16x256xf32>
    %135 = arith.mulf %131, %134 : vector<16x256xf32>
    %c1_97 = arith.constant 1 : index
    %c0_98 = arith.constant 0 : index
    %c0_99 = arith.constant 0 : index
    %c0_100 = arith.constant 0 : index
    %136 = vector.load %arg5[%c1_97, %c0_98, %c0_99, %c0_100] : memref<3x9x8x32xbf16, #tpu.memory_space<vmem>>, vector<1x1x8x16xbf16>
    %137 = vector.shape_cast %136 : vector<1x1x8x16xbf16> to vector<8x16xbf16>
    %138 = arith.truncf %135 : vector<16x256xf32> to vector<16x256xbf16>
    %cst_101 = arith.constant dense<0.000000e+00> : vector<8x256xf32>
    %139 = tpu.matmul %137, %138, %cst_101 {dimension_numbers = #tpu.dot_dimension_numbers<[1], [0], [0], [1], [0, 0, 1, 1], [], []>} : vector<8x16xbf16>, vector<16x256xbf16>, vector<8x256xf32> -> vector<8x256xf32>
    %140 = arith.addf %130, %139 : vector<8x256xf32>
    %c16_i32_102 = arith.constant 16 : i32
    %141 = tpu.dynamic_rotate %129 by %c16_i32_102 dim 1 : vector<16x256xf32>, i32 -> vector<16x256xf32>
    %c1_103 = arith.constant 1 : index
    %c0_104 = arith.constant 0 : index
    %c0_105 = arith.constant 0 : index
    %142 = vector.load %arg2[%c1_103, %c0_104, %c0_105] : memref<9x1x256xf32, #tpu.memory_space<vmem>>, vector<1x1x256xf32>
    %143 = vector.shape_cast %142 : vector<1x1x256xf32> to vector<1x256xf32>
    %144 = vector.broadcast %143 : vector<1x256xf32> to vector<16x256xf32>
    %145 = arith.mulf %141, %144 : vector<16x256xf32>
    %c1_106 = arith.constant 1 : index
    %c1_107 = arith.constant 1 : index
    %c0_108 = arith.constant 0 : index
    %c0_109 = arith.constant 0 : index
    %146 = vector.load %arg5[%c1_106, %c1_107, %c0_108, %c0_109] : memref<3x9x8x32xbf16, #tpu.memory_space<vmem>>, vector<1x1x8x16xbf16>
    %147 = vector.shape_cast %146 : vector<1x1x8x16xbf16> to vector<8x16xbf16>
    %148 = arith.truncf %145 : vector<16x256xf32> to vector<16x256xbf16>
    %cst_110 = arith.constant dense<0.000000e+00> : vector<8x256xf32>
    %149 = tpu.matmul %147, %148, %cst_110 {dimension_numbers = #tpu.dot_dimension_numbers<[1], [0], [0], [1], [0, 0, 1, 1], [], []>} : vector<8x16xbf16>, vector<16x256xbf16>, vector<8x256xf32> -> vector<8x256xf32>
    %150 = arith.addf %140, %149 : vector<8x256xf32>
    %c15_i32_111 = arith.constant 15 : i32
    %151 = tpu.dynamic_rotate %129 by %c15_i32_111 dim 1 : vector<16x256xf32>, i32 -> vector<16x256xf32>
    %c2_112 = arith.constant 2 : index
    %c0_113 = arith.constant 0 : index
    %c0_114 = arith.constant 0 : index
    %152 = vector.load %arg2[%c2_112, %c0_113, %c0_114] : memref<9x1x256xf32, #tpu.memory_space<vmem>>, vector<1x1x256xf32>
    %153 = vector.shape_cast %152 : vector<1x1x256xf32> to vector<1x256xf32>
    %154 = vector.broadcast %153 : vector<1x256xf32> to vector<16x256xf32>
    %155 = arith.mulf %151, %154 : vector<16x256xf32>
    %c1_115 = arith.constant 1 : index
    %c2_116 = arith.constant 2 : index
    %c0_117 = arith.constant 0 : index
    %c0_118 = arith.constant 0 : index
    %156 = vector.load %arg5[%c1_115, %c2_116, %c0_117, %c0_118] : memref<3x9x8x32xbf16, #tpu.memory_space<vmem>>, vector<1x1x8x16xbf16>
    %157 = vector.shape_cast %156 : vector<1x1x8x16xbf16> to vector<8x16xbf16>
    %158 = arith.truncf %155 : vector<16x256xf32> to vector<16x256xbf16>
    %cst_119 = arith.constant dense<0.000000e+00> : vector<8x256xf32>
    %159 = tpu.matmul %157, %158, %cst_119 {dimension_numbers = #tpu.dot_dimension_numbers<[1], [0], [0], [1], [0, 0, 1, 1], [], []>} : vector<8x16xbf16>, vector<16x256xbf16>, vector<8x256xf32> -> vector<8x256xf32>
    %160 = arith.addf %150, %159 : vector<8x256xf32>
    %c1_i32_120 = arith.constant 1 : i32
    %161 = tpu.dynamic_rotate %129 by %c1_i32_120 dim 1 : vector<16x256xf32>, i32 -> vector<16x256xf32>
    %c3_121 = arith.constant 3 : index
    %c0_122 = arith.constant 0 : index
    %c0_123 = arith.constant 0 : index
    %162 = vector.load %arg2[%c3_121, %c0_122, %c0_123] : memref<9x1x256xf32, #tpu.memory_space<vmem>>, vector<1x1x256xf32>
    %163 = vector.shape_cast %162 : vector<1x1x256xf32> to vector<1x256xf32>
    %164 = vector.broadcast %163 : vector<1x256xf32> to vector<16x256xf32>
    %165 = arith.mulf %161, %164 : vector<16x256xf32>
    %c1_124 = arith.constant 1 : index
    %c3_125 = arith.constant 3 : index
    %c0_126 = arith.constant 0 : index
    %c0_127 = arith.constant 0 : index
    %166 = vector.load %arg5[%c1_124, %c3_125, %c0_126, %c0_127] : memref<3x9x8x32xbf16, #tpu.memory_space<vmem>>, vector<1x1x8x16xbf16>
    %167 = vector.shape_cast %166 : vector<1x1x8x16xbf16> to vector<8x16xbf16>
    %168 = arith.truncf %165 : vector<16x256xf32> to vector<16x256xbf16>
    %cst_128 = arith.constant dense<0.000000e+00> : vector<8x256xf32>
    %169 = tpu.matmul %167, %168, %cst_128 {dimension_numbers = #tpu.dot_dimension_numbers<[1], [0], [0], [1], [0, 0, 1, 1], [], []>} : vector<8x16xbf16>, vector<16x256xbf16>, vector<8x256xf32> -> vector<8x256xf32>
    %170 = arith.addf %160, %169 : vector<8x256xf32>
    %c1_129 = arith.constant 1 : index
    %c4_130 = arith.constant 4 : index
    %c0_131 = arith.constant 0 : index
    %c0_132 = arith.constant 0 : index
    %171 = vector.load %arg5[%c1_129, %c4_130, %c0_131, %c0_132] : memref<3x9x8x32xbf16, #tpu.memory_space<vmem>>, vector<1x1x8x16xbf16>
    %172 = vector.shape_cast %171 : vector<1x1x8x16xbf16> to vector<8x16xbf16>
    %173 = arith.truncf %129 : vector<16x256xf32> to vector<16x256xbf16>
    %cst_133 = arith.constant dense<0.000000e+00> : vector<8x256xf32>
    %174 = tpu.matmul %172, %173, %cst_133 {dimension_numbers = #tpu.dot_dimension_numbers<[1], [0], [0], [1], [0, 0, 1, 1], [], []>} : vector<8x16xbf16>, vector<16x256xbf16>, vector<8x256xf32> -> vector<8x256xf32>
    %175 = arith.addf %170, %174 : vector<8x256xf32>
    %c255_i32_134 = arith.constant 255 : i32
    %176 = tpu.dynamic_rotate %129 by %c255_i32_134 dim 1 : vector<16x256xf32>, i32 -> vector<16x256xf32>
    %c5_135 = arith.constant 5 : index
    %c0_136 = arith.constant 0 : index
    %c0_137 = arith.constant 0 : index
    %177 = vector.load %arg2[%c5_135, %c0_136, %c0_137] : memref<9x1x256xf32, #tpu.memory_space<vmem>>, vector<1x1x256xf32>
    %178 = vector.shape_cast %177 : vector<1x1x256xf32> to vector<1x256xf32>
    %179 = vector.broadcast %178 : vector<1x256xf32> to vector<16x256xf32>
    %180 = arith.mulf %176, %179 : vector<16x256xf32>
    %c1_138 = arith.constant 1 : index
    %c5_139 = arith.constant 5 : index
    %c0_140 = arith.constant 0 : index
    %c0_141 = arith.constant 0 : index
    %181 = vector.load %arg5[%c1_138, %c5_139, %c0_140, %c0_141] : memref<3x9x8x32xbf16, #tpu.memory_space<vmem>>, vector<1x1x8x16xbf16>
    %182 = vector.shape_cast %181 : vector<1x1x8x16xbf16> to vector<8x16xbf16>
    %183 = arith.truncf %180 : vector<16x256xf32> to vector<16x256xbf16>
    %cst_142 = arith.constant dense<0.000000e+00> : vector<8x256xf32>
    %184 = tpu.matmul %182, %183, %cst_142 {dimension_numbers = #tpu.dot_dimension_numbers<[1], [0], [0], [1], [0, 0, 1, 1], [], []>} : vector<8x16xbf16>, vector<16x256xbf16>, vector<8x256xf32> -> vector<8x256xf32>
    %185 = arith.addf %175, %184 : vector<8x256xf32>
    %c241_i32_143 = arith.constant 241 : i32
    %186 = tpu.dynamic_rotate %129 by %c241_i32_143 dim 1 : vector<16x256xf32>, i32 -> vector<16x256xf32>
    %c6_144 = arith.constant 6 : index
    %c0_145 = arith.constant 0 : index
    %c0_146 = arith.constant 0 : index
    %187 = vector.load %arg2[%c6_144, %c0_145, %c0_146] : memref<9x1x256xf32, #tpu.memory_space<vmem>>, vector<1x1x256xf32>
    %188 = vector.shape_cast %187 : vector<1x1x256xf32> to vector<1x256xf32>
    %189 = vector.broadcast %188 : vector<1x256xf32> to vector<16x256xf32>
    %190 = arith.mulf %186, %189 : vector<16x256xf32>
    %c1_147 = arith.constant 1 : index
    %c6_148 = arith.constant 6 : index
    %c0_149 = arith.constant 0 : index
    %c0_150 = arith.constant 0 : index
    %191 = vector.load %arg5[%c1_147, %c6_148, %c0_149, %c0_150] : memref<3x9x8x32xbf16, #tpu.memory_space<vmem>>, vector<1x1x8x16xbf16>
    %192 = vector.shape_cast %191 : vector<1x1x8x16xbf16> to vector<8x16xbf16>
    %193 = arith.truncf %190 : vector<16x256xf32> to vector<16x256xbf16>
    %cst_151 = arith.constant dense<0.000000e+00> : vector<8x256xf32>
    %194 = tpu.matmul %192, %193, %cst_151 {dimension_numbers = #tpu.dot_dimension_numbers<[1], [0], [0], [1], [0, 0, 1, 1], [], []>} : vector<8x16xbf16>, vector<16x256xbf16>, vector<8x256xf32> -> vector<8x256xf32>
    %195 = arith.addf %185, %194 : vector<8x256xf32>
    %c240_i32_152 = arith.constant 240 : i32
    %196 = tpu.dynamic_rotate %129 by %c240_i32_152 dim 1 : vector<16x256xf32>, i32 -> vector<16x256xf32>
    %c7_153 = arith.constant 7 : index
    %c0_154 = arith.constant 0 : index
    %c0_155 = arith.constant 0 : index
    %197 = vector.load %arg2[%c7_153, %c0_154, %c0_155] : memref<9x1x256xf32, #tpu.memory_space<vmem>>, vector<1x1x256xf32>
    %198 = vector.shape_cast %197 : vector<1x1x256xf32> to vector<1x256xf32>
    %199 = vector.broadcast %198 : vector<1x256xf32> to vector<16x256xf32>
    %200 = arith.mulf %196, %199 : vector<16x256xf32>
    %c1_156 = arith.constant 1 : index
    %c7_157 = arith.constant 7 : index
    %c0_158 = arith.constant 0 : index
    %c0_159 = arith.constant 0 : index
    %201 = vector.load %arg5[%c1_156, %c7_157, %c0_158, %c0_159] : memref<3x9x8x32xbf16, #tpu.memory_space<vmem>>, vector<1x1x8x16xbf16>
    %202 = vector.shape_cast %201 : vector<1x1x8x16xbf16> to vector<8x16xbf16>
    %203 = arith.truncf %200 : vector<16x256xf32> to vector<16x256xbf16>
    %cst_160 = arith.constant dense<0.000000e+00> : vector<8x256xf32>
    %204 = tpu.matmul %202, %203, %cst_160 {dimension_numbers = #tpu.dot_dimension_numbers<[1], [0], [0], [1], [0, 0, 1, 1], [], []>} : vector<8x16xbf16>, vector<16x256xbf16>, vector<8x256xf32> -> vector<8x256xf32>
    %205 = arith.addf %195, %204 : vector<8x256xf32>
    %c239_i32_161 = arith.constant 239 : i32
    %206 = tpu.dynamic_rotate %129 by %c239_i32_161 dim 1 : vector<16x256xf32>, i32 -> vector<16x256xf32>
    %c8_162 = arith.constant 8 : index
    %c0_163 = arith.constant 0 : index
    %c0_164 = arith.constant 0 : index
    %207 = vector.load %arg2[%c8_162, %c0_163, %c0_164] : memref<9x1x256xf32, #tpu.memory_space<vmem>>, vector<1x1x256xf32>
    %208 = vector.shape_cast %207 : vector<1x1x256xf32> to vector<1x256xf32>
    %209 = vector.broadcast %208 : vector<1x256xf32> to vector<16x256xf32>
    %210 = arith.mulf %206, %209 : vector<16x256xf32>
    %c1_165 = arith.constant 1 : index
    %c8_166 = arith.constant 8 : index
    %c0_167 = arith.constant 0 : index
    %c0_168 = arith.constant 0 : index
    %211 = vector.load %arg5[%c1_165, %c8_166, %c0_167, %c0_168] : memref<3x9x8x32xbf16, #tpu.memory_space<vmem>>, vector<1x1x8x16xbf16>
    %212 = vector.shape_cast %211 : vector<1x1x8x16xbf16> to vector<8x16xbf16>
    %213 = arith.truncf %210 : vector<16x256xf32> to vector<16x256xbf16>
    %cst_169 = arith.constant dense<0.000000e+00> : vector<8x256xf32>
    %214 = tpu.matmul %212, %213, %cst_169 {dimension_numbers = #tpu.dot_dimension_numbers<[1], [0], [0], [1], [0, 0, 1, 1], [], []>} : vector<8x16xbf16>, vector<16x256xbf16>, vector<8x256xf32> -> vector<8x256xf32>
    %215 = arith.addf %205, %214 : vector<8x256xf32>
    %c1_170 = arith.constant 1 : index
    %c0_171 = arith.constant 0 : index
    %c0_172 = arith.constant 0 : index
    %216 = vector.load %arg6[%c1_170, %c0_171, %c0_172] : memref<3x8x1xf32, #tpu.memory_space<vmem>>, vector<1x8x1xf32>
    %217 = vector.shape_cast %216 : vector<1x8x1xf32> to vector<8x1xf32>
    %218 = vector.broadcast %217 : vector<8x1xf32> to vector<8x256xf32>
    %219 = arith.addf %215, %218 : vector<8x256xf32>
    %c0_173 = arith.constant 0 : index
    %c16 = arith.constant 16 : index
    %c0_174 = arith.constant 0 : index
    %220 = vector.load %arg7[%c0_173, %c16, %c0_174] : memref<1x32x256xf32, #tpu.memory_space<vmem>>, vector<1x8x256xf32>
    %221 = vector.shape_cast %220 : vector<1x8x256xf32> to vector<8x256xf32>
    %222 = vector.shape_cast %219 : vector<8x256xf32> to vector<1x8x256xf32>
    tpu.vector_store %arg7[%c0_173, %c16, %c0_174], %222 {strides = array<i32>} : memref<1x32x256xf32, #tpu.memory_space<vmem>>, vector<1x8x256xf32>,
    %c0_175 = arith.constant 0 : index
    %c0_176 = arith.constant 0 : index
    %c0_177 = arith.constant 0 : index
    %223 = vector.load %arg7[%c0_175, %c0_176, %c0_177] : memref<1x32x256xf32, #tpu.memory_space<vmem>>, vector<1x24x256xf32>
    %224 = vector.shape_cast %223 : vector<1x24x256xf32> to vector<24x256xf32>
    %c2_178 = arith.constant 2 : index
    %c0_179 = arith.constant 0 : index
    %c0_180 = arith.constant 0 : index
    %225 = vector.load %arg3[%c2_178, %c0_179, %c0_180] : memref<3x32x1xf32, #tpu.memory_space<vmem>>, vector<1x24x1xf32>
    %226 = vector.shape_cast %225 : vector<1x24x1xf32> to vector<24x1xf32>
    %227 = vector.broadcast %226 : vector<24x1xf32> to vector<24x256xf32>
    %228 = arith.mulf %224, %227 : vector<24x256xf32>
    %c2_181 = arith.constant 2 : index
    %c0_182 = arith.constant 0 : index
    %c0_183 = arith.constant 0 : index
    %229 = vector.load %arg4[%c2_181, %c0_182, %c0_183] : memref<3x32x1xf32, #tpu.memory_space<vmem>>, vector<1x24x1xf32>
    %230 = vector.shape_cast %229 : vector<1x24x1xf32> to vector<24x1xf32>
    %231 = vector.broadcast %230 : vector<24x1xf32> to vector<24x256xf32>
    %232 = arith.addf %228, %231 : vector<24x256xf32>
    %233 = arith.negf %232 : vector<24x256xf32>
    %234 = math.exp %233 : vector<24x256xf32>
    %cst_184 = arith.constant 1.000000e+00 : f32
    %235 = vector.broadcast %cst_184 : f32 to vector<24x256xf32>
    %236 = arith.addf %235, %234 : vector<24x256xf32>
    %237 = arith.divf %235, %236 : vector<24x256xf32>
    %238 = arith.mulf %232, %237 : vector<24x256xf32>
    %cst_185 = arith.constant 0.000000e+00 : f32
    %239 = vector.broadcast %cst_185 : f32 to vector<8x256xf32>
    %c17_i32_186 = arith.constant 17 : i32
    %240 = tpu.dynamic_rotate %238 by %c17_i32_186 dim 1 : vector<24x256xf32>, i32 -> vector<24x256xf32>
    %c0_187 = arith.constant 0 : index
    %c0_188 = arith.constant 0 : index
    %c0_189 = arith.constant 0 : index
    %241 = vector.load %arg2[%c0_187, %c0_188, %c0_189] : memref<9x1x256xf32, #tpu.memory_space<vmem>>, vector<1x1x256xf32>
    %242 = vector.shape_cast %241 : vector<1x1x256xf32> to vector<1x256xf32>
    %243 = vector.broadcast %242 : vector<1x256xf32> to vector<24x256xf32>
    %244 = arith.mulf %240, %243 : vector<24x256xf32>
    %c2_190 = arith.constant 2 : index
    %c0_191 = arith.constant 0 : index
    %c0_192 = arith.constant 0 : index
    %c0_193 = arith.constant 0 : index
    %245 = vector.load %arg5[%c2_190, %c0_191, %c0_192, %c0_193] : memref<3x9x8x32xbf16, #tpu.memory_space<vmem>>, vector<1x1x8x24xbf16>
    %246 = vector.shape_cast %245 : vector<1x1x8x24xbf16> to vector<8x24xbf16>
    %247 = arith.truncf %244 : vector<24x256xf32> to vector<24x256xbf16>
    %cst_194 = arith.constant dense<0.000000e+00> : vector<8x256xf32>
    %248 = tpu.matmul %246, %247, %cst_194 {dimension_numbers = #tpu.dot_dimension_numbers<[1], [0], [0], [1], [0, 0, 1, 1], [], []>} : vector<8x24xbf16>, vector<24x256xbf16>, vector<8x256xf32> -> vector<8x256xf32>
    %249 = arith.addf %239, %248 : vector<8x256xf32>
    %c16_i32_195 = arith.constant 16 : i32
    %250 = tpu.dynamic_rotate %238 by %c16_i32_195 dim 1 : vector<24x256xf32>, i32 -> vector<24x256xf32>
    %c1_196 = arith.constant 1 : index
    %c0_197 = arith.constant 0 : index
    %c0_198 = arith.constant 0 : index
    %251 = vector.load %arg2[%c1_196, %c0_197, %c0_198] : memref<9x1x256xf32, #tpu.memory_space<vmem>>, vector<1x1x256xf32>
    %252 = vector.shape_cast %251 : vector<1x1x256xf32> to vector<1x256xf32>
    %253 = vector.broadcast %252 : vector<1x256xf32> to vector<24x256xf32>
    %254 = arith.mulf %250, %253 : vector<24x256xf32>
    %c2_199 = arith.constant 2 : index
    %c1_200 = arith.constant 1 : index
    %c0_201 = arith.constant 0 : index
    %c0_202 = arith.constant 0 : index
    %255 = vector.load %arg5[%c2_199, %c1_200, %c0_201, %c0_202] : memref<3x9x8x32xbf16, #tpu.memory_space<vmem>>, vector<1x1x8x24xbf16>
    %256 = vector.shape_cast %255 : vector<1x1x8x24xbf16> to vector<8x24xbf16>
    %257 = arith.truncf %254 : vector<24x256xf32> to vector<24x256xbf16>
    %cst_203 = arith.constant dense<0.000000e+00> : vector<8x256xf32>
    %258 = tpu.matmul %256, %257, %cst_203 {dimension_numbers = #tpu.dot_dimension_numbers<[1], [0], [0], [1], [0, 0, 1, 1], [], []>} : vector<8x24xbf16>, vector<24x256xbf16>, vector<8x256xf32> -> vector<8x256xf32>
    %259 = arith.addf %249, %258 : vector<8x256xf32>
    %c15_i32_204 = arith.constant 15 : i32
    %260 = tpu.dynamic_rotate %238 by %c15_i32_204 dim 1 : vector<24x256xf32>, i32 -> vector<24x256xf32>
    %c2_205 = arith.constant 2 : index
    %c0_206 = arith.constant 0 : index
    %c0_207 = arith.constant 0 : index
    %261 = vector.load %arg2[%c2_205, %c0_206, %c0_207] : memref<9x1x256xf32, #tpu.memory_space<vmem>>, vector<1x1x256xf32>
    %262 = vector.shape_cast %261 : vector<1x1x256xf32> to vector<1x256xf32>
    %263 = vector.broadcast %262 : vector<1x256xf32> to vector<24x256xf32>
    %264 = arith.mulf %260, %263 : vector<24x256xf32>
    %c2_208 = arith.constant 2 : index
    %c2_209 = arith.constant 2 : index
    %c0_210 = arith.constant 0 : index
    %c0_211 = arith.constant 0 : index
    %265 = vector.load %arg5[%c2_208, %c2_209, %c0_210, %c0_211] : memref<3x9x8x32xbf16, #tpu.memory_space<vmem>>, vector<1x1x8x24xbf16>
    %266 = vector.shape_cast %265 : vector<1x1x8x24xbf16> to vector<8x24xbf16>
    %267 = arith.truncf %264 : vector<24x256xf32> to vector<24x256xbf16>
    %cst_212 = arith.constant dense<0.000000e+00> : vector<8x256xf32>
    %268 = tpu.matmul %266, %267, %cst_212 {dimension_numbers = #tpu.dot_dimension_numbers<[1], [0], [0], [1], [0, 0, 1, 1], [], []>} : vector<8x24xbf16>, vector<24x256xbf16>, vector<8x256xf32> -> vector<8x256xf32>
    %269 = arith.addf %259, %268 : vector<8x256xf32>
    %c1_i32_213 = arith.constant 1 : i32
    %270 = tpu.dynamic_rotate %238 by %c1_i32_213 dim 1 : vector<24x256xf32>, i32 -> vector<24x256xf32>
    %c3_214 = arith.constant 3 : index
    %c0_215 = arith.constant 0 : index
    %c0_216 = arith.constant 0 : index
    %271 = vector.load %arg2[%c3_214, %c0_215, %c0_216] : memref<9x1x256xf32, #tpu.memory_space<vmem>>, vector<1x1x256xf32>
    %272 = vector.shape_cast %271 : vector<1x1x256xf32> to vector<1x256xf32>
    %273 = vector.broadcast %272 : vector<1x256xf32> to vector<24x256xf32>
    %274 = arith.mulf %270, %273 : vector<24x256xf32>
    %c2_217 = arith.constant 2 : index
    %c3_218 = arith.constant 3 : index
    %c0_219 = arith.constant 0 : index
    %c0_220 = arith.constant 0 : index
    %275 = vector.load %arg5[%c2_217, %c3_218, %c0_219, %c0_220] : memref<3x9x8x32xbf16, #tpu.memory_space<vmem>>, vector<1x1x8x24xbf16>
    %276 = vector.shape_cast %275 : vector<1x1x8x24xbf16> to vector<8x24xbf16>
    %277 = arith.truncf %274 : vector<24x256xf32> to vector<24x256xbf16>
    %cst_221 = arith.constant dense<0.000000e+00> : vector<8x256xf32>
    %278 = tpu.matmul %276, %277, %cst_221 {dimension_numbers = #tpu.dot_dimension_numbers<[1], [0], [0], [1], [0, 0, 1, 1], [], []>} : vector<8x24xbf16>, vector<24x256xbf16>, vector<8x256xf32> -> vector<8x256xf32>
    %279 = arith.addf %269, %278 : vector<8x256xf32>
    %c2_222 = arith.constant 2 : index
    %c4_223 = arith.constant 4 : index
    %c0_224 = arith.constant 0 : index
    %c0_225 = arith.constant 0 : index
    %280 = vector.load %arg5[%c2_222, %c4_223, %c0_224, %c0_225] : memref<3x9x8x32xbf16, #tpu.memory_space<vmem>>, vector<1x1x8x24xbf16>
    %281 = vector.shape_cast %280 : vector<1x1x8x24xbf16> to vector<8x24xbf16>
    %282 = arith.truncf %238 : vector<24x256xf32> to vector<24x256xbf16>
    %cst_226 = arith.constant dense<0.000000e+00> : vector<8x256xf32>
    %283 = tpu.matmul %281, %282, %cst_226 {dimension_numbers = #tpu.dot_dimension_numbers<[1], [0], [0], [1], [0, 0, 1, 1], [], []>} : vector<8x24xbf16>, vector<24x256xbf16>, vector<8x256xf32> -> vector<8x256xf32>
    %284 = arith.addf %279, %283 : vector<8x256xf32>
    %c255_i32_227 = arith.constant 255 : i32
    %285 = tpu.dynamic_rotate %238 by %c255_i32_227 dim 1 : vector<24x256xf32>, i32 -> vector<24x256xf32>
    %c5_228 = arith.constant 5 : index
    %c0_229 = arith.constant 0 : index
    %c0_230 = arith.constant 0 : index
    %286 = vector.load %arg2[%c5_228, %c0_229, %c0_230] : memref<9x1x256xf32, #tpu.memory_space<vmem>>, vector<1x1x256xf32>
    %287 = vector.shape_cast %286 : vector<1x1x256xf32> to vector<1x256xf32>
    %288 = vector.broadcast %287 : vector<1x256xf32> to vector<24x256xf32>
    %289 = arith.mulf %285, %288 : vector<24x256xf32>
    %c2_231 = arith.constant 2 : index
    %c5_232 = arith.constant 5 : index
    %c0_233 = arith.constant 0 : index
    %c0_234 = arith.constant 0 : index
    %290 = vector.load %arg5[%c2_231, %c5_232, %c0_233, %c0_234] : memref<3x9x8x32xbf16, #tpu.memory_space<vmem>>, vector<1x1x8x24xbf16>
    %291 = vector.shape_cast %290 : vector<1x1x8x24xbf16> to vector<8x24xbf16>
    %292 = arith.truncf %289 : vector<24x256xf32> to vector<24x256xbf16>
    %cst_235 = arith.constant dense<0.000000e+00> : vector<8x256xf32>
    %293 = tpu.matmul %291, %292, %cst_235 {dimension_numbers = #tpu.dot_dimension_numbers<[1], [0], [0], [1], [0, 0, 1, 1], [], []>} : vector<8x24xbf16>, vector<24x256xbf16>, vector<8x256xf32> -> vector<8x256xf32>
    %294 = arith.addf %284, %293 : vector<8x256xf32>
    %c241_i32_236 = arith.constant 241 : i32
    %295 = tpu.dynamic_rotate %238 by %c241_i32_236 dim 1 : vector<24x256xf32>, i32 -> vector<24x256xf32>
    %c6_237 = arith.constant 6 : index
    %c0_238 = arith.constant 0 : index
    %c0_239 = arith.constant 0 : index
    %296 = vector.load %arg2[%c6_237, %c0_238, %c0_239] : memref<9x1x256xf32, #tpu.memory_space<vmem>>, vector<1x1x256xf32>
    %297 = vector.shape_cast %296 : vector<1x1x256xf32> to vector<1x256xf32>
    %298 = vector.broadcast %297 : vector<1x256xf32> to vector<24x256xf32>
    %299 = arith.mulf %295, %298 : vector<24x256xf32>
    %c2_240 = arith.constant 2 : index
    %c6_241 = arith.constant 6 : index
    %c0_242 = arith.constant 0 : index
    %c0_243 = arith.constant 0 : index
    %300 = vector.load %arg5[%c2_240, %c6_241, %c0_242, %c0_243] : memref<3x9x8x32xbf16, #tpu.memory_space<vmem>>, vector<1x1x8x24xbf16>
    %301 = vector.shape_cast %300 : vector<1x1x8x24xbf16> to vector<8x24xbf16>
    %302 = arith.truncf %299 : vector<24x256xf32> to vector<24x256xbf16>
    %cst_244 = arith.constant dense<0.000000e+00> : vector<8x256xf32>
    %303 = tpu.matmul %301, %302, %cst_244 {dimension_numbers = #tpu.dot_dimension_numbers<[1], [0], [0], [1], [0, 0, 1, 1], [], []>} : vector<8x24xbf16>, vector<24x256xbf16>, vector<8x256xf32> -> vector<8x256xf32>
    %304 = arith.addf %294, %303 : vector<8x256xf32>
    %c240_i32_245 = arith.constant 240 : i32
    %305 = tpu.dynamic_rotate %238 by %c240_i32_245 dim 1 : vector<24x256xf32>, i32 -> vector<24x256xf32>
    %c7_246 = arith.constant 7 : index
    %c0_247 = arith.constant 0 : index
    %c0_248 = arith.constant 0 : index
    %306 = vector.load %arg2[%c7_246, %c0_247, %c0_248] : memref<9x1x256xf32, #tpu.memory_space<vmem>>, vector<1x1x256xf32>
    %307 = vector.shape_cast %306 : vector<1x1x256xf32> to vector<1x256xf32>
    %308 = vector.broadcast %307 : vector<1x256xf32> to vector<24x256xf32>
    %309 = arith.mulf %305, %308 : vector<24x256xf32>
    %c2_249 = arith.constant 2 : index
    %c7_250 = arith.constant 7 : index
    %c0_251 = arith.constant 0 : index
    %c0_252 = arith.constant 0 : index
    %310 = vector.load %arg5[%c2_249, %c7_250, %c0_251, %c0_252] : memref<3x9x8x32xbf16, #tpu.memory_space<vmem>>, vector<1x1x8x24xbf16>
    %311 = vector.shape_cast %310 : vector<1x1x8x24xbf16> to vector<8x24xbf16>
    %312 = arith.truncf %309 : vector<24x256xf32> to vector<24x256xbf16>
    %cst_253 = arith.constant dense<0.000000e+00> : vector<8x256xf32>
    %313 = tpu.matmul %311, %312, %cst_253 {dimension_numbers = #tpu.dot_dimension_numbers<[1], [0], [0], [1], [0, 0, 1, 1], [], []>} : vector<8x24xbf16>, vector<24x256xbf16>, vector<8x256xf32> -> vector<8x256xf32>
    %314 = arith.addf %304, %313 : vector<8x256xf32>
    %c239_i32_254 = arith.constant 239 : i32
    %315 = tpu.dynamic_rotate %238 by %c239_i32_254 dim 1 : vector<24x256xf32>, i32 -> vector<24x256xf32>
    %c8_255 = arith.constant 8 : index
    %c0_256 = arith.constant 0 : index
    %c0_257 = arith.constant 0 : index
    %316 = vector.load %arg2[%c8_255, %c0_256, %c0_257] : memref<9x1x256xf32, #tpu.memory_space<vmem>>, vector<1x1x256xf32>
    %317 = vector.shape_cast %316 : vector<1x1x256xf32> to vector<1x256xf32>
    %318 = vector.broadcast %317 : vector<1x256xf32> to vector<24x256xf32>
    %319 = arith.mulf %315, %318 : vector<24x256xf32>
    %c2_258 = arith.constant 2 : index
    %c8_259 = arith.constant 8 : index
    %c0_260 = arith.constant 0 : index
    %c0_261 = arith.constant 0 : index
    %320 = vector.load %arg5[%c2_258, %c8_259, %c0_260, %c0_261] : memref<3x9x8x32xbf16, #tpu.memory_space<vmem>>, vector<1x1x8x24xbf16>
    %321 = vector.shape_cast %320 : vector<1x1x8x24xbf16> to vector<8x24xbf16>
    %322 = arith.truncf %319 : vector<24x256xf32> to vector<24x256xbf16>
    %cst_262 = arith.constant dense<0.000000e+00> : vector<8x256xf32>
    %323 = tpu.matmul %321, %322, %cst_262 {dimension_numbers = #tpu.dot_dimension_numbers<[1], [0], [0], [1], [0, 0, 1, 1], [], []>} : vector<8x24xbf16>, vector<24x256xbf16>, vector<8x256xf32> -> vector<8x256xf32>
    %324 = arith.addf %314, %323 : vector<8x256xf32>
    %c2_263 = arith.constant 2 : index
    %c0_264 = arith.constant 0 : index
    %c0_265 = arith.constant 0 : index
    %325 = vector.load %arg6[%c2_263, %c0_264, %c0_265] : memref<3x8x1xf32, #tpu.memory_space<vmem>>, vector<1x8x1xf32>
    %326 = vector.shape_cast %325 : vector<1x8x1xf32> to vector<8x1xf32>
    %327 = vector.broadcast %326 : vector<8x1xf32> to vector<8x256xf32>
    %328 = arith.addf %324, %327 : vector<8x256xf32>
    %c0_266 = arith.constant 0 : index
    %c24 = arith.constant 24 : index
    %c0_267 = arith.constant 0 : index
    %329 = vector.load %arg7[%c0_266, %c24, %c0_267] : memref<1x32x256xf32, #tpu.memory_space<vmem>>, vector<1x8x256xf32>
    %330 = vector.shape_cast %329 : vector<1x8x256xf32> to vector<8x256xf32>
    %331 = vector.shape_cast %328 : vector<8x256xf32> to vector<1x8x256xf32>
    tpu.vector_store %arg7[%c0_266, %c24, %c0_267], %331 {strides = array<i32>} : memref<1x32x256xf32, #tpu.memory_space<vmem>>, vector<1x8x256xf32>,
    return
  }
  func.func @transform_0(%arg0: i32) -> (i32, i32, i32) {
    %c0_i32 = arith.constant 0 : i32
    %c0_i32_0 = arith.constant 0 : i32
    %c0_i32_1 = arith.constant 0 : i32
    return %arg0, %c0_i32, %c0_i32_0 : i32, i32, i32
  }
  func.func @transform_1(%arg0: i32) -> (i32, i32, i32) {
    %c0_i32 = arith.constant 0 : i32
    %c0_i32_0 = arith.constant 0 : i32
    %c0_i32_1 = arith.constant 0 : i32
    %c0_i32_2 = arith.constant 0 : i32
    return %c0_i32, %c0_i32_0, %c0_i32_1 : i32, i32, i32
  }
  func.func @transform_2(%arg0: i32) -> (i32, i32, i32) {
    %c0_i32 = arith.constant 0 : i32
    %c0_i32_0 = arith.constant 0 : i32
    %c0_i32_1 = arith.constant 0 : i32
    %c0_i32_2 = arith.constant 0 : i32
    return %c0_i32, %c0_i32_0, %c0_i32_1 : i32, i32, i32
  }
  func.func @transform_3(%arg0: i32) -> (i32, i32, i32) {
    %c0_i32 = arith.constant 0 : i32
    %c0_i32_0 = arith.constant 0 : i32
    %c0_i32_1 = arith.constant 0 : i32
    %c0_i32_2 = arith.constant 0 : i32
    return %c0_i32, %c0_i32_0, %c0_i32_1 : i32, i32, i32
  }
  func.func @transform_4(%arg0: i32) -> (i32, i32, i32, i32) {
    %c0_i32 = arith.constant 0 : i32
    %c0_i32_0 = arith.constant 0 : i32
    %c0_i32_1 = arith.constant 0 : i32
    %c0_i32_2 = arith.constant 0 : i32
    %c0_i32_3 = arith.constant 0 : i32
    return %c0_i32, %c0_i32_0, %c0_i32_1, %c0_i32_2 : i32, i32, i32, i32
  }
  func.func @transform_5(%arg0: i32) -> (i32, i32, i32) {
    %c0_i32 = arith.constant 0 : i32
    %c0_i32_0 = arith.constant 0 : i32
    %c0_i32_1 = arith.constant 0 : i32
    %c0_i32_2 = arith.constant 0 : i32
    return %c0_i32, %c0_i32_0, %c0_i32_1 : i32, i32, i32
  }
  func.func @transform_6(%arg0: i32) -> (i32, i32, i32) {
    %c0_i32 = arith.constant 0 : i32
    %c0_i32_0 = arith.constant 0 : i32
    %c0_i32_1 = arith.constant 0 : i32
    return %arg0, %c0_i32, %c0_i32_0 : i32, i32, i32
  }
}

</mosaic_0001>

<llo_original>
// kernel: dense_block_forward.1
$region0: #{dense_block_forward.1}
  #allocation0 [shape = 'u32[]', space=smem, size = 0x4, offset = 0x4, fixed_abs, tag = 'smem constant byte address 0x4 - core index']
  #allocation1 [shape = 'u32[144,128]{1,0:T(1,128)}', space=vmem, size = 0x12000, scoped, tag = 'internal scratch']
  %s0 = inlined_call_operand.vmem [shape: f32[2,8,256], index: 0, kind: input, shape index: {}]
  %s1 = inlined_call_operand.vmem [shape: f32[9,1,256], index: 1, kind: input, shape index: {}]
  %s2 = inlined_call_operand.vmem [shape: f32[3,32,1], index: 2, kind: input, shape index: {}]
  %s3 = inlined_call_operand.vmem [shape: f32[3,32,1], index: 3, kind: input, shape index: {}]
  %s4 = inlined_call_operand.vmem [shape: bf16[3,9,8,32], index: 4, kind: input, shape index: {}]
  %s5 = inlined_call_operand.vmem [shape: f32[3,8,1], index: 5, kind: input, shape index: {}]
  %s6 = inlined_call_operand.vmem [shape: f32[2,32,256], index: 6, kind: output, shape index: {}]
  %s7 = sld [smem:[#allocation0]]
  $region57: #{dense_block_forward.1} parent=0
    _
  %s9 = ssub.s32 1, %s7
  %s10 = scalar_select 0, %s9, %s7
  loop: start=0, step=1, limit=4
  $region2: #{dense_block_forward.1} parent=0 // loop_pre_header
    _
  $region3: #{dense_block_forward.1} parent=0 // loop_header
    %s12 = sphi 0, %s16
    %p13 = scmp.ge.s32.totalorder %s12, 4
    %s22 = sphi 0, %s24
    %s25 = sphi 0, %s22
    %s26 = sphi 0, %s25
    %s42 = sphi 0, %s26
    %s46 = sphi 0, %s46
    %s48 = sphi 0, %s46
    %s49 = sphi 0, %s48
    %s63 = sphi 0, %s49
    %s67 = sphi 0, %s67
    %s69 = sphi 0, %s67
    %s70 = sphi 0, %s69
    %s84 = sphi 0, %s70
    %s88 = sphi 0, %s88
    %s90 = sphi 0, %s88
    %s91 = sphi 0, %s90
    %s105 = sphi 0, %s91
    %s109 = sphi 0, %s109
    %s111 = sphi 0, %s109
    %s112 = sphi 0, %s111
    %s126 = sphi 0, %s112
    %s130 = sphi 0, %s130
    %s132 = sphi 0, %s130
    %s133 = sphi 0, %s132
    %s147 = sphi 0, %s133
    %s153 = sphi 0, %s155
    %s156 = sphi 0, %s153
    %s157 = sphi 0, %s156
    %s173 = sphi 0, %s157
  $region4: #{dense_block_forward.1} parent=0 // loop_header_branch
    %15 = sbr.rel (%p13) target = $region8
  $region5: #{dense_block_forward.1} parent=0 // loop_body
    %s17 = ssub.s32 %s12, 1
    %s18 = ssub.s32 %s12, 2
    %s19 = sadd.s32 %s12, 1
    %s20 = ssub.s32 %s12, %s19
    %p21 = scmp.eq.s32.totalorder %s20, 0
    %s23 = sadd.s32 %s22, 1
    %s24 = scalar_select %p21, %s22, %s23
    %p27 = pneg %p21
    %p28 = scmp.eq.s32.totalorder %s12, 1
    %p29 = por %p27, %p28
    %p30 = scmp.ne.s32.totalorder %s22, %s25
    %p31 = scmp.eq.s32.totalorder %s12, 0
    %p32 = por %p30, %p31
    %p33 = scmp.ne.s32.totalorder %s22, %s25
    %p34 = scmp.eq.s32.totalorder %s17, 1
    %p35 = por %p33, %p34
    %p36 = scmp.ne.s32.totalorder %s25, %s26
    %p37 = scmp.eq.s32.totalorder %s17, 0
    %p38 = por %p36, %p37
    %p39 = scmp.ne.s32.totalorder %s25, %s26
    %p40 = scmp.eq.s32.totalorder %s18, 1
    %p41 = por %p39, %p40
    %p43 = scmp.ne.s32.totalorder %s26, %s42
    %p44 = scmp.eq.s32.totalorder %s18, 0
    %p45 = por %p43, %p44
    %s47 = sadd.s32 %s46, 1
    %p50 = scmp.eq.s32.totalorder %s12, 1
    %p51 = scmp.ne.s32.totalorder %s46, %s48
    %p52 = scmp.eq.s32.totalorder %s12, 0
    %p53 = por %p51, %p52
    %p54 = scmp.ne.s32.totalorder %s46, %s48
    %p55 = scmp.eq.s32.totalorder %s17, 1
    %p56 = por %p54, %p55
    %p57 = scmp.ne.s32.totalorder %s48, %s49
    %p58 = scmp.eq.s32.totalorder %s17, 0
    %p59 = por %p57, %p58
    %p60 = scmp.ne.s32.totalorder %s48, %s49
    %p61 = scmp.eq.s32.totalorder %s18, 1
    %p62 = por %p60, %p61
    %p64 = scmp.ne.s32.totalorder %s49, %s63
    %p65 = scmp.eq.s32.totalorder %s18, 0
    %p66 = por %p64, %p65
    %s68 = sadd.s32 %s67, 1
    %p71 = scmp.eq.s32.totalorder %s12, 1
    %p72 = scmp.ne.s32.totalorder %s67, %s69
    %p73 = scmp.eq.s32.totalorder %s12, 0
    %p74 = por %p72, %p73
    %p75 = scmp.ne.s32.totalorder %s67, %s69
    %p76 = scmp.eq.s32.totalorder %s17, 1
    %p77 = por %p75, %p76
    %p78 = scmp.ne.s32.totalorder %s69, %s70
    %p79 = scmp.eq.s32.totalorder %s17, 0
    %p80 = por %p78, %p79
    %p81 = scmp.ne.s32.totalorder %s69, %s70
    %p82 = scmp.eq.s32.totalorder %s18, 1
    %p83 = por %p81, %p82
    %p85 = scmp.ne.s32.totalorder %s70, %s84
    %p86 = scmp.eq.s32.totalorder %s18, 0
    %p87 = por %p85, %p86
    %s89 = sadd.s32 %s88, 1
    %p92 = scmp.eq.s32.totalorder %s12, 1
    %p93 = scmp.ne.s32.totalorder %s88, %s90
    %p94 = scmp.eq.s32.totalorder %s12, 0
    %p95 = por %p93, %p94
    %p96 = scmp.ne.s32.totalorder %s88, %s90
    %p97 = scmp.eq.s32.totalorder %s17, 1
    %p98 = por %p96, %p97
    %p99 = scmp.ne.s32.totalorder %s90, %s91
    %p100 = scmp.eq.s32.totalorder %s17, 0
    %p101 = por %p99, %p100
    %p102 = scmp.ne.s32.totalorder %s90, %s91
    %p103 = scmp.eq.s32.totalorder %s18, 1
    %p104 = por %p102, %p103
    %p106 = scmp.ne.s32.totalorder %s91, %s105
    %p107 = scmp.eq.s32.totalorder %s18, 0
    %p108 = por %p106, %p107
    %s110 = sadd.s32 %s109, 1
    %p113 = scmp.eq.s32.totalorder %s12, 1
    %p114 = scmp.ne.s32.totalorder %s109, %s111
    %p115 = scmp.eq.s32.totalorder %s12, 0
    %p116 = por %p114, %p115
    %p117 = scmp.ne.s32.totalorder %s109, %s111
    %p118 = scmp.eq.s32.totalorder %s17, 1
    %p119 = por %p117, %p118
    %p120 = scmp.ne.s32.totalorder %s111, %s112
    %p121 = scmp.eq.s32.totalorder %s17, 0
    %p122 = por %p120, %p121
    %p123 = scmp.ne.s32.totalorder %s111, %s112
    %p124 = scmp.eq.s32.totalorder %s18, 1
    %p125 = por %p123, %p124
    %p127 = scmp.ne.s32.totalorder %s112, %s126
    %p128 = scmp.eq.s32.totalorder %s18, 0
    %p129 = por %p127, %p128
    %s131 = sadd.s32 %s130, 1
    %p134 = scmp.eq.s32.totalorder %s12, 1
    %p135 = scmp.ne.s32.totalorder %s130, %s132
    %p136 = scmp.eq.s32.totalorder %s12, 0
    %p137 = por %p135, %p136
    %p138 = scmp.ne.s32.totalorder %s130, %s132
    %p139 = scmp.eq.s32.totalorder %s17, 1
    %p140 = por %p138, %p139
    %p141 = scmp.ne.s32.totalorder %s132, %s133
    %p142 = scmp.eq.s32.totalorder %s17, 0
    %p143 = por %p141, %p142
    %p144 = scmp.ne.s32.totalorder %s132, %s133
    %p145 = scmp.eq.s32.totalorder %s18, 1
    %p146 = por %p144, %p145
    %p148 = scmp.ne.s32.totalorder %s133, %s147
    %p149 = scmp.eq.s32.totalorder %s18, 0
    %p150 = por %p148, %p149
    %s151 = ssub.s32 %s12, %s19
    %p152 = scmp.eq.s32.totalorder %s151, 0
    %s154 = sadd.s32 %s153, 1
    %s155 = scalar_select %p152, %s153, %s154
    %p158 = pneg %p152
    %p159 = scmp.eq.s32.totalorder %s12, 1
    %p160 = por %p158, %p159
    %p161 = scmp.ne.s32.totalorder %s153, %s156
    %p162 = scmp.eq.s32.totalorder %s12, 0
    %p163 = por %p161, %p162
    %p164 = scmp.ne.s32.totalorder %s153, %s156
    %p165 = scmp.eq.s32.totalorder %s17, 1
    %p166 = por %p164, %p165
    %p167 = scmp.ne.s32.totalorder %s156, %s157
    %p168 = scmp.eq.s32.totalorder %s17, 0
    %p169 = por %p167, %p168
    %p170 = scmp.ne.s32.totalorder %s156, %s157
    %p171 = scmp.eq.s32.totalorder %s18, 1
    %p172 = por %p170, %p171
    %p174 = scmp.ne.s32.totalorder %s157, %s173
    %p175 = scmp.eq.s32.totalorder %s18, 0
    %p176 = por %p174, %p175
    %p177 = scmp.le.s32.totalorder 1, %s12
    %p178 = scmp.lt.s32.totalorder %s12, 3
    %p179 = pnand %p177, %p178
    %p180 = pneg %p179
    // Predicated region
    $region9: #{dense_block_forward.1} parent=5 // pred_check
      _
    $region10: #{dense_block_forward.1} parent=5 // pred_check_branch
      %182 = sbr.rel (%p179) target = $region12
    $region11: #{dense_block_forward.1} parent=5 // pred_region
      %s183 = ssub.s32 %s12, 1
      // Predicated region
      $region13: #{dense_block_forward.1} parent=11 // pred_check
        %p184 = pneg %p59
      $region14: #{dense_block_forward.1} parent=11 // pred_check_branch
        %186 = sbr.rel (%p184) target = $region16
      $region15: #{dense_block_forward.1} parent=11 // pred_region
        _
      $region16: #{dense_block_forward.1} parent=11 // pred_fallthru
        _
      // Predicated region
      $region17: #{dense_block_forward.1} parent=11 // pred_check
        %p187 = pneg %p80
      $region18: #{dense_block_forward.1} parent=11 // pred_check_branch
        %189 = sbr.rel (%p187) target = $region20
      $region19: #{dense_block_forward.1} parent=11 // pred_region
        _
      $region20: #{dense_block_forward.1} parent=11 // pred_fallthru
        _
      // Predicated region
      $region21: #{dense_block_forward.1} parent=11 // pred_check
        %p190 = pneg %p101
      $region22: #{dense_block_forward.1} parent=11 // pred_check_branch
        %192 = sbr.rel (%p190) target = $region24
      $region23: #{dense_block_forward.1} parent=11 // pred_region
        _
      $region24: #{dense_block_forward.1} parent=11 // pred_fallthru
        _
      // Predicated region
      $region25: #{dense_block_forward.1} parent=11 // pred_check
        %p193 = pneg %p122
      $region26: #{dense_block_forward.1} parent=11 // pred_check_branch
        %195 = sbr.rel (%p193) target = $region28
      $region27: #{dense_block_forward.1} parent=11 // pred_region
        _
      $region28: #{dense_block_forward.1} parent=11 // pred_fallthru
        _
      // Predicated region
      $region29: #{dense_block_forward.1} parent=11 // pred_check
        %p196 = pneg %p143
      $region30: #{dense_block_forward.1} parent=11 // pred_check_branch
        %198 = sbr.rel (%p196) target = $region32
      $region31: #{dense_block_forward.1} parent=11 // pred_region
        _
      $region32: #{dense_block_forward.1} parent=11 // pred_fallthru
        _
    $region12: #{dense_block_forward.1} parent=5 // pred_fallthru
      _
    %p199 = scmp.lt.s32.totalorder %s12, 2
    // Predicated region
    $region33: #{dense_block_forward.1} parent=5 // pred_check
      %p200 = pneg %p199
    $region34: #{dense_block_forward.1} parent=5 // pred_check_branch
      %202 = sbr.rel (%p200) target = $region36
    $region35: #{dense_block_forward.1} parent=5 // pred_region
      // Predicated region
      $region37: #{dense_block_forward.1} parent=35 // pred_check
        %p203 = pneg %p32
      $region38: #{dense_block_forward.1} parent=35 // pred_check_branch
        %205 = sbr.rel (%p203) target = $region40
      $region39: #{dense_block_forward.1} parent=35 // pred_region
        %p206 = scmp.lt.s32.totalorder %s12, 1
        %s207 = scalar_select %p206, %s12, 1
        %s208 = smul.addr %s207, 2
        %s209 = smul.addr %s208, 8
        %s210 = scalar_lea.vmem %s0, %s209
      $region40: #{dense_block_forward.1} parent=35 // pred_fallthru
        _
    $region36: #{dense_block_forward.1} parent=5 // pred_fallthru
      _
    %p211 = scmp.le.s32.totalorder 1, %s12
    %p212 = scmp.lt.s32.totalorder %s12, 3
    %p213 = pnand %p211, %p212
    %p214 = pneg %p213
    // Predicated region
    $region41: #{dense_block_forward.1} parent=5 // pred_check
      _
    $region42: #{dense_block_forward.1} parent=5 // pred_check_branch
      %216 = sbr.rel (%p213) target = $region44
    $region43: #{dense_block_forward.1} parent=5 // pred_region
      %s217 = ssub.s32 %s12, 1
      %p218 = scmp.lt.s32.totalorder %s17, 1
      %s219 = scalar_select %p218, %s17, 1
      %s220 = smul.addr %s219, 2
      %s221 = smul.addr %s220, 8
      %s222 = scalar_lea.vmem %s0, %s221
      %p223 = pneg %p38
      %p224 = pneg %p35
      %p225 = pneg %p59
      %p226 = pneg %p56
      %p227 = pneg %p80
      %p228 = pneg %p77
      %p229 = pneg %p101
      %p230 = pneg %p98
      %p231 = pneg %p122
      %p232 = pneg %p119
      %p233 = pneg %p143
      %p234 = pneg %p140
      %p235 = pneg %p169
      %p236 = pneg %p166
      %p237 = scmp.lt.s32.totalorder %s17, 1
      %s238 = scalar_select %p237, %s17, 1
      %s239 = smul.addr %s238, 8
      %s240 = smul.addr %s239, 8
      %s241 = scalar_lea.vmem %s6, %s240
      %p242 = scmp.lt.s32.totalorder %s17, 1
      %s243 = scalar_select %p242, %s17, 1
      %s244 = smul.addr %s243, 2
      %s245 = smul.addr %s244, 8
      %s246 = scalar_lea.vmem %s0, %s245
      %p247 = scmp.lt.s32.totalorder %s17, 1
      %s248 = scalar_select %p247, %s17, 1
      %s249 = smul.addr %s248, 8
      %s250 = smul.addr %s249, 8
      %s251 = scalar_lea.vmem %s6, %s250
      %v253 = vld [vmem:[%s246] sm:$0xff]
      %v254 = vld [vmem:[%s246 + $0x8] sm:$0xff]
      %255 = vst [vmem:[%s251] sm:$0xff] %v253
      %256 = vst [vmem:[%s251 + $0x8] sm:$0xff] %v254
      %v257 = vld [vmem:[%s251] sm:$0xff]
      %v258 = vld [vmem:[%s251 + $0x8] sm:$0xff]
      %v259 = vld [vmem:[%s2] sm:$0xff]
      %261 = vset.pattern.permute.xlu0 0
      %262 = vperm.xlu0 %261, %v259
      %v263 = vpop.permute.xlu0 %262
      %v265 = vmul.f32 %v257, %v263
      %v266 = vmul.f32 %v258, %v263
      %v267 = vld [vmem:[%s3] sm:$0xff]
      %269 = vset.pattern.permute.xlu0 0
      %270 = vperm.xlu0 %269, %v267
      %v271 = vpop.permute.xlu0 %270
      %v273 = vadd.f32 %v265, %v271
      %v274 = vadd.f32 %v266, %v271
      %v275 = vxor.u32 %v273, 2147483648
      %v276 = vxor.u32 %v274, 2147483648
      %v277 = vmul.f32 %v275, 1.442695
      %v278 = vpow.pop %v277
      %v279 = vmul.f32 %v276, 1.442695
      %v280 = vpow.pop %v279
      %v281 = vadd.f32 %v278, 1.0
      %v282 = vadd.f32 %v280, 1.0
      %v283 = vrcp.pop %v281
      %v284 = vmul.f32 1.0, %v283
      %v285 = vrcp.pop %v282
      %v286 = vmul.f32 1.0, %v285
      %v287 = vmul.f32 %v273, %v284
      %v288 = vmul.f32 %v274, %v286
      %289 = vrot.lane.b32.xlu0 %v287, 17
      %v290 = vpop.permute.xlu0 %289
      %291 = vrot.lane.b32.xlu0 %v288, 17
      %v292 = vpop.permute.xlu0 %291
      %v293 = vlaneseq
      %v294 = vand.u32 %v293, 127
      %vm295 = vcmp.lt.s32.totalorder %v294, 17
      %v296 = vsel %vm295, %v290, %v292
      %v297 = vsel %vm295, %v292, %v290
      %v298 = vld [vmem:[%s1] sm:$0x3]
      %v300 = vlaneseq
      %v301 = vshrl.u32 %v300, 7
      %v302 = vsub.s32 0, %v301
      %v303 = vrot.slane %v298, %v302
      %v304 = vlaneseq
      %v305 = vshrl.u32 %v304, 7
      %v306 = vsub.s32 1, %v305
      %v307 = vrot.slane %v298, %v306
      %v310 = vmul.f32 %v297, %v303
      %v311 = vmul.f32 %v296, %v307
      %v312 = vld [vmem:[%s4] sm:$0xf]
      %v313 = vpack.c.bf16 %v310, %v310
      %v314 = vpack.c.bf16 %v311, %v311
      %315 = vrot.lane.b32.xlu0 %v287, 16
      %v316 = vpop.permute.xlu0 %315
      %317 = vrot.lane.b32.xlu0 %v288, 16
      %v318 = vpop.permute.xlu0 %317
      %vm319 = vcmp.lt.s32.totalorder %v294, 16
      %v320 = vsel %vm319, %v316, %v318
      %v321 = vsel %vm319, %v318, %v316
      %s322 = scalar_lea.vmem %s1, 2
      %v323 = vld [vmem:[%s322] sm:$0x3]
      %v325 = vlaneseq
      %v326 = vshrl.u32 %v325, 7
      %v327 = vsub.s32 0, %v326
      %v328 = vrot.slane %v323, %v327
      %v329 = vlaneseq
      %v330 = vshrl.u32 %v329, 7
      %v331 = vsub.s32 1, %v330
      %v332 = vrot.slane %v323, %v331
      %v335 = vmul.f32 %v321, %v328
      %v336 = vmul.f32 %v320, %v332
      %s337 = scalar_lea.vmem %s4, 4
      %v338 = vld [vmem:[%s337] sm:$0xf]
      %v339 = vpack.c.bf16 %v335, %v335
      %v340 = vpack.c.bf16 %v336, %v336
      %vm341 = vcmask 64512
      %v343 = vsel %vm341, %v338, 0
      %vm345 = vcmask 1043456
      %v347 = vsel %vm345, %v339, 0
      %v350 = vsel %vm345, %v340, 0
      %352 = vmatprep.subr.bf16.mxu0 %v350
      %353 = vmatpush1.bf16.msra.mxu0 %v347
      %354 = vmatprep.subr.bf16.mxu0 0
      %355 = vmatpush1.bf16.msra.mxu0 0
      %356 = vmatprep.subr.bf16.mxu0 0
      %357 = vmatpush1.bf16.msra.mxu0 0
      %358 = vmatprep.subr.bf16.mxu0 0
      %359 = vmatpush1.bf16.msra.mxu0 0
      %360 = vmatprep.subr.bf16.mxu0 0
      %361 = vmatpush1.bf16.msra.mxu0 0
      %362 = vmatprep.subr.bf16.mxu0 0
      %363 = vmatpush1.bf16.msra.mxu0 0
      %364 = vmatprep.subr.bf16.mxu0 0
      %365 = vmatpush1.bf16.msra.mxu0 0
      %366 = vmatprep.subr.bf16.mxu0 0
      %367 = vmatpush1.bf16.msra.mxu0 0
      %368 = vmatprep.subr.bf16.mxu0 0
      %369 = vmatpush1.bf16.msra.mxu0 0
      %370 = vmatprep.subr.bf16.mxu0 0
      %371 = vmatpush1.bf16.msra.mxu0 0
      %372 = vmatprep.subr.bf16.mxu0 0
      %373 = vmatpush1.bf16.msra.mxu0 0
      %374 = vmatprep.subr.bf16.mxu0 0
      %375 = vmatpush1.bf16.msra.mxu0 0
      %376 = vmatprep.subr.bf16.mxu0 0
      %377 = vmatpush1.bf16.msra.mxu0 0
      %378 = vmatprep.subr.bf16.mxu0 0
      %379 = vmatpush1.bf16.msra.mxu0 0
      %380 = vmatprep.subr.bf16.mxu0 0
      %381 = vmatpush1.bf16.msra.mxu0 0
      %382 = vmatprep.subr.bf16.mxu0 0
      %383 = vmatpush1.bf16.msra.mxu0 0
      %384 = vmatprep.mubr.bf16.mxu0 0
      %385 = vmatmul.mubr.bf16.gmra.mrb[0].mxu0 %v343
      %v386 = vpop.f32.mrb[0].mxu0
      %v387 = vadd.f32 0.0, %v386
      %v388 = vpop.f32.mrb[0].mxu0
      %v389 = vadd.f32 0.0, %v388
      %v390 = vpop.f32.mrb[0].mxu0
      %v391 = vpop.f32.mrb[0].mxu0
      %392 = vdwg.mxu0
      %v394 = vsel %vm341, %v312, 0
      %v397 = vsel %vm345, %v313, 0
      %v400 = vsel %vm345, %v314, 0
      %402 = vmatprep.subr.bf16.mxu0 %v400
      %403 = vmatpush1.bf16.msra.mxu0 %v397
      %404 = vmatprep.subr.bf16.mxu0 0
      %405 = vmatpush1.bf16.msra.mxu0 0
      %406 = vmatprep.subr.bf16.mxu0 0
      %407 = vmatpush1.bf16.msra.mxu0 0
      %408 = vmatprep.subr.bf16.mxu0 0
      %409 = vmatpush1.bf16.msra.mxu0 0
      %410 = vmatprep.subr.bf16.mxu0 0
      %411 = vmatpush1.bf16.msra.mxu0 0
      %412 = vmatprep.subr.bf16.mxu0 0
      %413 = vmatpush1.bf16.msra.mxu0 0
      %414 = vmatprep.subr.bf16.mxu0 0
      %415 = vmatpush1.bf16.msra.mxu0 0
      %416 = vmatprep.subr.bf16.mxu0 0
      %417 = vmatpush1.bf16.msra.mxu0 0
      %418 = vmatprep.subr.bf16.mxu0 0
      %419 = vmatpush1.bf16.msra.mxu0 0
      %420 = vmatprep.subr.bf16.mxu0 0
      %421 = vmatpush1.bf16.msra.mxu0 0
      %422 = vmatprep.subr.bf16.mxu0 0
      %423 = vmatpush1.bf16.msra.mxu0 0
      %424 = vmatprep.subr.bf16.mxu0 0
      %425 = vmatpush1.bf16.msra.mxu0 0
      %426 = vmatprep.subr.bf16.mxu0 0
      %427 = vmatpush1.bf16.msra.mxu0 0
      %428 = vmatprep.subr.bf16.mxu0 0
      %429 = vmatpush1.bf16.msra.mxu0 0
      %430 = vmatprep.subr.bf16.mxu0 0
      %431 = vmatpush1.bf16.msra.mxu0 0
      %432 = vmatprep.subr.bf16.mxu0 0
      %433 = vmatpush1.bf16.msra.mxu0 0
      %434 = vmatprep.mubr.bf16.mxu0 0
      %435 = vmatmul.mubr.bf16.gmra.mrb[0].mxu0 %v394
      %v436 = vpop.f32.mrb[0].mxu0
      %v437 = vadd.f32 %v387, %v436
      %v438 = vpop.f32.mrb[0].mxu0
      %v439 = vadd.f32 %v389, %v438
      %v440 = vpop.f32.mrb[0].mxu0
      %v441 = vpop.f32.mrb[0].mxu0
      %442 = vdwg.mxu0
      %443 = vrot.lane.b32.xlu0 %v287, 15
      %v444 = vpop.permute.xlu0 %443
      %445 = vrot.lane.b32.xlu0 %v288, 15
      %v446 = vpop.permute.xlu0 %445
      %vm447 = vcmp.lt.s32.totalorder %v294, 15
      %v448 = vsel %vm447, %v444, %v446
      %v449 = vsel %vm447, %v446, %v444
      %s450 = scalar_lea.vmem %s1, 4
      %v451 = vld [vmem:[%s450] sm:$0x3]
      %v453 = vlaneseq
      %v454 = vshrl.u32 %v453, 7
      %v455 = vsub.s32 0, %v454
      %v456 = vrot.slane %v451, %v455
      %v457 = vlaneseq
      %v458 = vshrl.u32 %v457, 7
      %v459 = vsub.s32 1, %v458
      %v460 = vrot.slane %v451, %v459
      %v463 = vmul.f32 %v449, %v456
      %v464 = vmul.f32 %v448, %v460
      %s465 = scalar_lea.vmem %s4, 8
      %v466 = vld [vmem:[%s465] sm:$0xf]
      %v467 = vpack.c.bf16 %v463, %v463
      %v468 = vpack.c.bf16 %v464, %v464
      %v470 = vsel %vm341, %v466, 0
      %v473 = vsel %vm345, %v467, 0
      %v476 = vsel %vm345, %v468, 0
      %478 = vmatprep.subr.bf16.mxu0 %v476
      %479 = vmatpush1.bf16.msra.mxu0 %v473
      %480 = vmatprep.subr.bf16.mxu0 0
      %481 = vmatpush1.bf16.msra.mxu0 0
      %482 = vmatprep.subr.bf16.mxu0 0
      %483 = vmatpush1.bf16.msra.mxu0 0
      %484 = vmatprep.subr.bf16.mxu0 0
      %485 = vmatpush1.bf16.msra.mxu0 0
      %486 = vmatprep.subr.bf16.mxu0 0
      %487 = vmatpush1.bf16.msra.mxu0 0
      %488 = vmatprep.subr.bf16.mxu0 0
      %489 = vmatpush1.bf16.msra.mxu0 0
      %490 = vmatprep.subr.bf16.mxu0 0
      %491 = vmatpush1.bf16.msra.mxu0 0
      %492 = vmatprep.subr.bf16.mxu0 0
      %493 = vmatpush1.bf16.msra.mxu0 0
      %494 = vmatprep.subr.bf16.mxu0 0
      %495 = vmatpush1.bf16.msra.mxu0 0
      %496 = vmatprep.subr.bf16.mxu0 0
      %497 = vmatpush1.bf16.msra.mxu0 0
      %498 = vmatprep.subr.bf16.mxu0 0
      %499 = vmatpush1.bf16.msra.mxu0 0
      %500 = vmatprep.subr.bf16.mxu0 0
      %501 = vmatpush1.bf16.msra.mxu0 0
      %502 = vmatprep.subr.bf16.mxu0 0
      %503 = vmatpush1.bf16.msra.mxu0 0
      %504 = vmatprep.subr.bf16.mxu0 0
      %505 = vmatpush1.bf16.msra.mxu0 0
      %506 = vmatprep.subr.bf16.mxu0 0
      %507 = vmatpush1.bf16.msra.mxu0 0
      %508 = vmatprep.subr.bf16.mxu0 0
      %509 = vmatpush1.bf16.msra.mxu0 0
      %510 = vmatprep.mubr.bf16.mxu0 0
      %511 = vmatmul.mubr.bf16.gmra.mrb[0].mxu0 %v470
      %v512 = vpop.f32.mrb[0].mxu0
      %v513 = vadd.f32 0.0, %v512
      %v514 = vpop.f32.mrb[0].mxu0
      %v515 = vadd.f32 0.0, %v514
      %v516 = vpop.f32.mrb[0].mxu0
      %v517 = vpop.f32.mrb[0].mxu0
      %518 = vdwg.mxu0
      %v519 = vadd.f32 %v437, %v513
      %v520 = vadd.f32 %v439, %v515
      %521 = vrot.lane.b32.xlu0 %v287, 1
      %v522 = vpop.permute.xlu0 %521
      %523 = vrot.lane.b32.xlu0 %v288, 1
      %v524 = vpop.permute.xlu0 %523
      %vm525 = vcmp.lt.s32.totalorder %v294, 1
      %v526 = vsel %vm525, %v522, %v524
      %v527 = vsel %vm525, %v524, %v522
      %s528 = scalar_lea.vmem %s1, 6
      %v529 = vld [vmem:[%s528] sm:$0x3]
      %v531 = vlaneseq
      %v532 = vshrl.u32 %v531, 7
      %v533 = vsub.s32 0, %v532
      %v534 = vrot.slane %v529, %v533
      %v535 = vlaneseq
      %v536 = vshrl.u32 %v535, 7
      %v537 = vsub.s32 1, %v536
      %v538 = vrot.slane %v529, %v537
      %v541 = vmul.f32 %v527, %v534
      %v542 = vmul.f32 %v526, %v538
      %s543 = scalar_lea.vmem %s4, 12
      %v544 = vld [vmem:[%s543] sm:$0xf]
      %v545 = vpack.c.bf16 %v541, %v541
      %v546 = vpack.c.bf16 %v542, %v542
      %v548 = vsel %vm341, %v544, 0
      %v551 = vsel %vm345, %v545, 0
      %v554 = vsel %vm345, %v546, 0
      %556 = vmatprep.subr.bf16.mxu0 %v554
      %557 = vmatpush1.bf16.msra.mxu0 %v551
      %558 = vmatprep.subr.bf16.mxu0 0
      %559 = vmatpush1.bf16.msra.mxu0 0
      %560 = vmatprep.subr.bf16.mxu0 0
      %561 = vmatpush1.bf16.msra.mxu0 0
      %562 = vmatprep.subr.bf16.mxu0 0
      %563 = vmatpush1.bf16.msra.mxu0 0
      %564 = vmatprep.subr.bf16.mxu0 0
      %565 = vmatpush1.bf16.msra.mxu0 0
      %566 = vmatprep.subr.bf16.mxu0 0
      %567 = vmatpush1.bf16.msra.mxu0 0
      %568 = vmatprep.subr.bf16.mxu0 0
      %569 = vmatpush1.bf16.msra.mxu0 0
      %570 = vmatprep.subr.bf16.mxu0 0
      %571 = vmatpush1.bf16.msra.mxu0 0
      %572 = vmatprep.subr.bf16.mxu0 0
      %573 = vmatpush1.bf16.msra.mxu0 0
      %574 = vmatprep.subr.bf16.mxu0 0
      %575 = vmatpush1.bf16.msra.mxu0 0
      %576 = vmatprep.subr.bf16.mxu0 0
      %577 = vmatpush1.bf16.msra.mxu0 0
      %578 = vmatprep.subr.bf16.mxu0 0
      %579 = vmatpush1.bf16.msra.mxu0 0
      %580 = vmatprep.subr.bf16.mxu0 0
      %581 = vmatpush1.bf16.msra.mxu0 0
      %582 = vmatprep.subr.bf16.mxu0 0
      %583 = vmatpush1.bf16.msra.mxu0 0
      %584 = vmatprep.subr.bf16.mxu0 0
      %585 = vmatpush1.bf16.msra.mxu0 0
      %586 = vmatprep.subr.bf16.mxu0 0
      %587 = vmatpush1.bf16.msra.mxu0 0
      %588 = vmatprep.mubr.bf16.mxu0 0
      %589 = vmatmul.mubr.bf16.gmra.mrb[0].mxu0 %v548
      %v590 = vpop.f32.mrb[0].mxu0
      %v591 = vadd.f32 0.0, %v590
      %v592 = vpop.f32.mrb[0].mxu0
      %v593 = vadd.f32 0.0, %v592
      %v594 = vpop.f32.mrb[0].mxu0
      %v595 = vpop.f32.mrb[0].mxu0
      %596 = vdwg.mxu0
      %v597 = vadd.f32 %v519, %v591
      %v598 = vadd.f32 %v520, %v593
      %s599 = scalar_lea.vmem %s4, 16
      %v600 = vld [vmem:[%s599] sm:$0xf]
      %v601 = vpack.c.bf16 %v287, %v287
      %v602 = vpack.c.bf16 %v288, %v288
      %v604 = vsel %vm341, %v600, 0
      %v607 = vsel %vm345, %v601, 0
      %v610 = vsel %vm345, %v602, 0
      %612 = vmatprep.subr.bf16.mxu0 %v610
      %613 = vmatpush1.bf16.msra.mxu0 %v607
      %614 = vmatprep.subr.bf16.mxu0 0
      %615 = vmatpush1.bf16.msra.mxu0 0
      %616 = vmatprep.subr.bf16.mxu0 0
      %617 = vmatpush1.bf16.msra.mxu0 0
      %618 = vmatprep.subr.bf16.mxu0 0
      %619 = vmatpush1.bf16.msra.mxu0 0
      %620 = vmatprep.subr.bf16.mxu0 0
      %621 = vmatpush1.bf16.msra.mxu0 0
      %622 = vmatprep.subr.bf16.mxu0 0
      %623 = vmatpush1.bf16.msra.mxu0 0
      %624 = vmatprep.subr.bf16.mxu0 0
      %625 = vmatpush1.bf16.msra.mxu0 0
      %626 = vmatprep.subr.bf16.mxu0 0
      %627 = vmatpush1.bf16.msra.mxu0 0
      %628 = vmatprep.subr.bf16.mxu0 0
      %629 = vmatpush1.bf16.msra.mxu0 0
      %630 = vmatprep.subr.bf16.mxu0 0
      %631 = vmatpush1.bf16.msra.mxu0 0
      %632 = vmatprep.subr.bf16.mxu0 0
      %633 = vmatpush1.bf16.msra.mxu0 0
      %634 = vmatprep.subr.bf16.mxu0 0
      %635 = vmatpush1.bf16.msra.mxu0 0
      %636 = vmatprep.subr.bf16.mxu0 0
      %637 = vmatpush1.bf16.msra.mxu0 0
      %638 = vmatprep.subr.bf16.mxu0 0
      %639 = vmatpush1.bf16.msra.mxu0 0
      %640 = vmatprep.subr.bf16.mxu0 0
      %641 = vmatpush1.bf16.msra.mxu0 0
      %642 = vmatprep.subr.bf16.mxu0 0
      %643 = vmatpush1.bf16.msra.mxu0 0
      %644 = vmatprep.mubr.bf16.mxu0 0
      %645 = vmatmul.mubr.bf16.gmra.mrb[0].mxu0 %v604
      %v646 = vpop.f32.mrb[0].mxu0
      %v647 = vadd.f32 0.0, %v646
      %v648 = vpop.f32.mrb[0].mxu0
      %v649 = vadd.f32 0.0, %v648
      %v650 = vpop.f32.mrb[0].mxu0
      %v651 = vpop.f32.mrb[0].mxu0
      %652 = vdwg.mxu0
      %v653 = vadd.f32 %v597, %v647
      %v654 = vadd.f32 %v598, %v649
      %655 = vrot.lane.b32.xlu0 %v287, 127
      %v656 = vpop.permute.xlu0 %655
      %657 = vrot.lane.b32.xlu0 %v288, 127
      %v658 = vpop.permute.xlu0 %657
      %vm659 = vcmp.lt.s32.totalorder %v294, 127
      %v660 = vsel %vm659, %v656, %v658
      %v661 = vsel %vm659, %v658, %v656
      %s662 = scalar_lea.vmem %s1, 10
      %v663 = vld [vmem:[%s662] sm:$0x3]
      %v665 = vlaneseq
      %v666 = vshrl.u32 %v665, 7
      %v667 = vsub.s32 0, %v666
      %v668 = vrot.slane %v663, %v667
      %v669 = vlaneseq
      %v670 = vshrl.u32 %v669, 7
      %v671 = vsub.s32 1, %v670
      %v672 = vrot.slane %v663, %v671
      %v675 = vmul.f32 %v660, %v668
      %v676 = vmul.f32 %v661, %v672
      %s677 = scalar_lea.vmem %s4, 20
      %v678 = vld [vmem:[%s677] sm:$0xf]
      %v679 = vpack.c.bf16 %v675, %v675
      %v680 = vpack.c.bf16 %v676, %v676
      %v682 = vsel %vm341, %v678, 0
      %v685 = vsel %vm345, %v679, 0
      %v688 = vsel %vm345, %v680, 0
      %690 = vmatprep.subr.bf16.mxu0 %v688
      %691 = vmatpush1.bf16.msra.mxu0 %v685
      %692 = vmatprep.subr.bf16.mxu0 0
      %693 = vmatpush1.bf16.msra.mxu0 0
      %694 = vmatprep.subr.bf16.mxu0 0
      %695 = vmatpush1.bf16.msra.mxu0 0
      %696 = vmatprep.subr.bf16.mxu0 0
      %697 = vmatpush1.bf16.msra.mxu0 0
      %698 = vmatprep.subr.bf16.mxu0 0
      %699 = vmatpush1.bf16.msra.mxu0 0
      %700 = vmatprep.subr.bf16.mxu0 0
      %701 = vmatpush1.bf16.msra.mxu0 0
      %702 = vmatprep.subr.bf16.mxu0 0
      %703 = vmatpush1.bf16.msra.mxu0 0
      %704 = vmatprep.subr.bf16.mxu0 0
      %705 = vmatpush1.bf16.msra.mxu0 0
      %706 = vmatprep.subr.bf16.mxu0 0
      %707 = vmatpush1.bf16.msra.mxu0 0
      %708 = vmatprep.subr.bf16.mxu0 0
      %709 = vmatpush1.bf16.msra.mxu0 0
      %710 = vmatprep.subr.bf16.mxu0 0
      %711 = vmatpush1.bf16.msra.mxu0 0
      %712 = vmatprep.subr.bf16.mxu0 0
      %713 = vmatpush1.bf16.msra.mxu0 0
      %714 = vmatprep.subr.bf16.mxu0 0
      %715 = vmatpush1.bf16.msra.mxu0 0
      %716 = vmatprep.subr.bf16.mxu0 0
      %717 = vmatpush1.bf16.msra.mxu0 0
      %718 = vmatprep.subr.bf16.mxu0 0
      %719 = vmatpush1.bf16.msra.mxu0 0
      %720 = vmatprep.subr.bf16.mxu0 0
      %721 = vmatpush1.bf16.msra.mxu0 0
      %722 = vmatprep.mubr.bf16.mxu0 0
      %723 = vmatmul.mubr.bf16.gmra.mrb[0].mxu0 %v682
      %v724 = vpop.f32.mrb[0].mxu0
      %v725 = vadd.f32 0.0, %v724
      %v726 = vpop.f32.mrb[0].mxu0
      %v727 = vadd.f32 0.0, %v726
      %v728 = vpop.f32.mrb[0].mxu0
      %v729 = vpop.f32.mrb[0].mxu0
      %730 = vdwg.mxu0
      %v731 = vadd.f32 %v653, %v725
      %v732 = vadd.f32 %v654, %v727
      %733 = vrot.lane.b32.xlu0 %v287, 113
      %v734 = vpop.permute.xlu0 %733
      %735 = vrot.lane.b32.xlu0 %v288, 113
      %v736 = vpop.permute.xlu0 %735
      %vm737 = vcmp.lt.s32.totalorder %v294, 113
      %v738 = vsel %vm737, %v734, %v736
      %v739 = vsel %vm737, %v736, %v734
      %s740 = scalar_lea.vmem %s1, 12
      %v741 = vld [vmem:[%s740] sm:$0x3]
      %v743 = vlaneseq
      %v744 = vshrl.u32 %v743, 7
      %v745 = vsub.s32 0, %v744
      %v746 = vrot.slane %v741, %v745
      %v747 = vlaneseq
      %v748 = vshrl.u32 %v747, 7
      %v749 = vsub.s32 1, %v748
      %v750 = vrot.slane %v741, %v749
      %v753 = vmul.f32 %v738, %v746
      %v754 = vmul.f32 %v739, %v750
      %s755 = scalar_lea.vmem %s4, 24
      %v756 = vld [vmem:[%s755] sm:$0xf]
      %v757 = vpack.c.bf16 %v753, %v753
      %v758 = vpack.c.bf16 %v754, %v754
      %v760 = vsel %vm341, %v756, 0
      %v763 = vsel %vm345, %v757, 0
      %v766 = vsel %vm345, %v758, 0
      %768 = vmatprep.subr.bf16.mxu0 %v766
      %769 = vmatpush1.bf16.msra.mxu0 %v763
      %770 = vmatprep.subr.bf16.mxu0 0
      %771 = vmatpush1.bf16.msra.mxu0 0
      %772 = vmatprep.subr.bf16.mxu0 0
      %773 = vmatpush1.bf16.msra.mxu0 0
      %774 = vmatprep.subr.bf16.mxu0 0
      %775 = vmatpush1.bf16.msra.mxu0 0
      %776 = vmatprep.subr.bf16.mxu0 0
      %777 = vmatpush1.bf16.msra.mxu0 0
      %778 = vmatprep.subr.bf16.mxu0 0
      %779 = vmatpush1.bf16.msra.mxu0 0
      %780 = vmatprep.subr.bf16.mxu0 0
      %781 = vmatpush1.bf16.msra.mxu0 0
      %782 = vmatprep.subr.bf16.mxu0 0
      %783 = vmatpush1.bf16.msra.mxu0 0
      %784 = vmatprep.subr.bf16.mxu0 0
      %785 = vmatpush1.bf16.msra.mxu0 0
      %786 = vmatprep.subr.bf16.mxu0 0
      %787 = vmatpush1.bf16.msra.mxu0 0
      %788 = vmatprep.subr.bf16.mxu0 0
      %789 = vmatpush1.bf16.msra.mxu0 0
      %790 = vmatprep.subr.bf16.mxu0 0
      %791 = vmatpush1.bf16.msra.mxu0 0
      %792 = vmatprep.subr.bf16.mxu0 0
      %793 = vmatpush1.bf16.msra.mxu0 0
      %794 = vmatprep.subr.bf16.mxu0 0
      %795 = vmatpush1.bf16.msra.mxu0 0
      %796 = vmatprep.subr.bf16.mxu0 0
      %797 = vmatpush1.bf16.msra.mxu0 0
      %798 = vmatprep.subr.bf16.mxu0 0
      %799 = vmatpush1.bf16.msra.mxu0 0
      %800 = vmatprep.mubr.bf16.mxu0 0
      %801 = vmatmul.mubr.bf16.gmra.mrb[0].mxu0 %v760
      %v802 = vpop.f32.mrb[0].mxu0
      %v803 = vadd.f32 0.0, %v802
      %v804 = vpop.f32.mrb[0].mxu0
      %v805 = vadd.f32 0.0, %v804
      %v806 = vpop.f32.mrb[0].mxu0
      %v807 = vpop.f32.mrb[0].mxu0
      %808 = vdwg.mxu0
      %v809 = vadd.f32 %v731, %v803
      %v810 = vadd.f32 %v732, %v805
      %811 = vrot.lane.b32.xlu0 %v287, 112
      %v812 = vpop.permute.xlu0 %811
      %813 = vrot.lane.b32.xlu0 %v288, 112
      %v814 = vpop.permute.xlu0 %813
      %vm815 = vcmp.lt.s32.totalorder %v294, 112
      %v816 = vsel %vm815, %v812, %v814
      %v817 = vsel %vm815, %v814, %v812
      %s818 = scalar_lea.vmem %s1, 14
      %v819 = vld [vmem:[%s818] sm:$0x3]
      %v821 = vlaneseq
      %v822 = vshrl.u32 %v821, 7
      %v823 = vsub.s32 0, %v822
      %v824 = vrot.slane %v819, %v823
      %v825 = vlaneseq
      %v826 = vshrl.u32 %v825, 7
      %v827 = vsub.s32 1, %v826
      %v828 = vrot.slane %v819, %v827
      %v831 = vmul.f32 %v816, %v824
      %v832 = vmul.f32 %v817, %v828
      %s833 = scalar_lea.vmem %s4, 28
      %v834 = vld [vmem:[%s833] sm:$0xf]
      %v835 = vpack.c.bf16 %v831, %v831
      %v836 = vpack.c.bf16 %v832, %v832
      %v838 = vsel %vm341, %v834, 0
      %v841 = vsel %vm345, %v835, 0
      %v844 = vsel %vm345, %v836, 0
      %846 = vmatprep.subr.bf16.mxu0 %v844
      %847 = vmatpush1.bf16.msra.mxu0 %v841
      %848 = vmatprep.subr.bf16.mxu0 0
      %849 = vmatpush1.bf16.msra.mxu0 0
      %850 = vmatprep.subr.bf16.mxu0 0
      %851 = vmatpush1.bf16.msra.mxu0 0
      %852 = vmatprep.subr.bf16.mxu0 0
      %853 = vmatpush1.bf16.msra.mxu0 0
      %854 = vmatprep.subr.bf16.mxu0 0
      %855 = vmatpush1.bf16.msra.mxu0 0
      %856 = vmatprep.subr.bf16.mxu0 0
      %857 = vmatpush1.bf16.msra.mxu0 0
      %858 = vmatprep.subr.bf16.mxu0 0
      %859 = vmatpush1.bf16.msra.mxu0 0
      %860 = vmatprep.subr.bf16.mxu0 0
      %861 = vmatpush1.bf16.msra.mxu0 0
      %862 = vmatprep.subr.bf16.mxu0 0
      %863 = vmatpush1.bf16.msra.mxu0 0
      %864 = vmatprep.subr.bf16.mxu0 0
      %865 = vmatpush1.bf16.msra.mxu0 0
      %866 = vmatprep.subr.bf16.mxu0 0
      %867 = vmatpush1.bf16.msra.mxu0 0
      %868 = vmatprep.subr.bf16.mxu0 0
      %869 = vmatpush1.bf16.msra.mxu0 0
      %870 = vmatprep.subr.bf16.mxu0 0
      %871 = vmatpush1.bf16.msra.mxu0 0
      %872 = vmatprep.subr.bf16.mxu0 0
      %873 = vmatpush1.bf16.msra.mxu0 0
      %874 = vmatprep.subr.bf16.mxu0 0
      %875 = vmatpush1.bf16.msra.mxu0 0
      %876 = vmatprep.subr.bf16.mxu0 0
      %877 = vmatpush1.bf16.msra.mxu0 0
      %878 = vmatprep.mubr.bf16.mxu0 0
      %879 = vmatmul.mubr.bf16.gmra.mrb[0].mxu0 %v838
      %v880 = vpop.f32.mrb[0].mxu0
      %v881 = vadd.f32 0.0, %v880
      %v882 = vpop.f32.mrb[0].mxu0
      %v883 = vadd.f32 0.0, %v882
      %v884 = vpop.f32.mrb[0].mxu0
      %v885 = vpop.f32.mrb[0].mxu0
      %886 = vdwg.mxu0
      %v887 = vadd.f32 %v809, %v881
      %v888 = vadd.f32 %v810, %v883
      %889 = vrot.lane.b32.xlu0 %v287, 111
      %v890 = vpop.permute.xlu0 %889
      %891 = vrot.lane.b32.xlu0 %v288, 111
      %v892 = vpop.permute.xlu0 %891
      %vm893 = vcmp.lt.s32.totalorder %v294, 111
      %v894 = vsel %vm893, %v890, %v892
      %v895 = vsel %vm893, %v892, %v890
      %s896 = scalar_lea.vmem %s1, 16
      %v897 = vld [vmem:[%s896] sm:$0x3]
      %v899 = vlaneseq
      %v900 = vshrl.u32 %v899, 7
      %v901 = vsub.s32 0, %v900
      %v902 = vrot.slane %v897, %v901
      %v903 = vlaneseq
      %v904 = vshrl.u32 %v903, 7
      %v905 = vsub.s32 1, %v904
      %v906 = vrot.slane %v897, %v905
      %v909 = vmul.f32 %v894, %v902
      %v910 = vmul.f32 %v895, %v906
      %s911 = scalar_lea.vmem %s4, 32
      %v912 = vld [vmem:[%s911] sm:$0xf]
      %v913 = vpack.c.bf16 %v909, %v909
      %v914 = vpack.c.bf16 %v910, %v910
      %v916 = vsel %vm341, %v912, 0
      %v919 = vsel %vm345, %v913, 0
      %v922 = vsel %vm345, %v914, 0
      %924 = vmatprep.subr.bf16.mxu0 %v922
      %925 = vmatpush1.bf16.msra.mxu0 %v919
      %926 = vmatprep.subr.bf16.mxu0 0
      %927 = vmatpush1.bf16.msra.mxu0 0
      %928 = vmatprep.subr.bf16.mxu0 0
      %929 = vmatpush1.bf16.msra.mxu0 0
      %930 = vmatprep.subr.bf16.mxu0 0
      %931 = vmatpush1.bf16.msra.mxu0 0
      %932 = vmatprep.subr.bf16.mxu0 0
      %933 = vmatpush1.bf16.msra.mxu0 0
      %934 = vmatprep.subr.bf16.mxu0 0
      %935 = vmatpush1.bf16.msra.mxu0 0
      %936 = vmatprep.subr.bf16.mxu0 0
      %937 = vmatpush1.bf16.msra.mxu0 0
      %938 = vmatprep.subr.bf16.mxu0 0
      %939 = vmatpush1.bf16.msra.mxu0 0
      %940 = vmatprep.subr.bf16.mxu0 0
      %941 = vmatpush1.bf16.msra.mxu0 0
      %942 = vmatprep.subr.bf16.mxu0 0
      %943 = vmatpush1.bf16.msra.mxu0 0
      %944 = vmatprep.subr.bf16.mxu0 0
      %945 = vmatpush1.bf16.msra.mxu0 0
      %946 = vmatprep.subr.bf16.mxu0 0
      %947 = vmatpush1.bf16.msra.mxu0 0
      %948 = vmatprep.subr.bf16.mxu0 0
      %949 = vmatpush1.bf16.msra.mxu0 0
      %950 = vmatprep.subr.bf16.mxu0 0
      %951 = vmatpush1.bf16.msra.mxu0 0
      %952 = vmatprep.subr.bf16.mxu0 0
      %953 = vmatpush1.bf16.msra.mxu0 0
      %954 = vmatprep.subr.bf16.mxu0 0
      %955 = vmatpush1.bf16.msra.mxu0 0
      %956 = vmatprep.mubr.bf16.mxu0 0
      %957 = vmatmul.mubr.bf16.gmra.mrb[0].mxu0 %v916
      %v958 = vpop.f32.mrb[0].mxu0
      %v959 = vadd.f32 0.0, %v958
      %v960 = vpop.f32.mrb[0].mxu0
      %v961 = vadd.f32 0.0, %v960
      %v962 = vpop.f32.mrb[0].mxu0
      %v963 = vpop.f32.mrb[0].mxu0
      %964 = vdwg.mxu0
      %v965 = vadd.f32 %v887, %v959
      %v966 = vadd.f32 %v888, %v961
      %v967 = vld [vmem:[%s5] sm:$0xff]
      %969 = vset.pattern.permute.xlu0 0
      %970 = vperm.xlu0 %969, %v967
      %v971 = vpop.permute.xlu0 %970
      %v973 = vadd.f32 %v965, %v971
      %v974 = vadd.f32 %v966, %v971
      %975 = vst [vmem:[%s251 + $0x10] sm:$0xff] %v973
      %976 = vst [vmem:[%s251 + $0x18] sm:$0xff] %v974
      %v977 = vld [vmem:[%s251] sm:$0xff]
      %v978 = vld [vmem:[%s251 + $0x8] sm:$0xff]
      %v979 = vld [vmem:[%s251 + $0x10] sm:$0xff]
      %v980 = vld [vmem:[%s251 + $0x18] sm:$0xff]
      %s981 = scalar_lea.vmem %s2, 32
      %v982 = vld [vmem:[%s981] sm:$0xff]
      %v983 = vld [vmem:[%s981 + $0x8] sm:$0xff]
      %985 = vset.pattern.permute.xlu0 0
      %986 = vperm.xlu0 %985, %v982
      %v987 = vpop.permute.xlu0 %986
      %990 = vset.pattern.permute.xlu0 0
      %991 = vperm.xlu0 %990, %v983
      %v992 = vpop.permute.xlu0 %991
      %v994 = vmul.f32 %v977, %v987
      %v995 = vmul.f32 %v978, %v987
      %v996 = vmul.f32 %v979, %v992
      %v997 = vmul.f32 %v980, %v992
      %s998 = scalar_lea.vmem %s3, 32
      %v999 = vld [vmem:[%s998] sm:$0xff]
      %v1000 = vld [vmem:[%s998 + $0x8] sm:$0xff]
      %1002 = vset.pattern.permute.xlu0 0
      %1003 = vperm.xlu0 %1002, %v999
      %v1004 = vpop.permute.xlu0 %1003
      %1007 = vset.pattern.permute.xlu0 0
      %1008 = vperm.xlu0 %1007, %v1000
      %v1009 = vpop.permute.xlu0 %1008
      %v1011 = vadd.f32 %v994, %v1004
      %v1012 = vadd.f32 %v995, %v1004
      %v1013 = vadd.f32 %v996, %v1009
      %v1014 = vadd.f32 %v997, %v1009
      %v1015 = vxor.u32 %v1011, 2147483648
      %v1016 = vxor.u32 %v1012, 2147483648
      %v1017 = vxor.u32 %v1013, 2147483648
      %v1018 = vxor.u32 %v1014, 2147483648
      %v1019 = vmul.f32 %v1015, 1.442695
      %v1020 = vpow.pop %v1019
      %v1021 = vmul.f32 %v1016, 1.442695
      %v1022 = vpow.pop %v1021
      %v1023 = vmul.f32 %v1017, 1.442695
      %v1024 = vpow.pop %v1023
      %v1025 = vmul.f32 %v1018, 1.442695
      %v1026 = vpow.pop %v1025
      %v1027 = vadd.f32 %v1020, 1.0
      %v1028 = vadd.f32 %v1022, 1.0
      %v1029 = vadd.f32 %v1024, 1.0
      %v1030 = vadd.f32 %v1026, 1.0
      %v1031 = vrcp.pop %v1027
      %v1032 = vmul.f32 1.0, %v1031
      %v1033 = vrcp.pop %v1028
      %v1034 = vmul.f32 1.0, %v1033
      %v1035 = vrcp.pop %v1029
      %v1036 = vmul.f32 1.0, %v1035
      %v1037 = vrcp.pop %v1030
      %v1038 = vmul.f32 1.0, %v1037
      %v1039 = vmul.f32 %v1011, %v1032
      %v1040 = vmul.f32 %v1012, %v1034
      %v1041 = vmul.f32 %v1013, %v1036
      %v1042 = vmul.f32 %v1014, %v1038
      %1043 = vrot.lane.b32.xlu0 %v1039, 17
      %v1044 = vpop.permute.xlu0 %1043
      %1045 = vrot.lane.b32.xlu0 %v1041, 17
      %v1046 = vpop.permute.xlu0 %1045
      %1047 = vrot.lane.b32.xlu0 %v1040, 17
      %v1048 = vpop.permute.xlu0 %1047
      %1049 = vrot.lane.b32.xlu0 %v1042, 17
      %v1050 = vpop.permute.xlu0 %1049
      %v1051 = vsel %vm295, %v1044, %v1048
      %v1052 = vsel %vm295, %v1046, %v1050
      %v1053 = vsel %vm295, %v1048, %v1044
      %v1054 = vsel %vm295, %v1050, %v1046
      %v1055 = vld [vmem:[%s1] sm:$0x3]
      %v1057 = vlaneseq
      %v1058 = vshrl.u32 %v1057, 7
      %v1059 = vsub.s32 0, %v1058
      %v1060 = vrot.slane %v1055, %v1059
      %v1061 = vlaneseq
      %v1062 = vshrl.u32 %v1061, 7
      %v1063 = vsub.s32 1, %v1062
      %v1064 = vrot.slane %v1055, %v1063
      %v1067 = vmul.f32 %v1053, %v1060
      %v1068 = vmul.f32 %v1051, %v1064
      %v1069 = vmul.f32 %v1054, %v1060
      %v1070 = vmul.f32 %v1052, %v1064
      %s1071 = scalar_lea.vmem %s4, 36
      %v1072 = vld [vmem:[%s1071] sm:$0xf]
      %v1073 = vpack.c.bf16 %v1069, %v1067
      %v1074 = vpack.c.bf16 %v1070, %v1068
      %1075 = vrot.lane.b32.xlu0 %v1039, 16
      %v1076 = vpop.permute.xlu0 %1075
      %1077 = vrot.lane.b32.xlu0 %v1041, 16
      %v1078 = vpop.permute.xlu0 %1077
      %1079 = vrot.lane.b32.xlu0 %v1040, 16
      %v1080 = vpop.permute.xlu0 %1079
      %1081 = vrot.lane.b32.xlu0 %v1042, 16
      %v1082 = vpop.permute.xlu0 %1081
      %v1083 = vsel %vm319, %v1076, %v1080
      %v1084 = vsel %vm319, %v1078, %v1082
      %v1085 = vsel %vm319, %v1080, %v1076
      %v1086 = vsel %vm319, %v1082, %v1078
      %v1087 = vld [vmem:[%s322] sm:$0x3]
      %v1089 = vlaneseq
      %v1090 = vshrl.u32 %v1089, 7
      %v1091 = vsub.s32 0, %v1090
      %v1092 = vrot.slane %v1087, %v1091
      %v1093 = vlaneseq
      %v1094 = vshrl.u32 %v1093, 7
      %v1095 = vsub.s32 1, %v1094
      %v1096 = vrot.slane %v1087, %v1095
      %v1099 = vmul.f32 %v1085, %v1092
      %v1100 = vmul.f32 %v1083, %v1096
      %v1101 = vmul.f32 %v1086, %v1092
      %v1102 = vmul.f32 %v1084, %v1096
      %s1103 = scalar_lea.vmem %s4, 40
      %v1104 = vld [vmem:[%s1103] sm:$0xf]
      %v1105 = vpack.c.bf16 %v1101, %v1099
      %v1106 = vpack.c.bf16 %v1102, %v1100
      %vm1107 = vcmask 130048
      %v1109 = vsel %vm1107, %v1104, 0
      %1111 = vmatprep.subr.bf16.mxu0 %v1106
      %1112 = vmatpush1.bf16.msra.mxu0 %v1105
      %1113 = vmatprep.subr.bf16.mxu0 0
      %1114 = vmatpush1.bf16.msra.mxu0 0
      %1115 = vmatprep.subr.bf16.mxu0 0
      %1116 = vmatpush1.bf16.msra.mxu0 0
      %1117 = vmatprep.subr.bf16.mxu0 0
      %1118 = vmatpush1.bf16.msra.mxu0 0
      %1119 = vmatprep.subr.bf16.mxu0 0
      %1120 = vmatpush1.bf16.msra.mxu0 0
      %1121 = vmatprep.subr.bf16.mxu0 0
      %1122 = vmatpush1.bf16.msra.mxu0 0
      %1123 = vmatprep.subr.bf16.mxu0 0
      %1124 = vmatpush1.bf16.msra.mxu0 0
      %1125 = vmatprep.subr.bf16.mxu0 0
      %1126 = vmatpush1.bf16.msra.mxu0 0
      %1127 = vmatprep.subr.bf16.mxu0 0
      %1128 = vmatpush1.bf16.msra.mxu0 0
      %1129 = vmatprep.subr.bf16.mxu0 0
      %1130 = vmatpush1.bf16.msra.mxu0 0
      %1131 = vmatprep.subr.bf16.mxu0 0
      %1132 = vmatpush1.bf16.msra.mxu0 0
      %1133 = vmatprep.subr.bf16.mxu0 0
      %1134 = vmatpush1.bf16.msra.mxu0 0
      %1135 = vmatprep.subr.bf16.mxu0 0
      %1136 = vmatpush1.bf16.msra.mxu0 0
      %1137 = vmatprep.subr.bf16.mxu0 0
      %1138 = vmatpush1.bf16.msra.mxu0 0
      %1139 = vmatprep.subr.bf16.mxu0 0
      %1140 = vmatpush1.bf16.msra.mxu0 0
      %1141 = vmatprep.subr.bf16.mxu0 0
      %1142 = vmatpush1.bf16.msra.mxu0 0
      %1143 = vmatprep.mubr.bf16.mxu0 0
      %1144 = vmatmul.mubr.bf16.gmra.mrb[0].mxu0 %v1109
      %v1145 = vpop.f32.mrb[0].mxu0
      %v1146 = vadd.f32 0.0, %v1145
      %v1147 = vpop.f32.mrb[0].mxu0
      %v1148 = vadd.f32 0.0, %v1147
      %v1149 = vpop.f32.mrb[0].mxu0
      %v1150 = vpop.f32.mrb[0].mxu0
      %1151 = vdwg.mxu0
      %v1153 = vsel %vm1107, %v1072, 0
      %1155 = vmatprep.subr.bf16.mxu0 %v1074
      %1156 = vmatpush1.bf16.msra.mxu0 %v1073
      %1157 = vmatprep.subr.bf16.mxu0 0
      %1158 = vmatpush1.bf16.msra.mxu0 0
      %1159 = vmatprep.subr.bf16.mxu0 0
      %1160 = vmatpush1.bf16.msra.mxu0 0
      %1161 = vmatprep.subr.bf16.mxu0 0
      %1162 = vmatpush1.bf16.msra.mxu0 0
      %1163 = vmatprep.subr.bf16.mxu0 0
      %1164 = vmatpush1.bf16.msra.mxu0 0
      %1165 = vmatprep.subr.bf16.mxu0 0
      %1166 = vmatpush1.bf16.msra.mxu0 0
      %1167 = vmatprep.subr.bf16.mxu0 0
      %1168 = vmatpush1.bf16.msra.mxu0 0
      %1169 = vmatprep.subr.bf16.mxu0 0
      %1170 = vmatpush1.bf16.msra.mxu0 0
      %1171 = vmatprep.subr.bf16.mxu0 0
      %1172 = vmatpush1.bf16.msra.mxu0 0
      %1173 = vmatprep.subr.bf16.mxu0 0
      %1174 = vmatpush1.bf16.msra.mxu0 0
      %1175 = vmatprep.subr.bf16.mxu0 0
      %1176 = vmatpush1.bf16.msra.mxu0 0
      %1177 = vmatprep.subr.bf16.mxu0 0
      %1178 = vmatpush1.bf16.msra.mxu0 0
      %1179 = vmatprep.subr.bf16.mxu0 0
      %1180 = vmatpush1.bf16.msra.mxu0 0
      %1181 = vmatprep.subr.bf16.mxu0 0
      %1182 = vmatpush1.bf16.msra.mxu0 0
      %1183 = vmatprep.subr.bf16.mxu0 0
      %1184 = vmatpush1.bf16.msra.mxu0 0
      %1185 = vmatprep.subr.bf16.mxu0 0
      %1186 = vmatpush1.bf16.msra.mxu0 0
      %1187 = vmatprep.mubr.bf16.mxu0 0
      %1188 = vmatmul.mubr.bf16.gmra.mrb[0].mxu0 %v1153
      %v1189 = vpop.f32.mrb[0].mxu0
      %v1190 = vadd.f32 %v1146, %v1189
      %v1191 = vpop.f32.mrb[0].mxu0
      %v1192 = vadd.f32 %v1148, %v1191
      %v1193 = vpop.f32.mrb[0].mxu0
      %v1194 = vpop.f32.mrb[0].mxu0
      %1195 = vdwg.mxu0
      %1196 = vrot.lane.b32.xlu0 %v1039, 15
      %v1197 = vpop.permute.xlu0 %1196
      %1198 = vrot.lane.b32.xlu0 %v1041, 15
      %v1199 = vpop.permute.xlu0 %1198
      %1200 = vrot.lane.b32.xlu0 %v1040, 15
      %v1201 = vpop.permute.xlu0 %1200
      %1202 = vrot.lane.b32.xlu0 %v1042, 15
      %v1203 = vpop.permute.xlu0 %1202
      %v1204 = vsel %vm447, %v1197, %v1201
      %v1205 = vsel %vm447, %v1199, %v1203
      %v1206 = vsel %vm447, %v1201, %v1197
      %v1207 = vsel %vm447, %v1203, %v1199
      %v1208 = vld [vmem:[%s450] sm:$0x3]
      %v1210 = vlaneseq
      %v1211 = vshrl.u32 %v1210, 7
      %v1212 = vsub.s32 0, %v1211
      %v1213 = vrot.slane %v1208, %v1212
      %v1214 = vlaneseq
      %v1215 = vshrl.u32 %v1214, 7
      %v1216 = vsub.s32 1, %v1215
      %v1217 = vrot.slane %v1208, %v1216
      %v1220 = vmul.f32 %v1206, %v1213
      %v1221 = vmul.f32 %v1204, %v1217
      %v1222 = vmul.f32 %v1207, %v1213
      %v1223 = vmul.f32 %v1205, %v1217
      %s1224 = scalar_lea.vmem %s4, 44
      %v1225 = vld [vmem:[%s1224] sm:$0xf]
      %v1226 = vpack.c.bf16 %v1222, %v1220
      %v1227 = vpack.c.bf16 %v1223, %v1221
      %v1229 = vsel %vm1107, %v1225, 0
      %1231 = vmatprep.subr.bf16.mxu0 %v1227
      %1232 = vmatpush1.bf16.msra.mxu0 %v1226
      %1233 = vmatprep.subr.bf16.mxu0 0
      %1234 = vmatpush1.bf16.msra.mxu0 0
      %1235 = vmatprep.subr.bf16.mxu0 0
      %1236 = vmatpush1.bf16.msra.mxu0 0
      %1237 = vmatprep.subr.bf16.mxu0 0
      %1238 = vmatpush1.bf16.msra.mxu0 0
      %1239 = vmatprep.subr.bf16.mxu0 0
      %1240 = vmatpush1.bf16.msra.mxu0 0
      %1241 = vmatprep.subr.bf16.mxu0 0
      %1242 = vmatpush1.bf16.msra.mxu0 0
      %1243 = vmatprep.subr.bf16.mxu0 0
      %1244 = vmatpush1.bf16.msra.mxu0 0
      %1245 = vmatprep.subr.bf16.mxu0 0
      %1246 = vmatpush1.bf16.msra.mxu0 0
      %1247 = vmatprep.subr.bf16.mxu0 0
      %1248 = vmatpush1.bf16.msra.mxu0 0
      %1249 = vmatprep.subr.bf16.mxu0 0
      %1250 = vmatpush1.bf16.msra.mxu0 0
      %1251 = vmatprep.subr.bf16.mxu0 0
      %1252 = vmatpush1.bf16.msra.mxu0 0
      %1253 = vmatprep.subr.bf16.mxu0 0
      %1254 = vmatpush1.bf16.msra.mxu0 0
      %1255 = vmatprep.subr.bf16.mxu0 0
      %1256 = vmatpush1.bf16.msra.mxu0 0
      %1257 = vmatprep.subr.bf16.mxu0 0
      %1258 = vmatpush1.bf16.msra.mxu0 0
      %1259 = vmatprep.subr.bf16.mxu0 0
      %1260 = vmatpush1.bf16.msra.mxu0 0
      %1261 = vmatprep.subr.bf16.mxu0 0
      %1262 = vmatpush1.bf16.msra.mxu0 0
      %1263 = vmatprep.mubr.bf16.mxu0 0
      %1264 = vmatmul.mubr.bf16.gmra.mrb[0].mxu0 %v1229
      %v1265 = vpop.f32.mrb[0].mxu0
      %v1266 = vadd.f32 0.0, %v1265
      %v1267 = vpop.f32.mrb[0].mxu0
      %v1268 = vadd.f32 0.0, %v1267
      %v1269 = vpop.f32.mrb[0].mxu0
      %v1270 = vpop.f32.mrb[0].mxu0
      %1271 = vdwg.mxu0
      %v1272 = vadd.f32 %v1190, %v1266
      %v1273 = vadd.f32 %v1192, %v1268
      %1274 = vrot.lane.b32.xlu0 %v1039, 1
      %v1275 = vpop.permute.xlu0 %1274
      %1276 = vrot.lane.b32.xlu0 %v1041, 1
      %v1277 = vpop.permute.xlu0 %1276
      %1278 = vrot.lane.b32.xlu0 %v1040, 1
      %v1279 = vpop.permute.xlu0 %1278
      %1280 = vrot.lane.b32.xlu0 %v1042, 1
      %v1281 = vpop.permute.xlu0 %1280
      %v1282 = vsel %vm525, %v1275, %v1279
      %v1283 = vsel %vm525, %v1277, %v1281
      %v1284 = vsel %vm525, %v1279, %v1275
      %v1285 = vsel %vm525, %v1281, %v1277
      %v1286 = vld [vmem:[%s528] sm:$0x3]
      %v1288 = vlaneseq
      %v1289 = vshrl.u32 %v1288, 7
      %v1290 = vsub.s32 0, %v1289
      %v1291 = vrot.slane %v1286, %v1290
      %v1292 = vlaneseq
      %v1293 = vshrl.u32 %v1292, 7
      %v1294 = vsub.s32 1, %v1293
      %v1295 = vrot.slane %v1286, %v1294
      %v1298 = vmul.f32 %v1284, %v1291
      %v1299 = vmul.f32 %v1282, %v1295
      %v1300 = vmul.f32 %v1285, %v1291
      %v1301 = vmul.f32 %v1283, %v1295
      %s1302 = scalar_lea.vmem %s4, 48
      %v1303 = vld [vmem:[%s1302] sm:$0xf]
      %v1304 = vpack.c.bf16 %v1300, %v1298
      %v1305 = vpack.c.bf16 %v1301, %v1299
      %v1307 = vsel %vm1107, %v1303, 0
      %1309 = vmatprep.subr.bf16.mxu0 %v1305
      %1310 = vmatpush1.bf16.msra.mxu0 %v1304
      %1311 = vmatprep.subr.bf16.mxu0 0
      %1312 = vmatpush1.bf16.msra.mxu0 0
      %1313 = vmatprep.subr.bf16.mxu0 0
      %1314 = vmatpush1.bf16.msra.mxu0 0
      %1315 = vmatprep.subr.bf16.mxu0 0
      %1316 = vmatpush1.bf16.msra.mxu0 0
      %1317 = vmatprep.subr.bf16.mxu0 0
      %1318 = vmatpush1.bf16.msra.mxu0 0
      %1319 = vmatprep.subr.bf16.mxu0 0
      %1320 = vmatpush1.bf16.msra.mxu0 0
      %1321 = vmatprep.subr.bf16.mxu0 0
      %1322 = vmatpush1.bf16.msra.mxu0 0
      %1323 = vmatprep.subr.bf16.mxu0 0
      %1324 = vmatpush1.bf16.msra.mxu0 0
      %1325 = vmatprep.subr.bf16.mxu0 0
      %1326 = vmatpush1.bf16.msra.mxu0 0
      %1327 = vmatprep.subr.bf16.mxu0 0
      %1328 = vmatpush1.bf16.msra.mxu0 0
      %1329 = vmatprep.subr.bf16.mxu0 0
      %1330 = vmatpush1.bf16.msra.mxu0 0
      %1331 = vmatprep.subr.bf16.mxu0 0
      %1332 = vmatpush1.bf16.msra.mxu0 0
      %1333 = vmatprep.subr.bf16.mxu0 0
      %1334 = vmatpush1.bf16.msra.mxu0 0
      %1335 = vmatprep.subr.bf16.mxu0 0
      %1336 = vmatpush1.bf16.msra.mxu0 0
      %1337 = vmatprep.subr.bf16.mxu0 0
      %1338 = vmatpush1.bf16.msra.mxu0 0
      %1339 = vmatprep.subr.bf16.mxu0 0
      %1340 = vmatpush1.bf16.msra.mxu0 0
      %1341 = vmatprep.mubr.bf16.mxu0 0
      %1342 = vmatmul.mubr.bf16.gmra.mrb[0].mxu0 %v1307
      %v1343 = vpop.f32.mrb[0].mxu0
      %v1344 = vadd.f32 0.0, %v1343
      %v1345 = vpop.f32.mrb[0].mxu0
      %v1346 = vadd.f32 0.0, %v1345
      %v1347 = vpop.f32.mrb[0].mxu0
      %v1348 = vpop.f32.mrb[0].mxu0
      %1349 = vdwg.mxu0
      %v1350 = vadd.f32 %v1272, %v1344
      %v1351 = vadd.f32 %v1273, %v1346
      %s1352 = scalar_lea.vmem %s4, 52
      %v1353 = vld [vmem:[%s1352] sm:$0xf]
      %v1354 = vpack.c.bf16 %v1041, %v1039
      %v1355 = vpack.c.bf16 %v1042, %v1040
      %v1357 = vsel %vm1107, %v1353, 0
      %1359 = vmatprep.subr.bf16.mxu0 %v1355
      %1360 = vmatpush1.bf16.msra.mxu0 %v1354
      %1361 = vmatprep.subr.bf16.mxu0 0
      %1362 = vmatpush1.bf16.msra.mxu0 0
      %1363 = vmatprep.subr.bf16.mxu0 0
      %1364 = vmatpush1.bf16.msra.mxu0 0
      %1365 = vmatprep.subr.bf16.mxu0 0
      %1366 = vmatpush1.bf16.msra.mxu0 0
      %1367 = vmatprep.subr.bf16.mxu0 0
      %1368 = vmatpush1.bf16.msra.mxu0 0
      %1369 = vmatprep.subr.bf16.mxu0 0
      %1370 = vmatpush1.bf16.msra.mxu0 0
      %1371 = vmatprep.subr.bf16.mxu0 0
      %1372 = vmatpush1.bf16.msra.mxu0 0
      %1373 = vmatprep.subr.bf16.mxu0 0
      %1374 = vmatpush1.bf16.msra.mxu0 0
      %1375 = vmatprep.subr.bf16.mxu0 0
      %1376 = vmatpush1.bf16.msra.mxu0 0
      %1377 = vmatprep.subr.bf16.mxu0 0
      %1378 = vmatpush1.bf16.msra.mxu0 0
      %1379 = vmatprep.subr.bf16.mxu0 0
      %1380 = vmatpush1.bf16.msra.mxu0 0
      %1381 = vmatprep.subr.bf16.mxu0 0
      %1382 = vmatpush1.bf16.msra.mxu0 0
      %1383 = vmatprep.subr.bf16.mxu0 0
      %1384 = vmatpush1.bf16.msra.mxu0 0
      %1385 = vmatprep.subr.bf16.mxu0 0
      %1386 = vmatpush1.bf16.msra.mxu0 0
      %1387 = vmatprep.subr.bf16.mxu0 0
      %1388 = vmatpush1.bf16.msra.mxu0 0
      %1389 = vmatprep.subr.bf16.mxu0 0
      %1390 = vmatpush1.bf16.msra.mxu0 0
      %1391 = vmatprep.mubr.bf16.mxu0 0
      %1392 = vmatmul.mubr.bf16.gmra.mrb[0].mxu0 %v1357
      %v1393 = vpop.f32.mrb[0].mxu0
      %v1394 = vadd.f32 0.0, %v1393
      %v1395 = vpop.f32.mrb[0].mxu0
      %v1396 = vadd.f32 0.0, %v1395
      %v1397 = vpop.f32.mrb[0].mxu0
      %v1398 = vpop.f32.mrb[0].mxu0
      %1399 = vdwg.mxu0
      %v1400 = vadd.f32 %v1350, %v1394
      %v1401 = vadd.f32 %v1351, %v1396
      %1402 = vrot.lane.b32.xlu0 %v1039, 127
      %v1403 = vpop.permute.xlu0 %1402
      %1404 = vrot.lane.b32.xlu0 %v1041, 127
      %v1405 = vpop.permute.xlu0 %1404
      %1406 = vrot.lane.b32.xlu0 %v1040, 127
      %v1407 = vpop.permute.xlu0 %1406
      %1408 = vrot.lane.b32.xlu0 %v1042, 127
      %v1409 = vpop.permute.xlu0 %1408
      %v1410 = vsel %vm659, %v1403, %v1407
      %v1411 = vsel %vm659, %v1405, %v1409
      %v1412 = vsel %vm659, %v1407, %v1403
      %v1413 = vsel %vm659, %v1409, %v1405
      %v1414 = vld [vmem:[%s662] sm:$0x3]
      %v1416 = vlaneseq
      %v1417 = vshrl.u32 %v1416, 7
      %v1418 = vsub.s32 0, %v1417
      %v1419 = vrot.slane %v1414, %v1418
      %v1420 = vlaneseq
      %v1421 = vshrl.u32 %v1420, 7
      %v1422 = vsub.s32 1, %v1421
      %v1423 = vrot.slane %v1414, %v1422
      %v1426 = vmul.f32 %v1410, %v1419
      %v1427 = vmul.f32 %v1412, %v1423
      %v1428 = vmul.f32 %v1411, %v1419
      %v1429 = vmul.f32 %v1413, %v1423
      %s1430 = scalar_lea.vmem %s4, 56
      %v1431 = vld [vmem:[%s1430] sm:$0xf]
      %v1432 = vpack.c.bf16 %v1428, %v1426
      %v1433 = vpack.c.bf16 %v1429, %v1427
      %v1435 = vsel %vm1107, %v1431, 0
      %1437 = vmatprep.subr.bf16.mxu0 %v1433
      %1438 = vmatpush1.bf16.msra.mxu0 %v1432
      %1439 = vmatprep.subr.bf16.mxu0 0
      %1440 = vmatpush1.bf16.msra.mxu0 0
      %1441 = vmatprep.subr.bf16.mxu0 0
      %1442 = vmatpush1.bf16.msra.mxu0 0
      %1443 = vmatprep.subr.bf16.mxu0 0
      %1444 = vmatpush1.bf16.msra.mxu0 0
      %1445 = vmatprep.subr.bf16.mxu0 0
      %1446 = vmatpush1.bf16.msra.mxu0 0
      %1447 = vmatprep.subr.bf16.mxu0 0
      %1448 = vmatpush1.bf16.msra.mxu0 0
      %1449 = vmatprep.subr.bf16.mxu0 0
      %1450 = vmatpush1.bf16.msra.mxu0 0
      %1451 = vmatprep.subr.bf16.mxu0 0
      %1452 = vmatpush1.bf16.msra.mxu0 0
      %1453 = vmatprep.subr.bf16.mxu0 0
      %1454 = vmatpush1.bf16.msra.mxu0 0
      %1455 = vmatprep.subr.bf16.mxu0 0
      %1456 = vmatpush1.bf16.msra.mxu0 0
      %1457 = vmatprep.subr.bf16.mxu0 0
      %1458 = vmatpush1.bf16.msra.mxu0 0
      %1459 = vmatprep.subr.bf16.mxu0 0
      %1460 = vmatpush1.bf16.msra.mxu0 0
      %1461 = vmatprep.subr.bf16.mxu0 0
      %1462 = vmatpush1.bf16.msra.mxu0 0
      %1463 = vmatprep.subr.bf16.mxu0 0
      %1464 = vmatpush1.bf16.msra.mxu0 0
      %1465 = vmatprep.subr.bf16.mxu0 0
      %1466 = vmatpush1.bf16.msra.mxu0 0
      %1467 = vmatprep.subr.bf16.mxu0 0
      %1468 = vmatpush1.bf16.msra.mxu0 0
      %1469 = vmatprep.mubr.bf16.mxu0 0
      %1470 = vmatmul.mubr.bf16.gmra.mrb[0].mxu0 %v1435
      %v1471 = vpop.f32.mrb[0].mxu0
      %v1472 = vadd.f32 0.0, %v1471
      %v1473 = vpop.f32.mrb[0].mxu0
      %v1474 = vadd.f32 0.0, %v1473
      %v1475 = vpop.f32.mrb[0].mxu0
      %v1476 = vpop.f32.mrb[0].mxu0
      %1477 = vdwg.mxu0
      %v1478 = vadd.f32 %v1400, %v1472
      %v1479 = vadd.f32 %v1401, %v1474
      %1480 = vrot.lane.b32.xlu0 %v1039, 113
      %v1481 = vpop.permute.xlu0 %1480
      %1482 = vrot.lane.b32.xlu0 %v1041, 113
      %v1483 = vpop.permute.xlu0 %1482
      %1484 = vrot.lane.b32.xlu0 %v1040, 113
      %v1485 = vpop.permute.xlu0 %1484
      %1486 = vrot.lane.b32.xlu0 %v1042, 113
      %v1487 = vpop.permute.xlu0 %1486
      %v1488 = vsel %vm737, %v1481, %v1485
      %v1489 = vsel %vm737, %v1483, %v1487
      %v1490 = vsel %vm737, %v1485, %v1481
      %v1491 = vsel %vm737, %v1487, %v1483
      %v1492 = vld [vmem:[%s740] sm:$0x3]
      %v1494 = vlaneseq
      %v1495 = vshrl.u32 %v1494, 7
      %v1496 = vsub.s32 0, %v1495
      %v1497 = vrot.slane %v1492, %v1496
      %v1498 = vlaneseq
      %v1499 = vshrl.u32 %v1498, 7
      %v1500 = vsub.s32 1, %v1499
      %v1501 = vrot.slane %v1492, %v1500
      %v1504 = vmul.f32 %v1488, %v1497
      %v1505 = vmul.f32 %v1490, %v1501
      %v1506 = vmul.f32 %v1489, %v1497
      %v1507 = vmul.f32 %v1491, %v1501
      %s1508 = scalar_lea.vmem %s4, 60
      %v1509 = vld [vmem:[%s1508] sm:$0xf]
      %v1510 = vpack.c.bf16 %v1506, %v1504
      %v1511 = vpack.c.bf16 %v1507, %v1505
      %v1513 = vsel %vm1107, %v1509, 0
      %1515 = vmatprep.subr.bf16.mxu0 %v1511
      %1516 = vmatpush1.bf16.msra.mxu0 %v1510
      %1517 = vmatprep.subr.bf16.mxu0 0
      %1518 = vmatpush1.bf16.msra.mxu0 0
      %1519 = vmatprep.subr.bf16.mxu0 0
      %1520 = vmatpush1.bf16.msra.mxu0 0
      %1521 = vmatprep.subr.bf16.mxu0 0
      %1522 = vmatpush1.bf16.msra.mxu0 0
      %1523 = vmatprep.subr.bf16.mxu0 0
      %1524 = vmatpush1.bf16.msra.mxu0 0
      %1525 = vmatprep.subr.bf16.mxu0 0
      %1526 = vmatpush1.bf16.msra.mxu0 0
      %1527 = vmatprep.subr.bf16.mxu0 0
      %1528 = vmatpush1.bf16.msra.mxu0 0
      %1529 = vmatprep.subr.bf16.mxu0 0
      %1530 = vmatpush1.bf16.msra.mxu0 0
      %1531 = vmatprep.subr.bf16.mxu0 0
      %1532 = vmatpush1.bf16.msra.mxu0 0
      %1533 = vmatprep.subr.bf16.mxu0 0
      %1534 = vmatpush1.bf16.msra.mxu0 0
      %1535 = vmatprep.subr.bf16.mxu0 0
      %1536 = vmatpush1.bf16.msra.mxu0 0
      %1537 = vmatprep.subr.bf16.mxu0 0
      %1538 = vmatpush1.bf16.msra.mxu0 0
      %1539 = vmatprep.subr.bf16.mxu0 0
      %1540 = vmatpush1.bf16.msra.mxu0 0
      %1541 = vmatprep.subr.bf16.mxu0 0
      %1542 = vmatpush1.bf16.msra.mxu0 0
      %1543 = vmatprep.subr.bf16.mxu0 0
      %1544 = vmatpush1.bf16.msra.mxu0 0
      %1545 = vmatprep.subr.bf16.mxu0 0
      %1546 = vmatpush1.bf16.msra.mxu0 0
      %1547 = vmatprep.mubr.bf16.mxu0 0
      %1548 = vmatmul.mubr.bf16.gmra.mrb[0].mxu0 %v1513
      %v1549 = vpop.f32.mrb[0].mxu0
      %v1550 = vadd.f32 0.0, %v1549
      %v1551 = vpop.f32.mrb[0].mxu0
      %v1552 = vadd.f32 0.0, %v1551
      %v1553 = vpop.f32.mrb[0].mxu0
      %v1554 = vpop.f32.mrb[0].mxu0
      %1555 = vdwg.mxu0
      %v1556 = vadd.f32 %v1478, %v1550
      %v1557 = vadd.f32 %v1479, %v1552
      %1558 = vrot.lane.b32.xlu0 %v1039, 112
      %v1559 = vpop.permute.xlu0 %1558
      %1560 = vrot.lane.b32.xlu0 %v1041, 112
      %v1561 = vpop.permute.xlu0 %1560
      %1562 = vrot.lane.b32.xlu0 %v1040, 112
      %v1563 = vpop.permute.xlu0 %1562
      %1564 = vrot.lane.b32.xlu0 %v1042, 112
      %v1565 = vpop.permute.xlu0 %1564
      %v1566 = vsel %vm815, %v1559, %v1563
      %v1567 = vsel %vm815, %v1561, %v1565
      %v1568 = vsel %vm815, %v1563, %v1559
      %v1569 = vsel %vm815, %v1565, %v1561
      %v1570 = vld [vmem:[%s818] sm:$0x3]
      %v1572 = vlaneseq
      %v1573 = vshrl.u32 %v1572, 7
      %v1574 = vsub.s32 0, %v1573
      %v1575 = vrot.slane %v1570, %v1574
      %v1576 = vlaneseq
      %v1577 = vshrl.u32 %v1576, 7
      %v1578 = vsub.s32 1, %v1577
      %v1579 = vrot.slane %v1570, %v1578
      %v1582 = vmul.f32 %v1566, %v1575
      %v1583 = vmul.f32 %v1568, %v1579
      %v1584 = vmul.f32 %v1567, %v1575
      %v1585 = vmul.f32 %v1569, %v1579
      %s1586 = scalar_lea.vmem %s4, 64
      %v1587 = vld [vmem:[%s1586] sm:$0xf]
      %v1588 = vpack.c.bf16 %v1584, %v1582
      %v1589 = vpack.c.bf16 %v1585, %v1583
      %v1591 = vsel %vm1107, %v1587, 0
      %1593 = vmatprep.subr.bf16.mxu0 %v1589
      %1594 = vmatpush1.bf16.msra.mxu0 %v1588
      %1595 = vmatprep.subr.bf16.mxu0 0
      %1596 = vmatpush1.bf16.msra.mxu0 0
      %1597 = vmatprep.subr.bf16.mxu0 0
      %1598 = vmatpush1.bf16.msra.mxu0 0
      %1599 = vmatprep.subr.bf16.mxu0 0
      %1600 = vmatpush1.bf16.msra.mxu0 0
      %1601 = vmatprep.subr.bf16.mxu0 0
      %1602 = vmatpush1.bf16.msra.mxu0 0
      %1603 = vmatprep.subr.bf16.mxu0 0
      %1604 = vmatpush1.bf16.msra.mxu0 0
      %1605 = vmatprep.subr.bf16.mxu0 0
      %1606 = vmatpush1.bf16.msra.mxu0 0
      %1607 = vmatprep.subr.bf16.mxu0 0
      %1608 = vmatpush1.bf16.msra.mxu0 0
      %1609 = vmatprep.subr.bf16.mxu0 0
      %1610 = vmatpush1.bf16.msra.mxu0 0
      %1611 = vmatprep.subr.bf16.mxu0 0
      %1612 = vmatpush1.bf16.msra.mxu0 0
      %1613 = vmatprep.subr.bf16.mxu0 0
      %1614 = vmatpush1.bf16.msra.mxu0 0
      %1615 = vmatprep.subr.bf16.mxu0 0
      %1616 = vmatpush1.bf16.msra.mxu0 0
      %1617 = vmatprep.subr.bf16.mxu0 0
      %1618 = vmatpush1.bf16.msra.mxu0 0
      %1619 = vmatprep.subr.bf16.mxu0 0
      %1620 = vmatpush1.bf16.msra.mxu0 0
      %1621 = vmatprep.subr.bf16.mxu0 0
      %1622 = vmatpush1.bf16.msra.mxu0 0
      %1623 = vmatprep.subr.bf16.mxu0 0
      %1624 = vmatpush1.bf16.msra.mxu0 0
      %1625 = vmatprep.mubr.bf16.mxu0 0
      %1626 = vmatmul.mubr.bf16.gmra.mrb[0].mxu0 %v1591
      %v1627 = vpop.f32.mrb[0].mxu0
      %v1628 = vadd.f32 0.0, %v1627
      %v1629 = vpop.f32.mrb[0].mxu0
      %v1630 = vadd.f32 0.0, %v1629
      %v1631 = vpop.f32.mrb[0].mxu0
      %v1632 = vpop.f32.mrb[0].mxu0
      %1633 = vdwg.mxu0
      %v1634 = vadd.f32 %v1556, %v1628
      %v1635 = vadd.f32 %v1557, %v1630
      %1636 = vrot.lane.b32.xlu0 %v1039, 111
      %v1637 = vpop.permute.xlu0 %1636
      %1638 = vrot.lane.b32.xlu0 %v1041, 111
      %v1639 = vpop.permute.xlu0 %1638
      %1640 = vrot.lane.b32.xlu0 %v1040, 111
      %v1641 = vpop.permute.xlu0 %1640
      %1642 = vrot.lane.b32.xlu0 %v1042, 111
      %v1643 = vpop.permute.xlu0 %1642
      %v1644 = vsel %vm893, %v1637, %v1641
      %v1645 = vsel %vm893, %v1639, %v1643
      %v1646 = vsel %vm893, %v1641, %v1637
      %v1647 = vsel %vm893, %v1643, %v1639
      %v1648 = vld [vmem:[%s896] sm:$0x3]
      %v1650 = vlaneseq
      %v1651 = vshrl.u32 %v1650, 7
      %v1652 = vsub.s32 0, %v1651
      %v1653 = vrot.slane %v1648, %v1652
      %v1654 = vlaneseq
      %v1655 = vshrl.u32 %v1654, 7
      %v1656 = vsub.s32 1, %v1655
      %v1657 = vrot.slane %v1648, %v1656
      %v1660 = vmul.f32 %v1644, %v1653
      %v1661 = vmul.f32 %v1646, %v1657
      %v1662 = vmul.f32 %v1645, %v1653
      %v1663 = vmul.f32 %v1647, %v1657
      %s1664 = scalar_lea.vmem %s4, 68
      %v1665 = vld [vmem:[%s1664] sm:$0xf]
      %v1666 = vpack.c.bf16 %v1662, %v1660
      %v1667 = vpack.c.bf16 %v1663, %v1661
      %v1669 = vsel %vm1107, %v1665, 0
      %1671 = vmatprep.subr.bf16.mxu0 %v1667
      %1672 = vmatpush1.bf16.msra.mxu0 %v1666
      %1673 = vmatprep.subr.bf16.mxu0 0
      %1674 = vmatpush1.bf16.msra.mxu0 0
      %1675 = vmatprep.subr.bf16.mxu0 0
      %1676 = vmatpush1.bf16.msra.mxu0 0
      %1677 = vmatprep.subr.bf16.mxu0 0
      %1678 = vmatpush1.bf16.msra.mxu0 0
      %1679 = vmatprep.subr.bf16.mxu0 0
      %1680 = vmatpush1.bf16.msra.mxu0 0
      %1681 = vmatprep.subr.bf16.mxu0 0
      %1682 = vmatpush1.bf16.msra.mxu0 0
      %1683 = vmatprep.subr.bf16.mxu0 0
      %1684 = vmatpush1.bf16.msra.mxu0 0
      %1685 = vmatprep.subr.bf16.mxu0 0
      %1686 = vmatpush1.bf16.msra.mxu0 0
      %1687 = vmatprep.subr.bf16.mxu0 0
      %1688 = vmatpush1.bf16.msra.mxu0 0
      %1689 = vmatprep.subr.bf16.mxu0 0
      %1690 = vmatpush1.bf16.msra.mxu0 0
      %1691 = vmatprep.subr.bf16.mxu0 0
      %1692 = vmatpush1.bf16.msra.mxu0 0
      %1693 = vmatprep.subr.bf16.mxu0 0
      %1694 = vmatpush1.bf16.msra.mxu0 0
      %1695 = vmatprep.subr.bf16.mxu0 0
      %1696 = vmatpush1.bf16.msra.mxu0 0
      %1697 = vmatprep.subr.bf16.mxu0 0
      %1698 = vmatpush1.bf16.msra.mxu0 0
      %1699 = vmatprep.subr.bf16.mxu0 0
      %1700 = vmatpush1.bf16.msra.mxu0 0
      %1701 = vmatprep.subr.bf16.mxu0 0
      %1702 = vmatpush1.bf16.msra.mxu0 0
      %1703 = vmatprep.mubr.bf16.mxu0 0
      %1704 = vmatmul.mubr.bf16.gmra.mrb[0].mxu0 %v1669
      %v1705 = vpop.f32.mrb[0].mxu0
      %v1706 = vadd.f32 0.0, %v1705
      %v1707 = vpop.f32.mrb[0].mxu0
      %v1708 = vadd.f32 0.0, %v1707
      %v1709 = vpop.f32.mrb[0].mxu0
      %v1710 = vpop.f32.mrb[0].mxu0
      %1711 = vdwg.mxu0
      %v1712 = vadd.f32 %v1634, %v1706
      %v1713 = vadd.f32 %v1635, %v1708
      %s1714 = scalar_lea.vmem %s5, 8
      %v1715 = vld [vmem:[%s1714] sm:$0xff]
      %1717 = vset.pattern.permute.xlu0 0
      %1718 = vperm.xlu0 %1717, %v1715
      %v1719 = vpop.permute.xlu0 %1718
      %v1721 = vadd.f32 %v1712, %v1719
      %v1722 = vadd.f32 %v1713, %v1719
      %1723 = vst [vmem:[%s251 + $0x20] sm:$0xff] %v1721
      %1724 = vst [vmem:[%s251 + $0x28] sm:$0xff] %v1722
      %v1725 = vld [vmem:[%s251] sm:$0xff]
      %v1726 = vld [vmem:[%s251 + $0x8] sm:$0xff]
      %v1727 = vld [vmem:[%s251 + $0x10] sm:$0xff]
      %v1728 = vld [vmem:[%s251 + $0x18] sm:$0xff]
      %v1729 = vld [vmem:[%s251 + $0x20] sm:$0xff]
      %v1730 = vld [vmem:[%s251 + $0x28] sm:$0xff]
      %s1731 = scalar_lea.vmem %s2, 64
      %v1732 = vld [vmem:[%s1731] sm:$0xff]
      %v1733 = vld [vmem:[%s1731 + $0x8] sm:$0xff]
      %v1734 = vld [vmem:[%s1731 + $0x10] sm:$0xff]
      %1736 = vset.pattern.permute.xlu0 0
      %1737 = vperm.xlu0 %1736, %v1732
      %v1738 = vpop.permute.xlu0 %1737
      %1741 = vset.pattern.permute.xlu0 0
      %1742 = vperm.xlu0 %1741, %v1733
      %v1743 = vpop.permute.xlu0 %1742
      %1746 = vset.pattern.permute.xlu0 0
      %1747 = vperm.xlu0 %1746, %v1734
      %v1748 = vpop.permute.xlu0 %1747
      %v1750 = vmul.f32 %v1725, %v1738
      %v1751 = vmul.f32 %v1726, %v1738
      %v1752 = vmul.f32 %v1727, %v1743
      %v1753 = vmul.f32 %v1728, %v1743
      %v1754 = vmul.f32 %v1729, %v1748
      %v1755 = vmul.f32 %v1730, %v1748
      %s1756 = scalar_lea.vmem %s3, 64
      %v1757 = vld [vmem:[%s1756] sm:$0xff]
      %v1758 = vld [vmem:[%s1756 + $0x8] sm:$0xff]
      %v1759 = vld [vmem:[%s1756 + $0x10] sm:$0xff]
      %1761 = vset.pattern.permute.xlu0 0
      %1762 = vperm.xlu0 %1761, %v1757
      %v1763 = vpop.permute.xlu0 %1762
      %1766 = vset.pattern.permute.xlu0 0
      %1767 = vperm.xlu0 %1766, %v1758
      %v1768 = vpop.permute.xlu0 %1767
      %1771 = vset.pattern.permute.xlu0 0
      %1772 = vperm.xlu0 %1771, %v1759
      %v1773 = vpop.permute.xlu0 %1772
      %v1775 = vadd.f32 %v1750, %v1763
      %v1776 = vadd.f32 %v1751, %v1763
      %v1777 = vadd.f32 %v1752, %v1768
      %v1778 = vadd.f32 %v1753, %v1768
      %v1779 = vadd.f32 %v1754, %v1773
      %v1780 = vadd.f32 %v1755, %v1773
      %v1781 = vxor.u32 %v1775, 2147483648
      %v1782 = vxor.u32 %v1776, 2147483648
      %v1783 = vxor.u32 %v1777, 2147483648
      %v1784 = vxor.u32 %v1778, 2147483648
      %v1785 = vxor.u32 %v1779, 2147483648
      %v1786 = vxor.u32 %v1780, 2147483648
      %v1787 = vmul.f32 %v1781, 1.442695
      %v1788 = vpow.pop %v1787
      %v1789 = vmul.f32 %v1782, 1.442695
      %v1790 = vpow.pop %v1789
      %v1791 = vmul.f32 %v1783, 1.442695
      %v1792 = vpow.pop %v1791
      %v1793 = vmul.f32 %v1784, 1.442695
      %v1794 = vpow.pop %v1793
      %v1795 = vmul.f32 %v1785, 1.442695
      %v1796 = vpow.pop %v1795
      %v1797 = vmul.f32 %v1786, 1.442695
      %v1798 = vpow.pop %v1797
      %v1799 = vadd.f32 %v1788, 1.0
      %v1800 = vadd.f32 %v1790, 1.0
      %v1801 = vadd.f32 %v1792, 1.0
      %v1802 = vadd.f32 %v1794, 1.0
      %v1803 = vadd.f32 %v1796, 1.0
      %v1804 = vadd.f32 %v1798, 1.0
      %v1805 = vrcp.pop %v1799
      %v1806 = vmul.f32 1.0, %v1805
      %v1807 = vrcp.pop %v1800
      %v1808 = vmul.f32 1.0, %v1807
      %v1809 = vrcp.pop %v1801
      %v1810 = vmul.f32 1.0, %v1809
      %v1811 = vrcp.pop %v1802
      %v1812 = vmul.f32 1.0, %v1811
      %v1813 = vrcp.pop %v1803
      %v1814 = vmul.f32 1.0, %v1813
      %v1815 = vrcp.pop %v1804
      %v1816 = vmul.f32 1.0, %v1815
      %v1817 = vmul.f32 %v1775, %v1806
      %v1818 = vmul.f32 %v1776, %v1808
      %v1819 = vmul.f32 %v1777, %v1810
      %v1820 = vmul.f32 %v1778, %v1812
      %v1821 = vmul.f32 %v1779, %v1814
      %v1822 = vmul.f32 %v1780, %v1816
      %1823 = vrot.lane.b32.xlu0 %v1817, 17
      %v1824 = vpop.permute.xlu0 %1823
      %1825 = vrot.lane.b32.xlu0 %v1819, 17
      %v1826 = vpop.permute.xlu0 %1825
      %1827 = vrot.lane.b32.xlu0 %v1821, 17
      %v1828 = vpop.permute.xlu0 %1827
      %1829 = vrot.lane.b32.xlu0 %v1818, 17
      %v1830 = vpop.permute.xlu0 %1829
      %1831 = vrot.lane.b32.xlu0 %v1820, 17
      %v1832 = vpop.permute.xlu0 %1831
      %1833 = vrot.lane.b32.xlu0 %v1822, 17
      %v1834 = vpop.permute.xlu0 %1833
      %v1835 = vsel %vm295, %v1824, %v1830
      %v1836 = vsel %vm295, %v1826, %v1832
      %v1837 = vsel %vm295, %v1828, %v1834
      %v1838 = vsel %vm295, %v1830, %v1824
      %v1839 = vsel %vm295, %v1832, %v1826
      %v1840 = vsel %vm295, %v1834, %v1828
      %v1841 = vld [vmem:[%s1] sm:$0x3]
      %v1843 = vlaneseq
      %v1844 = vshrl.u32 %v1843, 7
      %v1845 = vsub.s32 0, %v1844
      %v1846 = vrot.slane %v1841, %v1845
      %v1847 = vlaneseq
      %v1848 = vshrl.u32 %v1847, 7
      %v1849 = vsub.s32 1, %v1848
      %v1850 = vrot.slane %v1841, %v1849
      %v1853 = vmul.f32 %v1838, %v1846
      %v1854 = vmul.f32 %v1835, %v1850
      %v1855 = vmul.f32 %v1839, %v1846
      %v1856 = vmul.f32 %v1836, %v1850
      %v1857 = vmul.f32 %v1840, %v1846
      %v1858 = vmul.f32 %v1837, %v1850
      %s1859 = scalar_lea.vmem %s4, 72
      %v1860 = vld [vmem:[%s1859] sm:$0xf]
      %v1861 = vpack.c.bf16 %v1855, %v1853
      %v1862 = vpack.c.bf16 %v1856, %v1854
      %v1863 = vpack.c.bf16 %v1857, %v1857
      %v1864 = vpack.c.bf16 %v1858, %v1858
      %1865 = vrot.lane.b32.xlu0 %v1817, 16
      %v1866 = vpop.permute.xlu0 %1865
      %1867 = vrot.lane.b32.xlu0 %v1819, 16
      %v1868 = vpop.permute.xlu0 %1867
      %1869 = vrot.lane.b32.xlu0 %v1821, 16
      %v1870 = vpop.permute.xlu0 %1869
      %1871 = vrot.lane.b32.xlu0 %v1818, 16
      %v1872 = vpop.permute.xlu0 %1871
      %1873 = vrot.lane.b32.xlu0 %v1820, 16
      %v1874 = vpop.permute.xlu0 %1873
      %1875 = vrot.lane.b32.xlu0 %v1822, 16
      %v1876 = vpop.permute.xlu0 %1875
      %v1877 = vsel %vm319, %v1866, %v1872
      %v1878 = vsel %vm319, %v1868, %v1874
      %v1879 = vsel %vm319, %v1870, %v1876
      %v1880 = vsel %vm319, %v1872, %v1866
      %v1881 = vsel %vm319, %v1874, %v1868
      %v1882 = vsel %vm319, %v1876, %v1870
      %v1883 = vld [vmem:[%s322] sm:$0x3]
      %v1885 = vlaneseq
      %v1886 = vshrl.u32 %v1885, 7
      %v1887 = vsub.s32 0, %v1886
      %v1888 = vrot.slane %v1883, %v1887
      %v1889 = vlaneseq
      %v1890 = vshrl.u32 %v1889, 7
      %v1891 = vsub.s32 1, %v1890
      %v1892 = vrot.slane %v1883, %v1891
      %v1895 = vmul.f32 %v1880, %v1888
      %v1896 = vmul.f32 %v1877, %v1892
      %v1897 = vmul.f32 %v1881, %v1888
      %v1898 = vmul.f32 %v1878, %v1892
      %v1899 = vmul.f32 %v1882, %v1888
      %v1900 = vmul.f32 %v1879, %v1892
      %s1901 = scalar_lea.vmem %s4, 76
      %v1902 = vld [vmem:[%s1901] sm:$0xf]
      %v1903 = vpack.c.bf16 %v1897, %v1895
      %v1904 = vpack.c.bf16 %v1898, %v1896
      %v1905 = vpack.c.bf16 %v1899, %v1899
      %v1906 = vpack.c.bf16 %v1900, %v1900
      %vm1907 = vcmask 195584
      %v1909 = vsel %vm1907, %v1902, 0
      %v1912 = vsel %vm345, %v1905, 0
      %v1915 = vsel %vm345, %v1906, 0
      %1917 = vmatprep.subr.bf16.mxu0 %v1904
      %1918 = vmatpush1.bf16.msra.mxu0 %v1903
      %1919 = vmatprep.subr.bf16.mxu0 %v1915
      %1920 = vmatpush1.bf16.msra.mxu0 %v1912
      %1921 = vmatprep.subr.bf16.mxu0 0
      %1922 = vmatpush1.bf16.msra.mxu0 0
      %1923 = vmatprep.subr.bf16.mxu0 0
      %1924 = vmatpush1.bf16.msra.mxu0 0
      %1925 = vmatprep.subr.bf16.mxu0 0
      %1926 = vmatpush1.bf16.msra.mxu0 0
      %1927 = vmatprep.subr.bf16.mxu0 0
      %1928 = vmatpush1.bf16.msra.mxu0 0
      %1929 = vmatprep.subr.bf16.mxu0 0
      %1930 = vmatpush1.bf16.msra.mxu0 0
      %1931 = vmatprep.subr.bf16.mxu0 0
      %1932 = vmatpush1.bf16.msra.mxu0 0
      %1933 = vmatprep.subr.bf16.mxu0 0
      %1934 = vmatpush1.bf16.msra.mxu0 0
      %1935 = vmatprep.subr.bf16.mxu0 0
      %1936 = vmatpush1.bf16.msra.mxu0 0
      %1937 = vmatprep.subr.bf16.mxu0 0
      %1938 = vmatpush1.bf16.msra.mxu0 0
      %1939 = vmatprep.subr.bf16.mxu0 0
      %1940 = vmatpush1.bf16.msra.mxu0 0
      %1941 = vmatprep.subr.bf16.mxu0 0
      %1942 = vmatpush1.bf16.msra.mxu0 0
      %1943 = vmatprep.subr.bf16.mxu0 0
      %1944 = vmatpush1.bf16.msra.mxu0 0
      %1945 = vmatprep.subr.bf16.mxu0 0
      %1946 = vmatpush1.bf16.msra.mxu0 0
      %1947 = vmatprep.subr.bf16.mxu0 0
      %1948 = vmatpush1.bf16.msra.mxu0 0
      %1949 = vmatprep.mubr.bf16.mxu0 0
      %1950 = vmatmul.mubr.bf16.gmra.mrb[0].mxu0 %v1909
      %v1951 = vpop.f32.mrb[0].mxu0
      %v1952 = vadd.f32 0.0, %v1951
      %v1953 = vpop.f32.mrb[0].mxu0
      %v1954 = vadd.f32 0.0, %v1953
      %v1955 = vpop.f32.mrb[0].mxu0
      %v1956 = vpop.f32.mrb[0].mxu0
      %1957 = vdwg.mxu0
      %v1959 = vsel %vm1907, %v1860, 0
      %v1962 = vsel %vm345, %v1863, 0
      %v1965 = vsel %vm345, %v1864, 0
      %1967 = vmatprep.subr.bf16.mxu0 %v1862
      %1968 = vmatpush1.bf16.msra.mxu0 %v1861
      %1969 = vmatprep.subr.bf16.mxu0 %v1965
      %1970 = vmatpush1.bf16.msra.mxu0 %v1962
      %1971 = vmatprep.subr.bf16.mxu0 0
      %1972 = vmatpush1.bf16.msra.mxu0 0
      %1973 = vmatprep.subr.bf16.mxu0 0
      %1974 = vmatpush1.bf16.msra.mxu0 0
      %1975 = vmatprep.subr.bf16.mxu0 0
      %1976 = vmatpush1.bf16.msra.mxu0 0
      %1977 = vmatprep.subr.bf16.mxu0 0
      %1978 = vmatpush1.bf16.msra.mxu0 0
      %1979 = vmatprep.subr.bf16.mxu0 0
      %1980 = vmatpush1.bf16.msra.mxu0 0
      %1981 = vmatprep.subr.bf16.mxu0 0
      %1982 = vmatpush1.bf16.msra.mxu0 0
      %1983 = vmatprep.subr.bf16.mxu0 0
      %1984 = vmatpush1.bf16.msra.mxu0 0
      %1985 = vmatprep.subr.bf16.mxu0 0
      %1986 = vmatpush1.bf16.msra.mxu0 0
      %1987 = vmatprep.subr.bf16.mxu0 0
      %1988 = vmatpush1.bf16.msra.mxu0 0
      %1989 = vmatprep.subr.bf16.mxu0 0
      %1990 = vmatpush1.bf16.msra.mxu0 0
      %1991 = vmatprep.subr.bf16.mxu0 0
      %1992 = vmatpush1.bf16.msra.mxu0 0
      %1993 = vmatprep.subr.bf16.mxu0 0
      %1994 = vmatpush1.bf16.msra.mxu0 0
      %1995 = vmatprep.subr.bf16.mxu0 0
      %1996 = vmatpush1.bf16.msra.mxu0 0
      %1997 = vmatprep.subr.bf16.mxu0 0
      %1998 = vmatpush1.bf16.msra.mxu0 0
      %1999 = vmatprep.mubr.bf16.mxu0 0
      %2000 = vmatmul.mubr.bf16.gmra.mrb[0].mxu0 %v1959
      %v2001 = vpop.f32.mrb[0].mxu0
      %v2002 = vadd.f32 %v1952, %v2001
      %v2003 = vpop.f32.mrb[0].mxu0
      %v2004 = vadd.f32 %v1954, %v2003
      %v2005 = vpop.f32.mrb[0].mxu0
      %v2006 = vpop.f32.mrb[0].mxu0
      %2007 = vdwg.mxu0
      %2008 = vrot.lane.b32.xlu0 %v1817, 15
      %v2009 = vpop.permute.xlu0 %2008
      %2010 = vrot.lane.b32.xlu0 %v1819, 15
      %v2011 = vpop.permute.xlu0 %2010
      %2012 = vrot.lane.b32.xlu0 %v1821, 15
      %v2013 = vpop.permute.xlu0 %2012
      %2014 = vrot.lane.b32.xlu0 %v1818, 15
      %v2015 = vpop.permute.xlu0 %2014
      %2016 = vrot.lane.b32.xlu0 %v1820, 15
      %v2017 = vpop.permute.xlu0 %2016
      %2018 = vrot.lane.b32.xlu0 %v1822, 15
      %v2019 = vpop.permute.xlu0 %2018
      %v2020 = vsel %vm447, %v2009, %v2015
      %v2021 = vsel %vm447, %v2011, %v2017
      %v2022 = vsel %vm447, %v2013, %v2019
      %v2023 = vsel %vm447, %v2015, %v2009
      %v2024 = vsel %vm447, %v2017, %v2011
      %v2025 = vsel %vm447, %v2019, %v2013
      %v2026 = vld [vmem:[%s450] sm:$0x3]
      %v2028 = vlaneseq
      %v2029 = vshrl.u32 %v2028, 7
      %v2030 = vsub.s32 0, %v2029
      %v2031 = vrot.slane %v2026, %v2030
      %v2032 = vlaneseq
      %v2033 = vshrl.u32 %v2032, 7
      %v2034 = vsub.s32 1, %v2033
      %v2035 = vrot.slane %v2026, %v2034
      %v2038 = vmul.f32 %v2023, %v2031
      %v2039 = vmul.f32 %v2020, %v2035
      %v2040 = vmul.f32 %v2024, %v2031
      %v2041 = vmul.f32 %v2021, %v2035
      %v2042 = vmul.f32 %v2025, %v2031
      %v2043 = vmul.f32 %v2022, %v2035
      %s2044 = scalar_lea.vmem %s4, 80
      %v2045 = vld [vmem:[%s2044] sm:$0xf]
      %v2046 = vpack.c.bf16 %v2040, %v2038
      %v2047 = vpack.c.bf16 %v2041, %v2039
      %v2048 = vpack.c.bf16 %v2042, %v2042
      %v2049 = vpack.c.bf16 %v2043, %v2043
      %v2051 = vsel %vm1907, %v2045, 0
      %v2054 = vsel %vm345, %v2048, 0
      %v2057 = vsel %vm345, %v2049, 0
      %2059 = vmatprep.subr.bf16.mxu0 %v2047
      %2060 = vmatpush1.bf16.msra.mxu0 %v2046
      %2061 = vmatprep.subr.bf16.mxu0 %v2057
      %2062 = vmatpush1.bf16.msra.mxu0 %v2054
      %2063 = vmatprep.subr.bf16.mxu0 0
      %2064 = vmatpush1.bf16.msra.mxu0 0
      %2065 = vmatprep.subr.bf16.mxu0 0
      %2066 = vmatpush1.bf16.msra.mxu0 0
      %2067 = vmatprep.subr.bf16.mxu0 0
      %2068 = vmatpush1.bf16.msra.mxu0 0
      %2069 = vmatprep.subr.bf16.mxu0 0
      %2070 = vmatpush1.bf16.msra.mxu0 0
      %2071 = vmatprep.subr.bf16.mxu0 0
      %2072 = vmatpush1.bf16.msra.mxu0 0
      %2073 = vmatprep.subr.bf16.mxu0 0
      %2074 = vmatpush1.bf16.msra.mxu0 0
      %2075 = vmatprep.subr.bf16.mxu0 0
      %2076 = vmatpush1.bf16.msra.mxu0 0
      %2077 = vmatprep.subr.bf16.mxu0 0
      %2078 = vmatpush1.bf16.msra.mxu0 0
      %2079 = vmatprep.subr.bf16.mxu0 0
      %2080 = vmatpush1.bf16.msra.mxu0 0
      %2081 = vmatprep.subr.bf16.mxu0 0
      %2082 = vmatpush1.bf16.msra.mxu0 0
      %2083 = vmatprep.subr.bf16.mxu0 0
      %2084 = vmatpush1.bf16.msra.mxu0 0
      %2085 = vmatprep.subr.bf16.mxu0 0
      %2086 = vmatpush1.bf16.msra.mxu0 0
      %2087 = vmatprep.subr.bf16.mxu0 0
      %2088 = vmatpush1.bf16.msra.mxu0 0
      %2089 = vmatprep.subr.bf16.mxu0 0
      %2090 = vmatpush1.bf16.msra.mxu0 0
      %2091 = vmatprep.mubr.bf16.mxu0 0
      %2092 = vmatmul.mubr.bf16.gmra.mrb[0].mxu0 %v2051
      %v2093 = vpop.f32.mrb[0].mxu0
      %v2094 = vadd.f32 0.0, %v2093
      %v2095 = vpop.f32.mrb[0].mxu0
      %v2096 = vadd.f32 0.0, %v2095
      %v2097 = vpop.f32.mrb[0].mxu0
      %v2098 = vpop.f32.mrb[0].mxu0
      %2099 = vdwg.mxu0
      %v2100 = vadd.f32 %v2002, %v2094
      %v2101 = vadd.f32 %v2004, %v2096
      %2102 = vrot.lane.b32.xlu0 %v1817, 1
      %v2103 = vpop.permute.xlu0 %2102
      %2104 = vrot.lane.b32.xlu0 %v1819, 1
      %v2105 = vpop.permute.xlu0 %2104
      %2106 = vrot.lane.b32.xlu0 %v1821, 1
      %v2107 = vpop.permute.xlu0 %2106
      %2108 = vrot.lane.b32.xlu0 %v1818, 1
      %v2109 = vpop.permute.xlu0 %2108
      %2110 = vrot.lane.b32.xlu0 %v1820, 1
      %v2111 = vpop.permute.xlu0 %2110
      %2112 = vrot.lane.b32.xlu0 %v1822, 1
      %v2113 = vpop.permute.xlu0 %2112
      %v2114 = vsel %vm525, %v2103, %v2109
      %v2115 = vsel %vm525, %v2105, %v2111
      %v2116 = vsel %vm525, %v2107, %v2113
      %v2117 = vsel %vm525, %v2109, %v2103
      %v2118 = vsel %vm525, %v2111, %v2105
      %v2119 = vsel %vm525, %v2113, %v2107
      %v2120 = vld [vmem:[%s528] sm:$0x3]
      %v2122 = vlaneseq
      %v2123 = vshrl.u32 %v2122, 7
      %v2124 = vsub.s32 0, %v2123
      %v2125 = vrot.slane %v2120, %v2124
      %v2126 = vlaneseq
      %v2127 = vshrl.u32 %v2126, 7
      %v2128 = vsub.s32 1, %v2127
      %v2129 = vrot.slane %v2120, %v2128
      %v2132 = vmul.f32 %v2117, %v2125
      %v2133 = vmul.f32 %v2114, %v2129
      %v2134 = vmul.f32 %v2118, %v2125
      %v2135 = vmul.f32 %v2115, %v2129
      %v2136 = vmul.f32 %v2119, %v2125
      %v2137 = vmul.f32 %v2116, %v2129
      %s2138 = scalar_lea.vmem %s4, 84
      %v2139 = vld [vmem:[%s2138] sm:$0xf]
      %v2140 = vpack.c.bf16 %v2134, %v2132
      %v2141 = vpack.c.bf16 %v2135, %v2133
      %v2142 = vpack.c.bf16 %v2136, %v2136
      %v2143 = vpack.c.bf16 %v2137, %v2137
      %v2145 = vsel %vm1907, %v2139, 0
      %v2148 = vsel %vm345, %v2142, 0
      %v2151 = vsel %vm345, %v2143, 0
      %2153 = vmatprep.subr.bf16.mxu0 %v2141
      %2154 = vmatpush1.bf16.msra.mxu0 %v2140
      %2155 = vmatprep.subr.bf16.mxu0 %v2151
      %2156 = vmatpush1.bf16.msra.mxu0 %v2148
      %2157 = vmatprep.subr.bf16.mxu0 0
      %2158 = vmatpush1.bf16.msra.mxu0 0
      %2159 = vmatprep.subr.bf16.mxu0 0
      %2160 = vmatpush1.bf16.msra.mxu0 0
      %2161 = vmatprep.subr.bf16.mxu0 0
      %2162 = vmatpush1.bf16.msra.mxu0 0
      %2163 = vmatprep.subr.bf16.mxu0 0
      %2164 = vmatpush1.bf16.msra.mxu0 0
      %2165 = vmatprep.subr.bf16.mxu0 0
      %2166 = vmatpush1.bf16.msra.mxu0 0
      %2167 = vmatprep.subr.bf16.mxu0 0
      %2168 = vmatpush1.bf16.msra.mxu0 0
      %2169 = vmatprep.subr.bf16.mxu0 0
      %2170 = vmatpush1.bf16.msra.mxu0 0
      %2171 = vmatprep.subr.bf16.mxu0 0
      %2172 = vmatpush1.bf16.msra.mxu0 0
      %2173 = vmatprep.subr.bf16.mxu0 0
      %2174 = vmatpush1.bf16.msra.mxu0 0
      %2175 = vmatprep.subr.bf16.mxu0 0
      %2176 = vmatpush1.bf16.msra.mxu0 0
      %2177 = vmatprep.subr.bf16.mxu0 0
      %2178 = vmatpush1.bf16.msra.mxu0 0
      %2179 = vmatprep.subr.bf16.mxu0 0
      %2180 = vmatpush1.bf16.msra.mxu0 0
      %2181 = vmatprep.subr.bf16.mxu0 0
      %2182 = vmatpush1.bf16.msra.mxu0 0
      %2183 = vmatprep.subr.bf16.mxu0 0
      %2184 = vmatpush1.bf16.msra.mxu0 0
      %2185 = vmatprep.mubr.bf16.mxu0 0
      %2186 = vmatmul.mubr.bf16.gmra.mrb[0].mxu0 %v2145
      %v2187 = vpop.f32.mrb[0].mxu0
      %v2188 = vadd.f32 0.0, %v2187
      %v2189 = vpop.f32.mrb[0].mxu0
      %v2190 = vadd.f32 0.0, %v2189
      %v2191 = vpop.f32.mrb[0].mxu0
      %v2192 = vpop.f32.mrb[0].mxu0
      %2193 = vdwg.mxu0
      %v2194 = vadd.f32 %v2100, %v2188
      %v2195 = vadd.f32 %v2101, %v2190
      %s2196 = scalar_lea.vmem %s4, 88
      %v2197 = vld [vmem:[%s2196] sm:$0xf]
      %v2198 = vpack.c.bf16 %v1819, %v1817
      %v2199 = vpack.c.bf16 %v1820, %v1818
      %v2200 = vpack.c.bf16 %v1821, %v1821
      %v2201 = vpack.c.bf16 %v1822, %v1822
      %v2203 = vsel %vm1907, %v2197, 0
      %v2206 = vsel %vm345, %v2200, 0
      %v2209 = vsel %vm345, %v2201, 0
      %2211 = vmatprep.subr.bf16.mxu0 %v2199
      %2212 = vmatpush1.bf16.msra.mxu0 %v2198
      %2213 = vmatprep.subr.bf16.mxu0 %v2209
      %2214 = vmatpush1.bf16.msra.mxu0 %v2206
      %2215 = vmatprep.subr.bf16.mxu0 0
      %2216 = vmatpush1.bf16.msra.mxu0 0
      %2217 = vmatprep.subr.bf16.mxu0 0
      %2218 = vmatpush1.bf16.msra.mxu0 0
      %2219 = vmatprep.subr.bf16.mxu0 0
      %2220 = vmatpush1.bf16.msra.mxu0 0
      %2221 = vmatprep.subr.bf16.mxu0 0
      %2222 = vmatpush1.bf16.msra.mxu0 0
      %2223 = vmatprep.subr.bf16.mxu0 0
      %2224 = vmatpush1.bf16.msra.mxu0 0
      %2225 = vmatprep.subr.bf16.mxu0 0
      %2226 = vmatpush1.bf16.msra.mxu0 0
      %2227 = vmatprep.subr.bf16.mxu0 0
      %2228 = vmatpush1.bf16.msra.mxu0 0
      %2229 = vmatprep.subr.bf16.mxu0 0
      %2230 = vmatpush1.bf16.msra.mxu0 0
      %2231 = vmatprep.subr.bf16.mxu0 0
      %2232 = vmatpush1.bf16.msra.mxu0 0
      %2233 = vmatprep.subr.bf16.mxu0 0
      %2234 = vmatpush1.bf16.msra.mxu0 0
      %2235 = vmatprep.subr.bf16.mxu0 0
      %2236 = vmatpush1.bf16.msra.mxu0 0
      %2237 = vmatprep.subr.bf16.mxu0 0
      %2238 = vmatpush1.bf16.msra.mxu0 0
      %2239 = vmatprep.subr.bf16.mxu0 0
      %2240 = vmatpush1.bf16.msra.mxu0 0
      %2241 = vmatprep.subr.bf16.mxu0 0
      %2242 = vmatpush1.bf16.msra.mxu0 0
      %2243 = vmatprep.mubr.bf16.mxu0 0
      %2244 = vmatmul.mubr.bf16.gmra.mrb[0].mxu0 %v2203
      %v2245 = vpop.f32.mrb[0].mxu0
      %v2246 = vadd.f32 0.0, %v2245
      %v2247 = vpop.f32.mrb[0].mxu0
      %v2248 = vadd.f32 0.0, %v2247
      %v2249 = vpop.f32.mrb[0].mxu0
      %v2250 = vpop.f32.mrb[0].mxu0
      %2251 = vdwg.mxu0
      %v2252 = vadd.f32 %v2194, %v2246
      %v2253 = vadd.f32 %v2195, %v2248
      %2254 = vrot.lane.b32.xlu0 %v1817, 127
      %v2255 = vpop.permute.xlu0 %2254
      %2256 = vrot.lane.b32.xlu0 %v1819, 127
      %v2257 = vpop.permute.xlu0 %2256
      %2258 = vrot.lane.b32.xlu0 %v1821, 127
      %v2259 = vpop.permute.xlu0 %2258
      %2260 = vrot.lane.b32.xlu0 %v1818, 127
      %v2261 = vpop.permute.xlu0 %2260
      %2262 = vrot.lane.b32.xlu0 %v1820, 127
      %v2263 = vpop.permute.xlu0 %2262
      %2264 = vrot.lane.b32.xlu0 %v1822, 127
      %v2265 = vpop.permute.xlu0 %2264
      %v2266 = vsel %vm659, %v2255, %v2261
      %v2267 = vsel %vm659, %v2257, %v2263
      %v2268 = vsel %vm659, %v2259, %v2265
      %v2269 = vsel %vm659, %v2261, %v2255
      %v2270 = vsel %vm659, %v2263, %v2257
      %v2271 = vsel %vm659, %v2265, %v2259
      %v2272 = vld [vmem:[%s662] sm:$0x3]
      %v2274 = vlaneseq
      %v2275 = vshrl.u32 %v2274, 7
      %v2276 = vsub.s32 0, %v2275
      %v2277 = vrot.slane %v2272, %v2276
      %v2278 = vlaneseq
      %v2279 = vshrl.u32 %v2278, 7
      %v2280 = vsub.s32 1, %v2279
      %v2281 = vrot.slane %v2272, %v2280
      %v2284 = vmul.f32 %v2266, %v2277
      %v2285 = vmul.f32 %v2269, %v2281
      %v2286 = vmul.f32 %v2267, %v2277
      %v2287 = vmul.f32 %v2270, %v2281
      %v2288 = vmul.f32 %v2268, %v2277
      %v2289 = vmul.f32 %v2271, %v2281
      %s2290 = scalar_lea.vmem %s4, 92
      %v2291 = vld [vmem:[%s2290] sm:$0xf]
      %v2292 = vpack.c.bf16 %v2286, %v2284
      %v2293 = vpack.c.bf16 %v2287, %v2285
      %v2294 = vpack.c.bf16 %v2288, %v2288
      %v2295 = vpack.c.bf16 %v2289, %v2289
      %v2297 = vsel %vm1907, %v2291, 0
      %v2300 = vsel %vm345, %v2294, 0
      %v2303 = vsel %vm345, %v2295, 0
      %2305 = vmatprep.subr.bf16.mxu0 %v2293
      %2306 = vmatpush1.bf16.msra.mxu0 %v2292
      %2307 = vmatprep.subr.bf16.mxu0 %v2303
      %2308 = vmatpush1.bf16.msra.mxu0 %v2300
      %2309 = vmatprep.subr.bf16.mxu0 0
      %2310 = vmatpush1.bf16.msra.mxu0 0
      %2311 = vmatprep.subr.bf16.mxu0 0
      %2312 = vmatpush1.bf16.msra.mxu0 0
      %2313 = vmatprep.subr.bf16.mxu0 0
      %2314 = vmatpush1.bf16.msra.mxu0 0
      %2315 = vmatprep.subr.bf16.mxu0 0
      %2316 = vmatpush1.bf16.msra.mxu0 0
      %2317 = vmatprep.subr.bf16.mxu0 0
      %2318 = vmatpush1.bf16.msra.mxu0 0
      %2319 = vmatprep.subr.bf16.mxu0 0
      %2320 = vmatpush1.bf16.msra.mxu0 0
      %2321 = vmatprep.subr.bf16.mxu0 0
      %2322 = vmatpush1.bf16.msra.mxu0 0
      %2323 = vmatprep.subr.bf16.mxu0 0
      %2324 = vmatpush1.bf16.msra.mxu0 0
      %2325 = vmatprep.subr.bf16.mxu0 0
      %2326 = vmatpush1.bf16.msra.mxu0 0
      %2327 = vmatprep.subr.bf16.mxu0 0
      %2328 = vmatpush1.bf16.msra.mxu0 0
      %2329 = vmatprep.subr.bf16.mxu0 0
      %2330 = vmatpush1.bf16.msra.mxu0 0
      %2331 = vmatprep.subr.bf16.mxu0 0
      %2332 = vmatpush1.bf16.msra.mxu0 0
      %2333 = vmatprep.subr.bf16.mxu0 0
      %2334 = vmatpush1.bf16.msra.mxu0 0
      %2335 = vmatprep.subr.bf16.mxu0 0
      %2336 = vmatpush1.bf16.msra.mxu0 0
      %2337 = vmatprep.mubr.bf16.mxu0 0
      %2338 = vmatmul.mubr.bf16.gmra.mrb[0].mxu0 %v2297
      %v2339 = vpop.f32.mrb[0].mxu0
      %v2340 = vadd.f32 0.0, %v2339
      %v2341 = vpop.f32.mrb[0].mxu0
      %v2342 = vadd.f32 0.0, %v2341
      %v2343 = vpop.f32.mrb[0].mxu0
      %v2344 = vpop.f32.mrb[0].mxu0
      %2345 = vdwg.mxu0
      %v2346 = vadd.f32 %v2252, %v2340
      %v2347 = vadd.f32 %v2253, %v2342
      %2348 = vrot.lane.b32.xlu0 %v1817, 113
      %v2349 = vpop.permute.xlu0 %2348
      %2350 = vrot.lane.b32.xlu0 %v1819, 113
      %v2351 = vpop.permute.xlu0 %2350
      %2352 = vrot.lane.b32.xlu0 %v1821, 113
      %v2353 = vpop.permute.xlu0 %2352
      %2354 = vrot.lane.b32.xlu0 %v1818, 113
      %v2355 = vpop.permute.xlu0 %2354
      %2356 = vrot.lane.b32.xlu0 %v1820, 113
      %v2357 = vpop.permute.xlu0 %2356
      %2358 = vrot.lane.b32.xlu0 %v1822, 113
      %v2359 = vpop.permute.xlu0 %2358
      %v2360 = vsel %vm737, %v2349, %v2355
      %v2361 = vsel %vm737, %v2351, %v2357
      %v2362 = vsel %vm737, %v2353, %v2359
      %v2363 = vsel %vm737, %v2355, %v2349
      %v2364 = vsel %vm737, %v2357, %v2351
      %v2365 = vsel %vm737, %v2359, %v2353
      %v2366 = vld [vmem:[%s740] sm:$0x3]
      %v2368 = vlaneseq
      %v2369 = vshrl.u32 %v2368, 7
      %v2370 = vsub.s32 0, %v2369
      %v2371 = vrot.slane %v2366, %v2370
      %v2372 = vlaneseq
      %v2373 = vshrl.u32 %v2372, 7
      %v2374 = vsub.s32 1, %v2373
      %v2375 = vrot.slane %v2366, %v2374
      %v2378 = vmul.f32 %v2360, %v2371
      %v2379 = vmul.f32 %v2363, %v2375
      %v2380 = vmul.f32 %v2361, %v2371
      %v2381 = vmul.f32 %v2364, %v2375
      %v2382 = vmul.f32 %v2362, %v2371
      %v2383 = vmul.f32 %v2365, %v2375
      %s2384 = scalar_lea.vmem %s4, 96
      %v2385 = vld [vmem:[%s2384] sm:$0xf]
      %v2386 = vpack.c.bf16 %v2380, %v2378
      %v2387 = vpack.c.bf16 %v2381, %v2379
      %v2388 = vpack.c.bf16 %v2382, %v2382
      %v2389 = vpack.c.bf16 %v2383, %v2383
      %v2391 = vsel %vm1907, %v2385, 0
      %v2394 = vsel %vm345, %v2388, 0
      %v2397 = vsel %vm345, %v2389, 0
      %2399 = vmatprep.subr.bf16.mxu0 %v2387
      %2400 = vmatpush1.bf16.msra.mxu0 %v2386
      %2401 = vmatprep.subr.bf16.mxu0 %v2397
      %2402 = vmatpush1.bf16.msra.mxu0 %v2394
      %2403 = vmatprep.subr.bf16.mxu0 0
      %2404 = vmatpush1.bf16.msra.mxu0 0
      %2405 = vmatprep.subr.bf16.mxu0 0
      %2406 = vmatpush1.bf16.msra.mxu0 0
      %2407 = vmatprep.subr.bf16.mxu0 0
      %2408 = vmatpush1.bf16.msra.mxu0 0
      %2409 = vmatprep.subr.bf16.mxu0 0
      %2410 = vmatpush1.bf16.msra.mxu0 0
      %2411 = vmatprep.subr.bf16.mxu0 0
      %2412 = vmatpush1.bf16.msra.mxu0 0
      %2413 = vmatprep.subr.bf16.mxu0 0
      %2414 = vmatpush1.bf16.msra.mxu0 0
      %2415 = vmatprep.subr.bf16.mxu0 0
      %2416 = vmatpush1.bf16.msra.mxu0 0
      %2417 = vmatprep.subr.bf16.mxu0 0
      %2418 = vmatpush1.bf16.msra.mxu0 0
      %2419 = vmatprep.subr.bf16.mxu0 0
      %2420 = vmatpush1.bf16.msra.mxu0 0
      %2421 = vmatprep.subr.bf16.mxu0 0
      %2422 = vmatpush1.bf16.msra.mxu0 0
      %2423 = vmatprep.subr.bf16.mxu0 0
      %2424 = vmatpush1.bf16.msra.mxu0 0
      %2425 = vmatprep.subr.bf16.mxu0 0
      %2426 = vmatpush1.bf16.msra.mxu0 0
      %2427 = vmatprep.subr.bf16.mxu0 0
      %2428 = vmatpush1.bf16.msra.mxu0 0
      %2429 = vmatprep.subr.bf16.mxu0 0
      %2430 = vmatpush1.bf16.msra.mxu0 0
      %2431 = vmatprep.mubr.bf16.mxu0 0
      %2432 = vmatmul.mubr.bf16.gmra.mrb[0].mxu0 %v2391
      %v2433 = vpop.f32.mrb[0].mxu0
      %v2434 = vadd.f32 0.0, %v2433
      %v2435 = vpop.f32.mrb[0].mxu0
      %v2436 = vadd.f32 0.0, %v2435
      %v2437 = vpop.f32.mrb[0].mxu0
      %v2438 = vpop.f32.mrb[0].mxu0
      %2439 = vdwg.mxu0
      %v2440 = vadd.f32 %v2346, %v2434
      %v2441 = vadd.f32 %v2347, %v2436
      %2442 = vrot.lane.b32.xlu0 %v1817, 112
      %v2443 = vpop.permute.xlu0 %2442
      %2444 = vrot.lane.b32.xlu0 %v1819, 112
      %v2445 = vpop.permute.xlu0 %2444
      %2446 = vrot.lane.b32.xlu0 %v1821, 112
      %v2447 = vpop.permute.xlu0 %2446
      %2448 = vrot.lane.b32.xlu0 %v1818, 112
      %v2449 = vpop.permute.xlu0 %2448
      %2450 = vrot.lane.b32.xlu0 %v1820, 112
      %v2451 = vpop.permute.xlu0 %2450
      %2452 = vrot.lane.b32.xlu0 %v1822, 112
      %v2453 = vpop.permute.xlu0 %2452
      %v2454 = vsel %vm815, %v2443, %v2449
      %v2455 = vsel %vm815, %v2445, %v2451
      %v2456 = vsel %vm815, %v2447, %v2453
      %v2457 = vsel %vm815, %v2449, %v2443
      %v2458 = vsel %vm815, %v2451, %v2445
      %v2459 = vsel %vm815, %v2453, %v2447
      %v2460 = vld [vmem:[%s818] sm:$0x3]
      %v2462 = vlaneseq
      %v2463 = vshrl.u32 %v2462, 7
      %v2464 = vsub.s32 0, %v2463
      %v2465 = vrot.slane %v2460, %v2464
      %v2466 = vlaneseq
      %v2467 = vshrl.u32 %v2466, 7
      %v2468 = vsub.s32 1, %v2467
      %v2469 = vrot.slane %v2460, %v2468
      %v2472 = vmul.f32 %v2454, %v2465
      %v2473 = vmul.f32 %v2457, %v2469
      %v2474 = vmul.f32 %v2455, %v2465
      %v2475 = vmul.f32 %v2458, %v2469
      %v2476 = vmul.f32 %v2456, %v2465
      %v2477 = vmul.f32 %v2459, %v2469
      %s2478 = scalar_lea.vmem %s4, 100
      %v2479 = vld [vmem:[%s2478] sm:$0xf]
      %v2480 = vpack.c.bf16 %v2474, %v2472
      %v2481 = vpack.c.bf16 %v2475, %v2473
      %v2482 = vpack.c.bf16 %v2476, %v2476
      %v2483 = vpack.c.bf16 %v2477, %v2477
      %v2485 = vsel %vm1907, %v2479, 0
      %v2488 = vsel %vm345, %v2482, 0
      %v2491 = vsel %vm345, %v2483, 0
      %2493 = vmatprep.subr.bf16.mxu0 %v2481
      %2494 = vmatpush1.bf16.msra.mxu0 %v2480
      %2495 = vmatprep.subr.bf16.mxu0 %v2491
      %2496 = vmatpush1.bf16.msra.mxu0 %v2488
      %2497 = vmatprep.subr.bf16.mxu0 0
      %2498 = vmatpush1.bf16.msra.mxu0 0
      %2499 = vmatprep.subr.bf16.mxu0 0
      %2500 = vmatpush1.bf16.msra.mxu0 0
      %2501 = vmatprep.subr.bf16.mxu0 0
      %2502 = vmatpush1.bf16.msra.mxu0 0
      %2503 = vmatprep.subr.bf16.mxu0 0
      %2504 = vmatpush1.bf16.msra.mxu0 0
      %2505 = vmatprep.subr.bf16.mxu0 0
      %2506 = vmatpush1.bf16.msra.mxu0 0
      %2507 = vmatprep.subr.bf16.mxu0 0
      %2508 = vmatpush1.bf16.msra.mxu0 0
      %2509 = vmatprep.subr.bf16.mxu0 0
      %2510 = vmatpush1.bf16.msra.mxu0 0
      %2511 = vmatprep.subr.bf16.mxu0 0
      %2512 = vmatpush1.bf16.msra.mxu0 0
      %2513 = vmatprep.subr.bf16.mxu0 0
      %2514 = vmatpush1.bf16.msra.mxu0 0
      %2515 = vmatprep.subr.bf16.mxu0 0
      %2516 = vmatpush1.bf16.msra.mxu0 0
      %2517 = vmatprep.subr.bf16.mxu0 0
      %2518 = vmatpush1.bf16.msra.mxu0 0
      %2519 = vmatprep.subr.bf16.mxu0 0
      %2520 = vmatpush1.bf16.msra.mxu0 0
      %2521 = vmatprep.subr.bf16.mxu0 0
      %2522 = vmatpush1.bf16.msra.mxu0 0
      %2523 = vmatprep.subr.bf16.mxu0 0
      %2524 = vmatpush1.bf16.msra.mxu0 0
      %2525 = vmatprep.mubr.bf16.mxu0 0
      %2526 = vmatmul.mubr.bf16.gmra.mrb[0].mxu0 %v2485
      %v2527 = vpop.f32.mrb[0].mxu0
      %v2528 = vadd.f32 0.0, %v2527
      %v2529 = vpop.f32.mrb[0].mxu0
      %v2530 = vadd.f32 0.0, %v2529
      %v2531 = vpop.f32.mrb[0].mxu0
      %v2532 = vpop.f32.mrb[0].mxu0
      %2533 = vdwg.mxu0
      %v2534 = vadd.f32 %v2440, %v2528
      %v2535 = vadd.f32 %v2441, %v2530
      %2536 = vrot.lane.b32.xlu0 %v1817, 111
      %v2537 = vpop.permute.xlu0 %2536
      %2538 = vrot.lane.b32.xlu0 %v1819, 111
      %v2539 = vpop.permute.xlu0 %2538
      %2540 = vrot.lane.b32.xlu0 %v1821, 111
      %v2541 = vpop.permute.xlu0 %2540
      %2542 = vrot.lane.b32.xlu0 %v1818, 111
      %v2543 = vpop.permute.xlu0 %2542
      %2544 = vrot.lane.b32.xlu0 %v1820, 111
      %v2545 = vpop.permute.xlu0 %2544
      %2546 = vrot.lane.b32.xlu0 %v1822, 111
      %v2547 = vpop.permute.xlu0 %2546
      %v2548 = vsel %vm893, %v2537, %v2543
      %v2549 = vsel %vm893, %v2539, %v2545
      %v2550 = vsel %vm893, %v2541, %v2547
      %v2551 = vsel %vm893, %v2543, %v2537
      %v2552 = vsel %vm893, %v2545, %v2539
      %v2553 = vsel %vm893, %v2547, %v2541
      %v2554 = vld [vmem:[%s896] sm:$0x3]
      %v2556 = vlaneseq
      %v2557 = vshrl.u32 %v2556, 7
      %v2558 = vsub.s32 0, %v2557
      %v2559 = vrot.slane %v2554, %v2558
      %v2560 = vlaneseq
      %v2561 = vshrl.u32 %v2560, 7
      %v2562 = vsub.s32 1, %v2561
      %v2563 = vrot.slane %v2554, %v2562
      %v2566 = vmul.f32 %v2548, %v2559
      %v2567 = vmul.f32 %v2551, %v2563
      %v2568 = vmul.f32 %v2549, %v2559
      %v2569 = vmul.f32 %v2552, %v2563
      %v2570 = vmul.f32 %v2550, %v2559
      %v2571 = vmul.f32 %v2553, %v2563
      %s2572 = scalar_lea.vmem %s4, 104
      %v2573 = vld [vmem:[%s2572] sm:$0xf]
      %v2574 = vpack.c.bf16 %v2568, %v2566
      %v2575 = vpack.c.bf16 %v2569, %v2567
      %v2576 = vpack.c.bf16 %v2570, %v2570
      %v2577 = vpack.c.bf16 %v2571, %v2571
      %v2579 = vsel %vm1907, %v2573, 0
      %v2582 = vsel %vm345, %v2576, 0
      %v2585 = vsel %vm345, %v2577, 0
      %2587 = vmatprep.subr.bf16.mxu0 %v2575
      %2588 = vmatpush1.bf16.msra.mxu0 %v2574
      %2589 = vmatprep.subr.bf16.mxu0 %v2585
      %2590 = vmatpush1.bf16.msra.mxu0 %v2582
      %2591 = vmatprep.subr.bf16.mxu0 0
      %2592 = vmatpush1.bf16.msra.mxu0 0
      %2593 = vmatprep.subr.bf16.mxu0 0
      %2594 = vmatpush1.bf16.msra.mxu0 0
      %2595 = vmatprep.subr.bf16.mxu0 0
      %2596 = vmatpush1.bf16.msra.mxu0 0
      %2597 = vmatprep.subr.bf16.mxu0 0
      %2598 = vmatpush1.bf16.msra.mxu0 0
      %2599 = vmatprep.subr.bf16.mxu0 0
      %2600 = vmatpush1.bf16.msra.mxu0 0
      %2601 = vmatprep.subr.bf16.mxu0 0
      %2602 = vmatpush1.bf16.msra.mxu0 0
      %2603 = vmatprep.subr.bf16.mxu0 0
      %2604 = vmatpush1.bf16.msra.mxu0 0
      %2605 = vmatprep.subr.bf16.mxu0 0
      %2606 = vmatpush1.bf16.msra.mxu0 0
      %2607 = vmatprep.subr.bf16.mxu0 0
      %2608 = vmatpush1.bf16.msra.mxu0 0
      %2609 = vmatprep.subr.bf16.mxu0 0
      %2610 = vmatpush1.bf16.msra.mxu0 0
      %2611 = vmatprep.subr.bf16.mxu0 0
      %2612 = vmatpush1.bf16.msra.mxu0 0
      %2613 = vmatprep.subr.bf16.mxu0 0
      %2614 = vmatpush1.bf16.msra.mxu0 0
      %2615 = vmatprep.subr.bf16.mxu0 0
      %2616 = vmatpush1.bf16.msra.mxu0 0
      %2617 = vmatprep.subr.bf16.mxu0 0
      %2618 = vmatpush1.bf16.msra.mxu0 0
      %2619 = vmatprep.mubr.bf16.mxu0 0
      %2620 = vmatmul.mubr.bf16.gmra.mrb[0].mxu0 %v2579
      %v2621 = vpop.f32.mrb[0].mxu0
      %v2622 = vadd.f32 0.0, %v2621
      %v2623 = vpop.f32.mrb[0].mxu0
      %v2624 = vadd.f32 0.0, %v2623
      %v2625 = vpop.f32.mrb[0].mxu0
      %v2626 = vpop.f32.mrb[0].mxu0
      %2627 = vdwg.mxu0
      %v2628 = vadd.f32 %v2534, %v2622
      %v2629 = vadd.f32 %v2535, %v2624
      %s2630 = scalar_lea.vmem %s5, 16
      %v2631 = vld [vmem:[%s2630] sm:$0xff]
      %2633 = vset.pattern.permute.xlu0 0
      %2634 = vperm.xlu0 %2633, %v2631
      %v2635 = vpop.permute.xlu0 %2634
      %v2637 = vadd.f32 %v2628, %v2635
      %v2638 = vadd.f32 %v2629, %v2635
      %2639 = vst [vmem:[%s251 + $0x30] sm:$0xff] %v2637
      %2640 = vst [vmem:[%s251 + $0x38] sm:$0xff] %v2638
      %p2641 = scmp.lt.s32.totalorder %s17, 1
      %s2642 = scalar_select %p2641, %s17, 1
      %s2643 = smul.addr %s2642, 8
      %s2644 = smul.addr %s2643, 8
      %s2645 = scalar_lea.vmem %s6, %s2644
      // Predicated region
      $region45: #{dense_block_forward.1} parent=43 // pred_check
        %p2646 = pneg %p166
      $region46: #{dense_block_forward.1} parent=43 // pred_check_branch
        %2648 = sbr.rel (%p2646) target = $region48
      $region47: #{dense_block_forward.1} parent=43 // pred_region
        _
      $region48: #{dense_block_forward.1} parent=43 // pred_fallthru
        _
    $region44: #{dense_block_forward.1} parent=5 // pred_fallthru
      _
    %p2649 = scmp.le.s32.totalorder 2, %s12
    // Predicated region
    $region49: #{dense_block_forward.1} parent=5 // pred_check
      %p2650 = pneg %p2649
    $region50: #{dense_block_forward.1} parent=5 // pred_check_branch
      %2652 = sbr.rel (%p2650) target = $region52
    $region51: #{dense_block_forward.1} parent=5 // pred_region
      %s2653 = ssub.s32 %s12, 2
      // Predicated region
      $region53: #{dense_block_forward.1} parent=51 // pred_check
        %p2654 = pneg %p172
      $region54: #{dense_block_forward.1} parent=51 // pred_check_branch
        %2656 = sbr.rel (%p2654) target = $region56
      $region55: #{dense_block_forward.1} parent=51 // pred_region
        %p2657 = scmp.lt.s32.totalorder %s18, 1
        %s2658 = scalar_select %p2657, %s18, 1
        %s2659 = smul.addr %s2658, 8
        %s2660 = smul.addr %s2659, 8
        %s2661 = scalar_lea.vmem %s6, %s2660
      $region56: #{dense_block_forward.1} parent=51 // pred_fallthru
        _
    $region52: #{dense_block_forward.1} parent=5 // pred_fallthru
      _
  $region6: #{dense_block_forward.1} parent=0 // loop_footer
    %s16 = sadd.s32 1, %s12
  $region7: #{dense_block_forward.1} parent=0 // loop_footer_branch
    %11 = sbr.rel target = $region3
  $region8: #{dense_block_forward.1} parent=0 // loop_exit
    _

</llo_original>
